<compile_context>
chip_gen: v7x
topology: tpu7x:2x2x1
jax: 0.10.0
libtpu: 0.0.40
codegen_flags: <defaults>
</compile_context>

<pallas_src>
import numpy as np
import jax
import jax.numpy as jnp
from jax.experimental import pallas as pl
from jax.experimental.pallas import tpu as pltpu

MUL_X = 8                   # multiplicity of 0e and of 1o in irreps_x / irreps_out
MUL_OP = 4                  # multiplicity of 0e in irreps_operand
DIM_X = MUL_X + 3 * MUL_X   # 32
K_FUSED = MUL_OP * DIM_X    # 128  (fused contraction dim = operand channels x feature dim)
TN_DEFAULT = 1024           # node tile (sweepable; 512-2048 all fit VMEM easily)


def _round_up(x, m):
    return ((x + m - 1) // m) * m


def fctp_kernel(x_ref, a_ref, m_ref, o_ref):
    # x_ref: (TN, 32) bf16   a_ref: (TN, 4) f32
    # m_ref: (128, 32) bf16  o_ref: (TN, 32) f32
    x = x_ref[...]
    a = a_ref[...]
    # Fold the operand scaling into the matmul LHS (done once, on the VPU):
    #   xa[:, v*32 + d] = a[:, v] * x[:, d]
    xa = jnp.concatenate([a[:, v:v + 1] * x for v in range(MUL_OP)], axis=-1)
    xa = xa.astype(jnp.bfloat16)
    # Single K=128 MXU matmul with f32 accumulation.
    o_ref[...] = jnp.dot(
        xa, m_ref[...], preferred_element_type=jnp.float32
    ).astype(o_ref.dtype)


def self_connection_intro(x, a, m_flat, *, tn=TN_DEFAULT):
    """x: (N, 32) node features, a: (N, 4) node attrs, m_flat: (128, 32) folded path matrix."""
    n = x.shape[0]
    out_dtype = x.dtype

    # Ragged N: shrink the tile for tiny inputs, pad N up to a multiple of the tile.
    tn = min(tn, _round_up(max(n, 1), 8))
    n_pad = _round_up(n, tn)
    if n_pad != n:
        x = jnp.pad(x, ((0, n_pad - n), (0, 0)))
        a = jnp.pad(a, ((0, n_pad - n), (0, 0)))

    # HBM-bound kernel: halve input bytes with bf16, keep f32 accumulation + f32 output.
    x_bf = x.astype(jnp.bfloat16)
    m_bf = m_flat.astype(jnp.bfloat16)
    a_f32 = a.astype(jnp.float32)

    out = pl.pallas_call(
        fctp_kernel,
        out_shape=jax.ShapeDtypeStruct((n_pad, DIM_X), out_dtype),
        grid_spec=pltpu.PrefetchScalarGridSpec(
            num_scalar_prefetch=0,
            grid=(n_pad // tn,),
            in_specs=[
                pl.BlockSpec((tn, DIM_X), lambda i: (i, 0)),
                pl.BlockSpec((tn, MUL_OP), lambda i: (i, 0)),
                # constant block index -> Pallas skips re-DMA of M across grid steps
                pl.BlockSpec((K_FUSED, DIM_X), lambda i: (0, 0)),
            ],
            out_specs=pl.BlockSpec((tn, DIM_X), lambda i: (i, 0)),
        ),
        compiler_params=pltpu.CompilerParams(
            dimension_semantics=("parallel",)),
    )(x_bf, a_f32, m_bf)
    return out[:n]


def build_path_matrix(w1, w2):
    """Fold e3nn 'uvw' weights, Wigner-3j coeffs and path normalization into a flat
    (MUL_OP*DIM_X, DIM_X) matrix, row index = v*DIM_X + d_in (matches the kernel's LHS layout).

    Paths (FullyConnectedTensorProduct, defaults):
      (8x0e) x (4x0e) -> 8x0e : path_weight = sqrt(1/(MUL_X*MUL_OP)),  w3j(0,0,0) = 1
      (8x1o) x (4x0e) -> 8x1o : path_weight = sqrt(3/(MUL_X*MUL_OP)),  w3j(1,0,1)[i,0,k]=delta_ik/sqrt(3)
    Both collapse to the same scale c = 1/sqrt(MUL_X*MUL_OP).
    """
    c = 1.0 / np.sqrt(MUL_X * MUL_OP)
    m = np.zeros((MUL_OP, DIM_X, DIM_X), np.float32)
    for v in range(MUL_OP):
        # scalar -> scalar block
        m[v, :MUL_X, :MUL_X] = c * w1[:, v, :]
        # vector -> vector block (delta over the 3 l=1 components)
        for u in range(MUL_X):
            for w in range(MUL_X):
                for k in range(3):
                    m[v, MUL_X + 3 * u + k, MUL_X + 3 * w + k] = c * w2[u, v, w]
    return jnp.asarray(m.reshape(K_FUSED, DIM_X))


def reference_fctp(x, a, w1, w2):
    """Plain-JAX reference: direct e3nn TensorProduct formula (full f32)."""
    n = x.shape[0]
    x_s = x[:, :MUL_X]                                   # (N, 8)
    x_v = x[:, MUL_X:].reshape(n, MUL_X, 3)              # (N, 8, 3)
    pw_s = np.sqrt(1.0 / (MUL_X * MUL_OP))               # path weight, scalar out
    pw_v = np.sqrt(3.0 / (MUL_X * MUL_OP))               # path weight, vector out
    out_s = pw_s * jnp.einsum("uvw,nu,nv->nw", w1, x_s, a)
    # w3j(1,0,1) = delta_ik / sqrt(3)
    out_v = (pw_v / np.sqrt(3.0)) * jnp.einsum("uvw,nuk,nv->nwk", w2, x_v, a)
    return jnp.concatenate([out_s, out_v.reshape(n, 3 * MUL_X)], axis=-1)


if __name__ == "__main__":
    key = jax.random.PRNGKey(0)
    k_x, k_a, k_w1, k_w2 = jax.random.split(key, 4)

    # N not a multiple of the tile -> exercises ragged padding; 2 grid steps at TN=1024.
    N = 1999
    x = jax.random.normal(k_x, (N, DIM_X), dtype=jnp.float32)        # NODE_FEATURE
    a = jax.random.normal(k_a, (N, MUL_OP), dtype=jnp.float32)       # NODE_ATTR

    # e3nn initializes tensor-product weights as standard normal (deterministic here)
    w1 = jax.random.normal(k_w1, (MUL_X, MUL_OP, MUL_X), dtype=jnp.float32)  # 0e x 0e -> 0e
    w2 = jax.random.normal(k_w2, (MUL_X, MUL_OP, MUL_X), dtype=jnp.float32)  # 1o x 0e -> 1o

    m_flat = build_path_matrix(np.asarray(w1), np.asarray(w2))

    out = self_connection_intro(x, a, m_flat)
    out = jax.block_until_ready(out)

    ref = reference_fctp(x, a, w1, w2)
    # bf16 inputs on the MXU path (f32 accumulation) -> loosened tolerance vs. the f32 reference.
    np.testing.assert_allclose(np.asarray(out), np.asarray(ref), rtol=5e-2, atol=5e-2)

    print("KERNEL_OK")
</pallas_src>

<mosaic_0001>
module attributes {stable_mosaic.version = 11 : i64} {
  func.func @fctp_kernel(%arg0: i32, %arg1: memref<1024x32xbf16, #tpu.memory_space<vmem>>, %arg2: memref<1024x4xf32, #tpu.memory_space<vmem>>, %arg3: memref<128x32xbf16, #tpu.memory_space<vmem>>, %arg4: memref<1024x32xf32, #tpu.memory_space<vmem>>) attributes {dimension_semantics = [#tpu.dimension_semantics<parallel>], iteration_bounds = array<i64: 2>, scalar_prefetch = 0 : i64, scratch_operands = 0 : i64, tpu.core_type = #tpu.core_type<tc>, window_params = [{transform_indices = @transform_0, window_bounds = array<i64: 1024, 32>}, {transform_indices = @transform_1, window_bounds = array<i64: 1024, 4>}, {pipeline_mode = #tpu.pipeline_mode<synchronous>, transform_indices = @transform_2, window_bounds = array<i64: 128, 32>}, {transform_indices = @transform_3, window_bounds = array<i64: 1024, 32>}]} {
    %c0 = arith.constant 0 : index
    %c0_0 = arith.constant 0 : index
    %0 = vector.load %arg1[%c0, %c0_0] : memref<1024x32xbf16, #tpu.memory_space<vmem>>, vector<1024x32xbf16>
    %c0_1 = arith.constant 0 : index
    %c0_2 = arith.constant 0 : index
    %1 = vector.load %arg2[%c0_1, %c0_2] : memref<1024x4xf32, #tpu.memory_space<vmem>>, vector<1024x4xf32>
    %2 = vector.extract_strided_slice %1 {offsets = [0, 0], sizes = [1024, 1], strides = [1, 1]} : vector<1024x4xf32> to vector<1024x1xf32>
    %3 = arith.extf %0 : vector<1024x32xbf16> to vector<1024x32xf32>
    %4 = vector.broadcast %2 : vector<1024x1xf32> to vector<1024x32xf32>
    %5 = arith.mulf %4, %3 : vector<1024x32xf32>
    %6 = vector.extract_strided_slice %1 {offsets = [0, 1], sizes = [1024, 1], strides = [1, 1]} : vector<1024x4xf32> to vector<1024x1xf32>
    %7 = arith.extf %0 : vector<1024x32xbf16> to vector<1024x32xf32>
    %8 = vector.broadcast %6 : vector<1024x1xf32> to vector<1024x32xf32>
    %9 = arith.mulf %8, %7 : vector<1024x32xf32>
    %10 = vector.extract_strided_slice %1 {offsets = [0, 2], sizes = [1024, 1], strides = [1, 1]} : vector<1024x4xf32> to vector<1024x1xf32>
    %11 = arith.extf %0 : vector<1024x32xbf16> to vector<1024x32xf32>
    %12 = vector.broadcast %10 : vector<1024x1xf32> to vector<1024x32xf32>
    %13 = arith.mulf %12, %11 : vector<1024x32xf32>
    %14 = vector.extract_strided_slice %1 {offsets = [0, 3], sizes = [1024, 1], strides = [1, 1]} : vector<1024x4xf32> to vector<1024x1xf32>
    %15 = arith.extf %0 : vector<1024x32xbf16> to vector<1024x32xf32>
    %16 = vector.broadcast %14 : vector<1024x1xf32> to vector<1024x32xf32>
    %17 = arith.mulf %16, %15 : vector<1024x32xf32>
    %18 = tpu.concatenate %5, %9, %13, %17 in 1 : vector<1024x32xf32>, vector<1024x32xf32>, vector<1024x32xf32>, vector<1024x32xf32> -> vector<1024x128xf32>
    %19 = arith.truncf %18 : vector<1024x128xf32> to vector<1024x128xbf16>
    %c0_3 = arith.constant 0 : index
    %c0_4 = arith.constant 0 : index
    %20 = vector.load %arg3[%c0_3, %c0_4] : memref<128x32xbf16, #tpu.memory_space<vmem>>, vector<128x32xbf16>
    %cst = arith.constant dense<0.000000e+00> : vector<1024x32xf32>
    %21 = tpu.matmul %19, %20, %cst {dimension_numbers = #tpu.dot_dimension_numbers<[1], [0], [0], [1], [0, 0, 1, 1], [], []>} : vector<1024x128xbf16>, vector<128x32xbf16>, vector<1024x32xf32> -> vector<1024x32xf32>
    %c0_5 = arith.constant 0 : index
    %c0_6 = arith.constant 0 : index
    %22 = vector.load %arg4[%c0_5, %c0_6] : memref<1024x32xf32, #tpu.memory_space<vmem>>, vector<1024x32xf32>
    tpu.vector_store %arg4[%c0_5, %c0_6], %21 {strides = array<i32>} : memref<1024x32xf32, #tpu.memory_space<vmem>>, vector<1024x32xf32>,
    return
  }
  func.func @transform_0(%arg0: i32) -> (i32, i32) {
    %c0_i32 = arith.constant 0 : i32
    %c0_i32_0 = arith.constant 0 : i32
    return %arg0, %c0_i32 : i32, i32
  }
  func.func @transform_1(%arg0: i32) -> (i32, i32) {
    %c0_i32 = arith.constant 0 : i32
    %c0_i32_0 = arith.constant 0 : i32
    return %arg0, %c0_i32 : i32, i32
  }
  func.func @transform_2(%arg0: i32) -> (i32, i32) {
    %c0_i32 = arith.constant 0 : i32
    %c0_i32_0 = arith.constant 0 : i32
    %c0_i32_1 = arith.constant 0 : i32
    return %c0_i32, %c0_i32_0 : i32, i32
  }
  func.func @transform_3(%arg0: i32) -> (i32, i32) {
    %c0_i32 = arith.constant 0 : i32
    %c0_i32_0 = arith.constant 0 : i32
    return %arg0, %c0_i32 : i32, i32
  }
}

</mosaic_0001>

<llo_original>
// kernel: tpu_custom_call.1
$region0: #{tpu_custom_call.1}
  #allocation0 [shape = 'u32[]', space=smem, size = 0x4, offset = 0x4, fixed_abs, tag = 'smem constant byte address 0x4 - core index']
  #allocation1 [shape = 'u32[144,128]{1,0:T(1,128)}', space=vmem, size = 0x12000, scoped, tag = 'internal scratch']
  %s0 = inlined_call_operand.vmem [shape: bf16[2048,32], index: 0, kind: input, shape index: {}]
  %s1 = inlined_call_operand.vmem [shape: f32[2048,4], index: 1, kind: input, shape index: {}]
  %s2 = inlined_call_operand.vmem [shape: bf16[128,32], index: 2, kind: input, shape index: {}]
  %s3 = inlined_call_operand.vmem [shape: f32[2048,32], index: 3, kind: output, shape index: {}]
  %s4 = sld [smem:[#allocation0]]
  $region45: #{tpu_custom_call.1} parent=0
    _
  %s6 = ssub.s32 1, %s4
  %s7 = scalar_select 0, %s6, %s4
  loop: start=0, step=1, limit=4
  $region2: #{tpu_custom_call.1} parent=0 // loop_pre_header
    _
  $region3: #{tpu_custom_call.1} parent=0 // loop_header
    %s9 = sphi 0, %s13
    %p10 = scmp.ge.s32.totalorder %s9, 4
    %s19 = sphi 0, %s21
    %s22 = sphi 0, %s19
    %s23 = sphi 0, %s22
    %s39 = sphi 0, %s23
    %s45 = sphi 0, %s47
    %s48 = sphi 0, %s45
    %s49 = sphi 0, %s48
    %s65 = sphi 0, %s49
    %s69 = sphi 0, %s69
    %s71 = sphi 0, %s69
    %s72 = sphi 0, %s71
    %s86 = sphi 0, %s72
    %s92 = sphi 0, %s94
    %s95 = sphi 0, %s92
    %s96 = sphi 0, %s95
    %s112 = sphi 0, %s96
  $region4: #{tpu_custom_call.1} parent=0 // loop_header_branch
    %12 = sbr.rel (%p10) target = $region8
  $region5: #{tpu_custom_call.1} parent=0 // loop_body
    %s14 = ssub.s32 %s9, 1
    %s15 = ssub.s32 %s9, 2
    %s16 = sadd.s32 %s9, 1
    %s17 = ssub.s32 %s9, %s16
    %p18 = scmp.eq.s32.totalorder %s17, 0
    %s20 = sadd.s32 %s19, 1
    %s21 = scalar_select %p18, %s19, %s20
    %p24 = pneg %p18
    %p25 = scmp.eq.s32.totalorder %s9, 1
    %p26 = por %p24, %p25
    %p27 = scmp.ne.s32.totalorder %s19, %s22
    %p28 = scmp.eq.s32.totalorder %s9, 0
    %p29 = por %p27, %p28
    %p30 = scmp.ne.s32.totalorder %s19, %s22
    %p31 = scmp.eq.s32.totalorder %s14, 1
    %p32 = por %p30, %p31
    %p33 = scmp.ne.s32.totalorder %s22, %s23
    %p34 = scmp.eq.s32.totalorder %s14, 0
    %p35 = por %p33, %p34
    %p36 = scmp.ne.s32.totalorder %s22, %s23
    %p37 = scmp.eq.s32.totalorder %s15, 1
    %p38 = por %p36, %p37
    %p40 = scmp.ne.s32.totalorder %s23, %s39
    %p41 = scmp.eq.s32.totalorder %s15, 0
    %p42 = por %p40, %p41
    %s43 = ssub.s32 %s9, %s16
    %p44 = scmp.eq.s32.totalorder %s43, 0
    %s46 = sadd.s32 %s45, 1
    %s47 = scalar_select %p44, %s45, %s46
    %p50 = pneg %p44
    %p51 = scmp.eq.s32.totalorder %s9, 1
    %p52 = por %p50, %p51
    %p53 = scmp.ne.s32.totalorder %s45, %s48
    %p54 = scmp.eq.s32.totalorder %s9, 0
    %p55 = por %p53, %p54
    %p56 = scmp.ne.s32.totalorder %s45, %s48
    %p57 = scmp.eq.s32.totalorder %s14, 1
    %p58 = por %p56, %p57
    %p59 = scmp.ne.s32.totalorder %s48, %s49
    %p60 = scmp.eq.s32.totalorder %s14, 0
    %p61 = por %p59, %p60
    %p62 = scmp.ne.s32.totalorder %s48, %s49
    %p63 = scmp.eq.s32.totalorder %s15, 1
    %p64 = por %p62, %p63
    %p66 = scmp.ne.s32.totalorder %s49, %s65
    %p67 = scmp.eq.s32.totalorder %s15, 0
    %p68 = por %p66, %p67
    %s70 = sadd.s32 %s69, 1
    %p73 = scmp.eq.s32.totalorder %s9, 1
    %p74 = scmp.ne.s32.totalorder %s69, %s71
    %p75 = scmp.eq.s32.totalorder %s9, 0
    %p76 = por %p74, %p75
    %p77 = scmp.ne.s32.totalorder %s69, %s71
    %p78 = scmp.eq.s32.totalorder %s14, 1
    %p79 = por %p77, %p78
    %p80 = scmp.ne.s32.totalorder %s71, %s72
    %p81 = scmp.eq.s32.totalorder %s14, 0
    %p82 = por %p80, %p81
    %p83 = scmp.ne.s32.totalorder %s71, %s72
    %p84 = scmp.eq.s32.totalorder %s15, 1
    %p85 = por %p83, %p84
    %p87 = scmp.ne.s32.totalorder %s72, %s86
    %p88 = scmp.eq.s32.totalorder %s15, 0
    %p89 = por %p87, %p88
    %s90 = ssub.s32 %s9, %s16
    %p91 = scmp.eq.s32.totalorder %s90, 0
    %s93 = sadd.s32 %s92, 1
    %s94 = scalar_select %p91, %s92, %s93
    %p97 = pneg %p91
    %p98 = scmp.eq.s32.totalorder %s9, 1
    %p99 = por %p97, %p98
    %p100 = scmp.ne.s32.totalorder %s92, %s95
    %p101 = scmp.eq.s32.totalorder %s9, 0
    %p102 = por %p100, %p101
    %p103 = scmp.ne.s32.totalorder %s92, %s95
    %p104 = scmp.eq.s32.totalorder %s14, 1
    %p105 = por %p103, %p104
    %p106 = scmp.ne.s32.totalorder %s95, %s96
    %p107 = scmp.eq.s32.totalorder %s14, 0
    %p108 = por %p106, %p107
    %p109 = scmp.ne.s32.totalorder %s95, %s96
    %p110 = scmp.eq.s32.totalorder %s15, 1
    %p111 = por %p109, %p110
    %p113 = scmp.ne.s32.totalorder %s96, %s112
    %p114 = scmp.eq.s32.totalorder %s15, 0
    %p115 = por %p113, %p114
    %p116 = scmp.le.s32.totalorder 1, %s9
    %p117 = scmp.lt.s32.totalorder %s9, 3
    %p118 = pnand %p116, %p117
    %p119 = pneg %p118
    // Predicated region
    $region9: #{tpu_custom_call.1} parent=5 // pred_check
      _
    $region10: #{tpu_custom_call.1} parent=5 // pred_check_branch
      %121 = sbr.rel (%p118) target = $region12
    $region11: #{tpu_custom_call.1} parent=5 // pred_region
      %s122 = ssub.s32 %s9, 1
      // Predicated region
      $region13: #{tpu_custom_call.1} parent=11 // pred_check
        %p123 = pneg %p82
      $region14: #{tpu_custom_call.1} parent=11 // pred_check_branch
        %125 = sbr.rel (%p123) target = $region16
      $region15: #{tpu_custom_call.1} parent=11 // pred_region
        _
      $region16: #{tpu_custom_call.1} parent=11 // pred_fallthru
        _
    $region12: #{tpu_custom_call.1} parent=5 // pred_fallthru
      _
    %p126 = scmp.lt.s32.totalorder %s9, 2
    // Predicated region
    $region17: #{tpu_custom_call.1} parent=5 // pred_check
      %p127 = pneg %p126
    $region18: #{tpu_custom_call.1} parent=5 // pred_check_branch
      %129 = sbr.rel (%p127) target = $region20
    $region19: #{tpu_custom_call.1} parent=5 // pred_region
      // Predicated region
      $region21: #{tpu_custom_call.1} parent=19 // pred_check
        %p130 = pneg %p29
      $region22: #{tpu_custom_call.1} parent=19 // pred_check_branch
        %132 = sbr.rel (%p130) target = $region24
      $region23: #{tpu_custom_call.1} parent=19 // pred_region
        %s133 = smul.u32 128, %s9
        %p134 = scmp.lt.s32.totalorder %s133, 255
        %s135 = scalar_select %p134, %s133, 255
        %s136 = smul.addr %s135, 4
        %s137 = scalar_lea.vmem %s0, %s136
        %s138 = smul.u32 128, %s9
      $region24: #{tpu_custom_call.1} parent=19 // pred_fallthru
        _
      // Predicated region
      $region25: #{tpu_custom_call.1} parent=19 // pred_check
        %p139 = pneg %p55
      $region26: #{tpu_custom_call.1} parent=19 // pred_check_branch
        %141 = sbr.rel (%p139) target = $region28
      $region27: #{tpu_custom_call.1} parent=19 // pred_region
        %s142 = smul.u32 128, %s9
        %p143 = scmp.lt.s32.totalorder %s142, 255
        %s144 = scalar_select %p143, %s142, 255
        %s145 = smul.addr %s144, 8
        %s146 = scalar_lea.vmem %s1, %s145
        %s147 = smul.u32 128, %s9
      $region28: #{tpu_custom_call.1} parent=19 // pred_fallthru
        _
    $region20: #{tpu_custom_call.1} parent=5 // pred_fallthru
      _
    %p148 = scmp.le.s32.totalorder 1, %s9
    %p149 = scmp.lt.s32.totalorder %s9, 3
    %p150 = pnand %p148, %p149
    %p151 = pneg %p150
    // Predicated region
    $region29: #{tpu_custom_call.1} parent=5 // pred_check
      _
    $region30: #{tpu_custom_call.1} parent=5 // pred_check_branch
      %153 = sbr.rel (%p150) target = $region32
    $region31: #{tpu_custom_call.1} parent=5 // pred_region
      %s154 = ssub.s32 %s9, 1
      %s155 = smul.u32 128, %s14
      %p156 = scmp.lt.s32.totalorder %s155, 255
      %s157 = scalar_select %p156, %s155, 255
      %s158 = smul.addr %s157, 4
      %s159 = scalar_lea.vmem %s0, %s158
      %p160 = pneg %p35
      %p161 = pneg %p32
      %s162 = smul.u32 128, %s14
      %p163 = scmp.lt.s32.totalorder %s162, 255
      %s164 = scalar_select %p163, %s162, 255
      %s165 = smul.addr %s164, 8
      %s166 = scalar_lea.vmem %s1, %s165
      %p167 = pneg %p61
      %p168 = pneg %p58
      %p169 = pneg %p82
      %p170 = pneg %p79
      %p171 = pneg %p108
      %p172 = pneg %p105
      %s173 = smul.u32 128, %s14
      %p174 = scmp.lt.s32.totalorder %s173, 255
      %s175 = scalar_select %p174, %s173, 255
      %s176 = smul.addr %s175, 8
      %s177 = scalar_lea.vmem %s3, %s176
      %s178 = smul.u32 128, %s14
      %p179 = scmp.lt.s32.totalorder %s178, 255
      %s180 = scalar_select %p179, %s178, 255
      %s181 = smul.addr %s180, 4
      %s182 = scalar_lea.vmem %s0, %s181
      %s183 = smul.u32 128, %s14
      %s184 = smul.u32 128, %s14
      %p185 = scmp.lt.s32.totalorder %s184, 255
      %s186 = scalar_select %p185, %s184, 255
      %s187 = smul.addr %s186, 8
      %s188 = scalar_lea.vmem %s1, %s187
      %s189 = smul.u32 128, %s14
      %s190 = smul.u32 128, %s14
      %p191 = scmp.lt.s32.totalorder %s190, 255
      %s192 = scalar_select %p191, %s190, 255
      %s193 = smul.addr %s192, 8
      %s194 = scalar_lea.vmem %s3, %s193
      %s195 = smul.u32 128, %s14
      %v197 = vld [vmem:[%s182] sm:$0xf]
      %v198 = vld [vmem:[%s182 + $0x4] sm:$0xf]
      %v199 = vld [vmem:[%s182 + $0x8] sm:$0xf]
      %v200 = vld [vmem:[%s182 + $0xc] sm:$0xf]
      %v201 = vld [vmem:[%s182 + $0x10] sm:$0xf]
      %v202 = vld [vmem:[%s182 + $0x14] sm:$0xf]
      %v203 = vld [vmem:[%s182 + $0x18] sm:$0xf]
      %v204 = vld [vmem:[%s182 + $0x1c] sm:$0xf]
      %v205 = vld [vmem:[%s182 + $0x20] sm:$0xf]
      %v206 = vld [vmem:[%s182 + $0x24] sm:$0xf]
      %v207 = vld [vmem:[%s182 + $0x28] sm:$0xf]
      %v208 = vld [vmem:[%s182 + $0x2c] sm:$0xf]
      %v209 = vld [vmem:[%s182 + $0x30] sm:$0xf]
      %v210 = vld [vmem:[%s182 + $0x34] sm:$0xf]
      %v211 = vld [vmem:[%s182 + $0x38] sm:$0xf]
      %v212 = vld [vmem:[%s182 + $0x3c] sm:$0xf]
      %v213 = vld [vmem:[%s182 + $0x40] sm:$0xf]
      %v214 = vld [vmem:[%s182 + $0x44] sm:$0xf]
      %v215 = vld [vmem:[%s182 + $0x48] sm:$0xf]
      %v216 = vld [vmem:[%s182 + $0x4c] sm:$0xf]
      %v217 = vld [vmem:[%s182 + $0x50] sm:$0xf]
      %v218 = vld [vmem:[%s182 + $0x54] sm:$0xf]
      %v219 = vld [vmem:[%s182 + $0x58] sm:$0xf]
      %v220 = vld [vmem:[%s182 + $0x5c] sm:$0xf]
      %v221 = vld [vmem:[%s182 + $0x60] sm:$0xf]
      %v222 = vld [vmem:[%s182 + $0x64] sm:$0xf]
      %v223 = vld [vmem:[%s182 + $0x68] sm:$0xf]
      %v224 = vld [vmem:[%s182 + $0x6c] sm:$0xf]
      %v225 = vld [vmem:[%s182 + $0x70] sm:$0xf]
      %v226 = vld [vmem:[%s182 + $0x74] sm:$0xf]
      %v227 = vld [vmem:[%s182 + $0x78] sm:$0xf]
      %v228 = vld [vmem:[%s182 + $0x7c] sm:$0xf]
      %v229 = vld [vmem:[%s182 + $0x80] sm:$0xf]
      %v230 = vld [vmem:[%s182 + $0x84] sm:$0xf]
      %v231 = vld [vmem:[%s182 + $0x88] sm:$0xf]
      %v232 = vld [vmem:[%s182 + $0x8c] sm:$0xf]
      %v233 = vld [vmem:[%s182 + $0x90] sm:$0xf]
      %v234 = vld [vmem:[%s182 + $0x94] sm:$0xf]
      %v235 = vld [vmem:[%s182 + $0x98] sm:$0xf]
      %v236 = vld [vmem:[%s182 + $0x9c] sm:$0xf]
      %v237 = vld [vmem:[%s182 + $0xa0] sm:$0xf]
      %v238 = vld [vmem:[%s182 + $0xa4] sm:$0xf]
      %v239 = vld [vmem:[%s182 + $0xa8] sm:$0xf]
      %v240 = vld [vmem:[%s182 + $0xac] sm:$0xf]
      %v241 = vld [vmem:[%s182 + $0xb0] sm:$0xf]
      %v242 = vld [vmem:[%s182 + $0xb4] sm:$0xf]
      %v243 = vld [vmem:[%s182 + $0xb8] sm:$0xf]
      %v244 = vld [vmem:[%s182 + $0xbc] sm:$0xf]
      %v245 = vld [vmem:[%s182 + $0xc0] sm:$0xf]
      %v246 = vld [vmem:[%s182 + $0xc4] sm:$0xf]
      %v247 = vld [vmem:[%s182 + $0xc8] sm:$0xf]
      %v248 = vld [vmem:[%s182 + $0xcc] sm:$0xf]
      %v249 = vld [vmem:[%s182 + $0xd0] sm:$0xf]
      %v250 = vld [vmem:[%s182 + $0xd4] sm:$0xf]
      %v251 = vld [vmem:[%s182 + $0xd8] sm:$0xf]
      %v252 = vld [vmem:[%s182 + $0xdc] sm:$0xf]
      %v253 = vld [vmem:[%s182 + $0xe0] sm:$0xf]
      %v254 = vld [vmem:[%s182 + $0xe4] sm:$0xf]
      %v255 = vld [vmem:[%s182 + $0xe8] sm:$0xf]
      %v256 = vld [vmem:[%s182 + $0xec] sm:$0xf]
      %v257 = vld [vmem:[%s182 + $0xf0] sm:$0xf]
      %v258 = vld [vmem:[%s182 + $0xf4] sm:$0xf]
      %v259 = vld [vmem:[%s182 + $0xf8] sm:$0xf]
      %v260 = vld [vmem:[%s182 + $0xfc] sm:$0xf]
      %v261 = vld [vmem:[%s182 + $0x100] sm:$0xf]
      %v262 = vld [vmem:[%s182 + $0x104] sm:$0xf]
      %v263 = vld [vmem:[%s182 + $0x108] sm:$0xf]
      %v264 = vld [vmem:[%s182 + $0x10c] sm:$0xf]
      %v265 = vld [vmem:[%s182 + $0x110] sm:$0xf]
      %v266 = vld [vmem:[%s182 + $0x114] sm:$0xf]
      %v267 = vld [vmem:[%s182 + $0x118] sm:$0xf]
      %v268 = vld [vmem:[%s182 + $0x11c] sm:$0xf]
      %v269 = vld [vmem:[%s182 + $0x120] sm:$0xf]
      %v270 = vld [vmem:[%s182 + $0x124] sm:$0xf]
      %v271 = vld [vmem:[%s182 + $0x128] sm:$0xf]
      %v272 = vld [vmem:[%s182 + $0x12c] sm:$0xf]
      %v273 = vld [vmem:[%s182 + $0x130] sm:$0xf]
      %v274 = vld [vmem:[%s182 + $0x134] sm:$0xf]
      %v275 = vld [vmem:[%s182 + $0x138] sm:$0xf]
      %v276 = vld [vmem:[%s182 + $0x13c] sm:$0xf]
      %v277 = vld [vmem:[%s182 + $0x140] sm:$0xf]
      %v278 = vld [vmem:[%s182 + $0x144] sm:$0xf]
      %v279 = vld [vmem:[%s182 + $0x148] sm:$0xf]
      %v280 = vld [vmem:[%s182 + $0x14c] sm:$0xf]
      %v281 = vld [vmem:[%s182 + $0x150] sm:$0xf]
      %v282 = vld [vmem:[%s182 + $0x154] sm:$0xf]
      %v283 = vld [vmem:[%s182 + $0x158] sm:$0xf]
      %v284 = vld [vmem:[%s182 + $0x15c] sm:$0xf]
      %v285 = vld [vmem:[%s182 + $0x160] sm:$0xf]
      %v286 = vld [vmem:[%s182 + $0x164] sm:$0xf]
      %v287 = vld [vmem:[%s182 + $0x168] sm:$0xf]
      %v288 = vld [vmem:[%s182 + $0x16c] sm:$0xf]
      %v289 = vld [vmem:[%s182 + $0x170] sm:$0xf]
      %v290 = vld [vmem:[%s182 + $0x174] sm:$0xf]
      %v291 = vld [vmem:[%s182 + $0x178] sm:$0xf]
      %v292 = vld [vmem:[%s182 + $0x17c] sm:$0xf]
      %v293 = vld [vmem:[%s182 + $0x180] sm:$0xf]
      %v294 = vld [vmem:[%s182 + $0x184] sm:$0xf]
      %v295 = vld [vmem:[%s182 + $0x188] sm:$0xf]
      %v296 = vld [vmem:[%s182 + $0x18c] sm:$0xf]
      %v297 = vld [vmem:[%s182 + $0x190] sm:$0xf]
      %v298 = vld [vmem:[%s182 + $0x194] sm:$0xf]
      %v299 = vld [vmem:[%s182 + $0x198] sm:$0xf]
      %v300 = vld [vmem:[%s182 + $0x19c] sm:$0xf]
      %v301 = vld [vmem:[%s182 + $0x1a0] sm:$0xf]
      %v302 = vld [vmem:[%s182 + $0x1a4] sm:$0xf]
      %v303 = vld [vmem:[%s182 + $0x1a8] sm:$0xf]
      %v304 = vld [vmem:[%s182 + $0x1ac] sm:$0xf]
      %v305 = vld [vmem:[%s182 + $0x1b0] sm:$0xf]
      %v306 = vld [vmem:[%s182 + $0x1b4] sm:$0xf]
      %v307 = vld [vmem:[%s182 + $0x1b8] sm:$0xf]
      %v308 = vld [vmem:[%s182 + $0x1bc] sm:$0xf]
      %v309 = vld [vmem:[%s182 + $0x1c0] sm:$0xf]
      %v310 = vld [vmem:[%s182 + $0x1c4] sm:$0xf]
      %v311 = vld [vmem:[%s182 + $0x1c8] sm:$0xf]
      %v312 = vld [vmem:[%s182 + $0x1cc] sm:$0xf]
      %v313 = vld [vmem:[%s182 + $0x1d0] sm:$0xf]
      %v314 = vld [vmem:[%s182 + $0x1d4] sm:$0xf]
      %v315 = vld [vmem:[%s182 + $0x1d8] sm:$0xf]
      %v316 = vld [vmem:[%s182 + $0x1dc] sm:$0xf]
      %v317 = vld [vmem:[%s182 + $0x1e0] sm:$0xf]
      %v318 = vld [vmem:[%s182 + $0x1e4] sm:$0xf]
      %v319 = vld [vmem:[%s182 + $0x1e8] sm:$0xf]
      %v320 = vld [vmem:[%s182 + $0x1ec] sm:$0xf]
      %v321 = vld [vmem:[%s182 + $0x1f0] sm:$0xf]
      %v322 = vld [vmem:[%s182 + $0x1f4] sm:$0xf]
      %v323 = vld [vmem:[%s182 + $0x1f8] sm:$0xf]
      %v324 = vld [vmem:[%s182 + $0x1fc] sm:$0xf]
      %v325 = vld [vmem:[%s188] sm:$0xff]
      %v326 = vld [vmem:[%s188 + $0x8] sm:$0xff]
      %v327 = vld [vmem:[%s188 + $0x10] sm:$0xff]
      %v328 = vld [vmem:[%s188 + $0x18] sm:$0xff]
      %v329 = vld [vmem:[%s188 + $0x20] sm:$0xff]
      %v330 = vld [vmem:[%s188 + $0x28] sm:$0xff]
      %v331 = vld [vmem:[%s188 + $0x30] sm:$0xff]
      %v332 = vld [vmem:[%s188 + $0x38] sm:$0xff]
      %v333 = vld [vmem:[%s188 + $0x40] sm:$0xff]
      %v334 = vld [vmem:[%s188 + $0x48] sm:$0xff]
      %v335 = vld [vmem:[%s188 + $0x50] sm:$0xff]
      %v336 = vld [vmem:[%s188 + $0x58] sm:$0xff]
      %v337 = vld [vmem:[%s188 + $0x60] sm:$0xff]
      %v338 = vld [vmem:[%s188 + $0x68] sm:$0xff]
      %v339 = vld [vmem:[%s188 + $0x70] sm:$0xff]
      %v340 = vld [vmem:[%s188 + $0x78] sm:$0xff]
      %v341 = vld [vmem:[%s188 + $0x80] sm:$0xff]
      %v342 = vld [vmem:[%s188 + $0x88] sm:$0xff]
      %v343 = vld [vmem:[%s188 + $0x90] sm:$0xff]
      %v344 = vld [vmem:[%s188 + $0x98] sm:$0xff]
      %v345 = vld [vmem:[%s188 + $0xa0] sm:$0xff]
      %v346 = vld [vmem:[%s188 + $0xa8] sm:$0xff]
      %v347 = vld [vmem:[%s188 + $0xb0] sm:$0xff]
      %v348 = vld [vmem:[%s188 + $0xb8] sm:$0xff]
      %v349 = vld [vmem:[%s188 + $0xc0] sm:$0xff]
      %v350 = vld [vmem:[%s188 + $0xc8] sm:$0xff]
      %v351 = vld [vmem:[%s188 + $0xd0] sm:$0xff]
      %v352 = vld [vmem:[%s188 + $0xd8] sm:$0xff]
      %v353 = vld [vmem:[%s188 + $0xe0] sm:$0xff]
      %v354 = vld [vmem:[%s188 + $0xe8] sm:$0xff]
      %v355 = vld [vmem:[%s188 + $0xf0] sm:$0xff]
      %v356 = vld [vmem:[%s188 + $0xf8] sm:$0xff]
      %v357 = vld [vmem:[%s188 + $0x100] sm:$0xff]
      %v358 = vld [vmem:[%s188 + $0x108] sm:$0xff]
      %v359 = vld [vmem:[%s188 + $0x110] sm:$0xff]
      %v360 = vld [vmem:[%s188 + $0x118] sm:$0xff]
      %v361 = vld [vmem:[%s188 + $0x120] sm:$0xff]
      %v362 = vld [vmem:[%s188 + $0x128] sm:$0xff]
      %v363 = vld [vmem:[%s188 + $0x130] sm:$0xff]
      %v364 = vld [vmem:[%s188 + $0x138] sm:$0xff]
      %v365 = vld [vmem:[%s188 + $0x140] sm:$0xff]
      %v366 = vld [vmem:[%s188 + $0x148] sm:$0xff]
      %v367 = vld [vmem:[%s188 + $0x150] sm:$0xff]
      %v368 = vld [vmem:[%s188 + $0x158] sm:$0xff]
      %v369 = vld [vmem:[%s188 + $0x160] sm:$0xff]
      %v370 = vld [vmem:[%s188 + $0x168] sm:$0xff]
      %v371 = vld [vmem:[%s188 + $0x170] sm:$0xff]
      %v372 = vld [vmem:[%s188 + $0x178] sm:$0xff]
      %v373 = vld [vmem:[%s188 + $0x180] sm:$0xff]
      %v374 = vld [vmem:[%s188 + $0x188] sm:$0xff]
      %v375 = vld [vmem:[%s188 + $0x190] sm:$0xff]
      %v376 = vld [vmem:[%s188 + $0x198] sm:$0xff]
      %v377 = vld [vmem:[%s188 + $0x1a0] sm:$0xff]
      %v378 = vld [vmem:[%s188 + $0x1a8] sm:$0xff]
      %v379 = vld [vmem:[%s188 + $0x1b0] sm:$0xff]
      %v380 = vld [vmem:[%s188 + $0x1b8] sm:$0xff]
      %v381 = vld [vmem:[%s188 + $0x1c0] sm:$0xff]
      %v382 = vld [vmem:[%s188 + $0x1c8] sm:$0xff]
      %v383 = vld [vmem:[%s188 + $0x1d0] sm:$0xff]
      %v384 = vld [vmem:[%s188 + $0x1d8] sm:$0xff]
      %v385 = vld [vmem:[%s188 + $0x1e0] sm:$0xff]
      %v386 = vld [vmem:[%s188 + $0x1e8] sm:$0xff]
      %v387 = vld [vmem:[%s188 + $0x1f0] sm:$0xff]
      %v388 = vld [vmem:[%s188 + $0x1f8] sm:$0xff]
      %v389 = vld [vmem:[%s188 + $0x200] sm:$0xff]
      %v390 = vld [vmem:[%s188 + $0x208] sm:$0xff]
      %v391 = vld [vmem:[%s188 + $0x210] sm:$0xff]
      %v392 = vld [vmem:[%s188 + $0x218] sm:$0xff]
      %v393 = vld [vmem:[%s188 + $0x220] sm:$0xff]
      %v394 = vld [vmem:[%s188 + $0x228] sm:$0xff]
      %v395 = vld [vmem:[%s188 + $0x230] sm:$0xff]
      %v396 = vld [vmem:[%s188 + $0x238] sm:$0xff]
      %v397 = vld [vmem:[%s188 + $0x240] sm:$0xff]
      %v398 = vld [vmem:[%s188 + $0x248] sm:$0xff]
      %v399 = vld [vmem:[%s188 + $0x250] sm:$0xff]
      %v400 = vld [vmem:[%s188 + $0x258] sm:$0xff]
      %v401 = vld [vmem:[%s188 + $0x260] sm:$0xff]
      %v402 = vld [vmem:[%s188 + $0x268] sm:$0xff]
      %v403 = vld [vmem:[%s188 + $0x270] sm:$0xff]
      %v404 = vld [vmem:[%s188 + $0x278] sm:$0xff]
      %v405 = vld [vmem:[%s188 + $0x280] sm:$0xff]
      %v406 = vld [vmem:[%s188 + $0x288] sm:$0xff]
      %v407 = vld [vmem:[%s188 + $0x290] sm:$0xff]
      %v408 = vld [vmem:[%s188 + $0x298] sm:$0xff]
      %v409 = vld [vmem:[%s188 + $0x2a0] sm:$0xff]
      %v410 = vld [vmem:[%s188 + $0x2a8] sm:$0xff]
      %v411 = vld [vmem:[%s188 + $0x2b0] sm:$0xff]
      %v412 = vld [vmem:[%s188 + $0x2b8] sm:$0xff]
      %v413 = vld [vmem:[%s188 + $0x2c0] sm:$0xff]
      %v414 = vld [vmem:[%s188 + $0x2c8] sm:$0xff]
      %v415 = vld [vmem:[%s188 + $0x2d0] sm:$0xff]
      %v416 = vld [vmem:[%s188 + $0x2d8] sm:$0xff]
      %v417 = vld [vmem:[%s188 + $0x2e0] sm:$0xff]
      %v418 = vld [vmem:[%s188 + $0x2e8] sm:$0xff]
      %v419 = vld [vmem:[%s188 + $0x2f0] sm:$0xff]
      %v420 = vld [vmem:[%s188 + $0x2f8] sm:$0xff]
      %v421 = vld [vmem:[%s188 + $0x300] sm:$0xff]
      %v422 = vld [vmem:[%s188 + $0x308] sm:$0xff]
      %v423 = vld [vmem:[%s188 + $0x310] sm:$0xff]
      %v424 = vld [vmem:[%s188 + $0x318] sm:$0xff]
      %v425 = vld [vmem:[%s188 + $0x320] sm:$0xff]
      %v426 = vld [vmem:[%s188 + $0x328] sm:$0xff]
      %v427 = vld [vmem:[%s188 + $0x330] sm:$0xff]
      %v428 = vld [vmem:[%s188 + $0x338] sm:$0xff]
      %v429 = vld [vmem:[%s188 + $0x340] sm:$0xff]
      %v430 = vld [vmem:[%s188 + $0x348] sm:$0xff]
      %v431 = vld [vmem:[%s188 + $0x350] sm:$0xff]
      %v432 = vld [vmem:[%s188 + $0x358] sm:$0xff]
      %v433 = vld [vmem:[%s188 + $0x360] sm:$0xff]
      %v434 = vld [vmem:[%s188 + $0x368] sm:$0xff]
      %v435 = vld [vmem:[%s188 + $0x370] sm:$0xff]
      %v436 = vld [vmem:[%s188 + $0x378] sm:$0xff]
      %v437 = vld [vmem:[%s188 + $0x380] sm:$0xff]
      %v438 = vld [vmem:[%s188 + $0x388] sm:$0xff]
      %v439 = vld [vmem:[%s188 + $0x390] sm:$0xff]
      %v440 = vld [vmem:[%s188 + $0x398] sm:$0xff]
      %v441 = vld [vmem:[%s188 + $0x3a0] sm:$0xff]
      %v442 = vld [vmem:[%s188 + $0x3a8] sm:$0xff]
      %v443 = vld [vmem:[%s188 + $0x3b0] sm:$0xff]
      %v444 = vld [vmem:[%s188 + $0x3b8] sm:$0xff]
      %v445 = vld [vmem:[%s188 + $0x3c0] sm:$0xff]
      %v446 = vld [vmem:[%s188 + $0x3c8] sm:$0xff]
      %v447 = vld [vmem:[%s188 + $0x3d0] sm:$0xff]
      %v448 = vld [vmem:[%s188 + $0x3d8] sm:$0xff]
      %v449 = vld [vmem:[%s188 + $0x3e0] sm:$0xff]
      %v450 = vld [vmem:[%s188 + $0x3e8] sm:$0xff]
      %v451 = vld [vmem:[%s188 + $0x3f0] sm:$0xff]
      %v452 = vld [vmem:[%s188 + $0x3f8] sm:$0xff]
      %v453 = vunpack.c.l.bf16 %v197
      %v454 = vunpack.c.l.bf16 %v198
      %v455 = vunpack.c.l.bf16 %v199
      %v456 = vunpack.c.l.bf16 %v200
      %v457 = vunpack.c.l.bf16 %v201
      %v458 = vunpack.c.l.bf16 %v202
      %v459 = vunpack.c.l.bf16 %v203
      %v460 = vunpack.c.l.bf16 %v204
      %v461 = vunpack.c.l.bf16 %v205
      %v462 = vunpack.c.l.bf16 %v206
      %v463 = vunpack.c.l.bf16 %v207
      %v464 = vunpack.c.l.bf16 %v208
      %v465 = vunpack.c.l.bf16 %v209
      %v466 = vunpack.c.l.bf16 %v210
      %v467 = vunpack.c.l.bf16 %v211
      %v468 = vunpack.c.l.bf16 %v212
      %v469 = vunpack.c.l.bf16 %v213
      %v470 = vunpack.c.l.bf16 %v214
      %v471 = vunpack.c.l.bf16 %v215
      %v472 = vunpack.c.l.bf16 %v216
      %v473 = vunpack.c.l.bf16 %v217
      %v474 = vunpack.c.l.bf16 %v218
      %v475 = vunpack.c.l.bf16 %v219
      %v476 = vunpack.c.l.bf16 %v220
      %v477 = vunpack.c.l.bf16 %v221
      %v478 = vunpack.c.l.bf16 %v222
      %v479 = vunpack.c.l.bf16 %v223
      %v480 = vunpack.c.l.bf16 %v224
      %v481 = vunpack.c.l.bf16 %v225
      %v482 = vunpack.c.l.bf16 %v226
      %v483 = vunpack.c.l.bf16 %v227
      %v484 = vunpack.c.l.bf16 %v228
      %v485 = vunpack.c.l.bf16 %v229
      %v486 = vunpack.c.l.bf16 %v230
      %v487 = vunpack.c.l.bf16 %v231
      %v488 = vunpack.c.l.bf16 %v232
      %v489 = vunpack.c.l.bf16 %v233
      %v490 = vunpack.c.l.bf16 %v234
      %v491 = vunpack.c.l.bf16 %v235
      %v492 = vunpack.c.l.bf16 %v236
      %v493 = vunpack.c.l.bf16 %v237
      %v494 = vunpack.c.l.bf16 %v238
      %v495 = vunpack.c.l.bf16 %v239
      %v496 = vunpack.c.l.bf16 %v240
      %v497 = vunpack.c.l.bf16 %v241
      %v498 = vunpack.c.l.bf16 %v242
      %v499 = vunpack.c.l.bf16 %v243
      %v500 = vunpack.c.l.bf16 %v244
      %v501 = vunpack.c.l.bf16 %v245
      %v502 = vunpack.c.l.bf16 %v246
      %v503 = vunpack.c.l.bf16 %v247
      %v504 = vunpack.c.l.bf16 %v248
      %v505 = vunpack.c.l.bf16 %v249
      %v506 = vunpack.c.l.bf16 %v250
      %v507 = vunpack.c.l.bf16 %v251
      %v508 = vunpack.c.l.bf16 %v252
      %v509 = vunpack.c.l.bf16 %v253
      %v510 = vunpack.c.l.bf16 %v254
      %v511 = vunpack.c.l.bf16 %v255
      %v512 = vunpack.c.l.bf16 %v256
      %v513 = vunpack.c.l.bf16 %v257
      %v514 = vunpack.c.l.bf16 %v258
      %v515 = vunpack.c.l.bf16 %v259
      %v516 = vunpack.c.l.bf16 %v260
      %v517 = vunpack.c.l.bf16 %v261
      %v518 = vunpack.c.l.bf16 %v262
      %v519 = vunpack.c.l.bf16 %v263
      %v520 = vunpack.c.l.bf16 %v264
      %v521 = vunpack.c.l.bf16 %v265
      %v522 = vunpack.c.l.bf16 %v266
      %v523 = vunpack.c.l.bf16 %v267
      %v524 = vunpack.c.l.bf16 %v268
      %v525 = vunpack.c.l.bf16 %v269
      %v526 = vunpack.c.l.bf16 %v270
      %v527 = vunpack.c.l.bf16 %v271
      %v528 = vunpack.c.l.bf16 %v272
      %v529 = vunpack.c.l.bf16 %v273
      %v530 = vunpack.c.l.bf16 %v274
      %v531 = vunpack.c.l.bf16 %v275
      %v532 = vunpack.c.l.bf16 %v276
      %v533 = vunpack.c.l.bf16 %v277
      %v534 = vunpack.c.l.bf16 %v278
      %v535 = vunpack.c.l.bf16 %v279
      %v536 = vunpack.c.l.bf16 %v280
      %v537 = vunpack.c.l.bf16 %v281
      %v538 = vunpack.c.l.bf16 %v282
      %v539 = vunpack.c.l.bf16 %v283
      %v540 = vunpack.c.l.bf16 %v284
      %v541 = vunpack.c.l.bf16 %v285
      %v542 = vunpack.c.l.bf16 %v286
      %v543 = vunpack.c.l.bf16 %v287
      %v544 = vunpack.c.l.bf16 %v288
      %v545 = vunpack.c.l.bf16 %v289
      %v546 = vunpack.c.l.bf16 %v290
      %v547 = vunpack.c.l.bf16 %v291
      %v548 = vunpack.c.l.bf16 %v292
      %v549 = vunpack.c.l.bf16 %v293
      %v550 = vunpack.c.l.bf16 %v294
      %v551 = vunpack.c.l.bf16 %v295
      %v552 = vunpack.c.l.bf16 %v296
      %v553 = vunpack.c.l.bf16 %v297
      %v554 = vunpack.c.l.bf16 %v298
      %v555 = vunpack.c.l.bf16 %v299
      %v556 = vunpack.c.l.bf16 %v300
      %v557 = vunpack.c.l.bf16 %v301
      %v558 = vunpack.c.l.bf16 %v302
      %v559 = vunpack.c.l.bf16 %v303
      %v560 = vunpack.c.l.bf16 %v304
      %v561 = vunpack.c.l.bf16 %v305
      %v562 = vunpack.c.l.bf16 %v306
      %v563 = vunpack.c.l.bf16 %v307
      %v564 = vunpack.c.l.bf16 %v308
      %v565 = vunpack.c.l.bf16 %v309
      %v566 = vunpack.c.l.bf16 %v310
      %v567 = vunpack.c.l.bf16 %v311
      %v568 = vunpack.c.l.bf16 %v312
      %v569 = vunpack.c.l.bf16 %v313
      %v570 = vunpack.c.l.bf16 %v314
      %v571 = vunpack.c.l.bf16 %v315
      %v572 = vunpack.c.l.bf16 %v316
      %v573 = vunpack.c.l.bf16 %v317
      %v574 = vunpack.c.l.bf16 %v318
      %v575 = vunpack.c.l.bf16 %v319
      %v576 = vunpack.c.l.bf16 %v320
      %v577 = vunpack.c.l.bf16 %v321
      %v578 = vunpack.c.l.bf16 %v322
      %v579 = vunpack.c.l.bf16 %v323
      %v580 = vunpack.c.l.bf16 %v324
      %582 = vset.pattern.permute.xlu0 0
      %583 = vperm.xlu0 %582, %v325
      %v584 = vpop.permute.xlu0 %583
      %587 = vset.pattern.permute.xlu0 0
      %588 = vperm.xlu0 %587, %v326
      %v589 = vpop.permute.xlu0 %588
      %592 = vset.pattern.permute.xlu0 0
      %593 = vperm.xlu0 %592, %v327
      %v594 = vpop.permute.xlu0 %593
      %597 = vset.pattern.permute.xlu0 0
      %598 = vperm.xlu0 %597, %v328
      %v599 = vpop.permute.xlu0 %598
      %602 = vset.pattern.permute.xlu0 0
      %603 = vperm.xlu0 %602, %v329
      %v604 = vpop.permute.xlu0 %603
      %607 = vset.pattern.permute.xlu0 0
      %608 = vperm.xlu0 %607, %v330
      %v609 = vpop.permute.xlu0 %608
      %612 = vset.pattern.permute.xlu0 0
      %613 = vperm.xlu0 %612, %v331
      %v614 = vpop.permute.xlu0 %613
      %617 = vset.pattern.permute.xlu0 0
      %618 = vperm.xlu0 %617, %v332
      %v619 = vpop.permute.xlu0 %618
      %622 = vset.pattern.permute.xlu0 0
      %623 = vperm.xlu0 %622, %v333
      %v624 = vpop.permute.xlu0 %623
      %627 = vset.pattern.permute.xlu0 0
      %628 = vperm.xlu0 %627, %v334
      %v629 = vpop.permute.xlu0 %628
      %632 = vset.pattern.permute.xlu0 0
      %633 = vperm.xlu0 %632, %v335
      %v634 = vpop.permute.xlu0 %633
      %637 = vset.pattern.permute.xlu0 0
      %638 = vperm.xlu0 %637, %v336
      %v639 = vpop.permute.xlu0 %638
      %642 = vset.pattern.permute.xlu0 0
      %643 = vperm.xlu0 %642, %v337
      %v644 = vpop.permute.xlu0 %643
      %647 = vset.pattern.permute.xlu0 0
      %648 = vperm.xlu0 %647, %v338
      %v649 = vpop.permute.xlu0 %648
      %652 = vset.pattern.permute.xlu0 0
      %653 = vperm.xlu0 %652, %v339
      %v654 = vpop.permute.xlu0 %653
      %657 = vset.pattern.permute.xlu0 0
      %658 = vperm.xlu0 %657, %v340
      %v659 = vpop.permute.xlu0 %658
      %662 = vset.pattern.permute.xlu0 0
      %663 = vperm.xlu0 %662, %v341
      %v664 = vpop.permute.xlu0 %663
      %667 = vset.pattern.permute.xlu0 0
      %668 = vperm.xlu0 %667, %v342
      %v669 = vpop.permute.xlu0 %668
      %672 = vset.pattern.permute.xlu0 0
      %673 = vperm.xlu0 %672, %v343
      %v674 = vpop.permute.xlu0 %673
      %677 = vset.pattern.permute.xlu0 0
      %678 = vperm.xlu0 %677, %v344
      %v679 = vpop.permute.xlu0 %678
      %682 = vset.pattern.permute.xlu0 0
      %683 = vperm.xlu0 %682, %v345
      %v684 = vpop.permute.xlu0 %683
      %687 = vset.pattern.permute.xlu0 0
      %688 = vperm.xlu0 %687, %v346
      %v689 = vpop.permute.xlu0 %688
      %692 = vset.pattern.permute.xlu0 0
      %693 = vperm.xlu0 %692, %v347
      %v694 = vpop.permute.xlu0 %693
      %697 = vset.pattern.permute.xlu0 0
      %698 = vperm.xlu0 %697, %v348
      %v699 = vpop.permute.xlu0 %698
      %702 = vset.pattern.permute.xlu0 0
      %703 = vperm.xlu0 %702, %v349
      %v704 = vpop.permute.xlu0 %703
      %707 = vset.pattern.permute.xlu0 0
      %708 = vperm.xlu0 %707, %v350
      %v709 = vpop.permute.xlu0 %708
      %712 = vset.pattern.permute.xlu0 0
      %713 = vperm.xlu0 %712, %v351
      %v714 = vpop.permute.xlu0 %713
      %717 = vset.pattern.permute.xlu0 0
      %718 = vperm.xlu0 %717, %v352
      %v719 = vpop.permute.xlu0 %718
      %722 = vset.pattern.permute.xlu0 0
      %723 = vperm.xlu0 %722, %v353
      %v724 = vpop.permute.xlu0 %723
      %727 = vset.pattern.permute.xlu0 0
      %728 = vperm.xlu0 %727, %v354
      %v729 = vpop.permute.xlu0 %728
      %732 = vset.pattern.permute.xlu0 0
      %733 = vperm.xlu0 %732, %v355
      %v734 = vpop.permute.xlu0 %733
      %737 = vset.pattern.permute.xlu0 0
      %738 = vperm.xlu0 %737, %v356
      %v739 = vpop.permute.xlu0 %738
      %742 = vset.pattern.permute.xlu0 0
      %743 = vperm.xlu0 %742, %v357
      %v744 = vpop.permute.xlu0 %743
      %747 = vset.pattern.permute.xlu0 0
      %748 = vperm.xlu0 %747, %v358
      %v749 = vpop.permute.xlu0 %748
      %752 = vset.pattern.permute.xlu0 0
      %753 = vperm.xlu0 %752, %v359
      %v754 = vpop.permute.xlu0 %753
      %757 = vset.pattern.permute.xlu0 0
      %758 = vperm.xlu0 %757, %v360
      %v759 = vpop.permute.xlu0 %758
      %762 = vset.pattern.permute.xlu0 0
      %763 = vperm.xlu0 %762, %v361
      %v764 = vpop.permute.xlu0 %763
      %767 = vset.pattern.permute.xlu0 0
      %768 = vperm.xlu0 %767, %v362
      %v769 = vpop.permute.xlu0 %768
      %772 = vset.pattern.permute.xlu0 0
      %773 = vperm.xlu0 %772, %v363
      %v774 = vpop.permute.xlu0 %773
      %777 = vset.pattern.permute.xlu0 0
      %778 = vperm.xlu0 %777, %v364
      %v779 = vpop.permute.xlu0 %778
      %782 = vset.pattern.permute.xlu0 0
      %783 = vperm.xlu0 %782, %v365
      %v784 = vpop.permute.xlu0 %783
      %787 = vset.pattern.permute.xlu0 0
      %788 = vperm.xlu0 %787, %v366
      %v789 = vpop.permute.xlu0 %788
      %792 = vset.pattern.permute.xlu0 0
      %793 = vperm.xlu0 %792, %v367
      %v794 = vpop.permute.xlu0 %793
      %797 = vset.pattern.permute.xlu0 0
      %798 = vperm.xlu0 %797, %v368
      %v799 = vpop.permute.xlu0 %798
      %802 = vset.pattern.permute.xlu0 0
      %803 = vperm.xlu0 %802, %v369
      %v804 = vpop.permute.xlu0 %803
      %807 = vset.pattern.permute.xlu0 0
      %808 = vperm.xlu0 %807, %v370
      %v809 = vpop.permute.xlu0 %808
      %812 = vset.pattern.permute.xlu0 0
      %813 = vperm.xlu0 %812, %v371
      %v814 = vpop.permute.xlu0 %813
      %817 = vset.pattern.permute.xlu0 0
      %818 = vperm.xlu0 %817, %v372
      %v819 = vpop.permute.xlu0 %818
      %822 = vset.pattern.permute.xlu0 0
      %823 = vperm.xlu0 %822, %v373
      %v824 = vpop.permute.xlu0 %823
      %827 = vset.pattern.permute.xlu0 0
      %828 = vperm.xlu0 %827, %v374
      %v829 = vpop.permute.xlu0 %828
      %832 = vset.pattern.permute.xlu0 0
      %833 = vperm.xlu0 %832, %v375
      %v834 = vpop.permute.xlu0 %833
      %837 = vset.pattern.permute.xlu0 0
      %838 = vperm.xlu0 %837, %v376
      %v839 = vpop.permute.xlu0 %838
      %842 = vset.pattern.permute.xlu0 0
      %843 = vperm.xlu0 %842, %v377
      %v844 = vpop.permute.xlu0 %843
      %847 = vset.pattern.permute.xlu0 0
      %848 = vperm.xlu0 %847, %v378
      %v849 = vpop.permute.xlu0 %848
      %852 = vset.pattern.permute.xlu0 0
      %853 = vperm.xlu0 %852, %v379
      %v854 = vpop.permute.xlu0 %853
      %857 = vset.pattern.permute.xlu0 0
      %858 = vperm.xlu0 %857, %v380
      %v859 = vpop.permute.xlu0 %858
      %862 = vset.pattern.permute.xlu0 0
      %863 = vperm.xlu0 %862, %v381
      %v864 = vpop.permute.xlu0 %863
      %867 = vset.pattern.permute.xlu0 0
      %868 = vperm.xlu0 %867, %v382
      %v869 = vpop.permute.xlu0 %868
      %872 = vset.pattern.permute.xlu0 0
      %873 = vperm.xlu0 %872, %v383
      %v874 = vpop.permute.xlu0 %873
      %877 = vset.pattern.permute.xlu0 0
      %878 = vperm.xlu0 %877, %v384
      %v879 = vpop.permute.xlu0 %878
      %882 = vset.pattern.permute.xlu0 0
      %883 = vperm.xlu0 %882, %v385
      %v884 = vpop.permute.xlu0 %883
      %887 = vset.pattern.permute.xlu0 0
      %888 = vperm.xlu0 %887, %v386
      %v889 = vpop.permute.xlu0 %888
      %892 = vset.pattern.permute.xlu0 0
      %893 = vperm.xlu0 %892, %v387
      %v894 = vpop.permute.xlu0 %893
      %897 = vset.pattern.permute.xlu0 0
      %898 = vperm.xlu0 %897, %v388
      %v899 = vpop.permute.xlu0 %898
      %902 = vset.pattern.permute.xlu0 0
      %903 = vperm.xlu0 %902, %v389
      %v904 = vpop.permute.xlu0 %903
      %907 = vset.pattern.permute.xlu0 0
      %908 = vperm.xlu0 %907, %v390
      %v909 = vpop.permute.xlu0 %908
      %912 = vset.pattern.permute.xlu0 0
      %913 = vperm.xlu0 %912, %v391
      %v914 = vpop.permute.xlu0 %913
      %917 = vset.pattern.permute.xlu0 0
      %918 = vperm.xlu0 %917, %v392
      %v919 = vpop.permute.xlu0 %918
      %922 = vset.pattern.permute.xlu0 0
      %923 = vperm.xlu0 %922, %v393
      %v924 = vpop.permute.xlu0 %923
      %927 = vset.pattern.permute.xlu0 0
      %928 = vperm.xlu0 %927, %v394
      %v929 = vpop.permute.xlu0 %928
      %932 = vset.pattern.permute.xlu0 0
      %933 = vperm.xlu0 %932, %v395
      %v934 = vpop.permute.xlu0 %933
      %937 = vset.pattern.permute.xlu0 0
      %938 = vperm.xlu0 %937, %v396
      %v939 = vpop.permute.xlu0 %938
      %942 = vset.pattern.permute.xlu0 0
      %943 = vperm.xlu0 %942, %v397
      %v944 = vpop.permute.xlu0 %943
      %947 = vset.pattern.permute.xlu0 0
      %948 = vperm.xlu0 %947, %v398
      %v949 = vpop.permute.xlu0 %948
      %952 = vset.pattern.permute.xlu0 0
      %953 = vperm.xlu0 %952, %v399
      %v954 = vpop.permute.xlu0 %953
      %957 = vset.pattern.permute.xlu0 0
      %958 = vperm.xlu0 %957, %v400
      %v959 = vpop.permute.xlu0 %958
      %962 = vset.pattern.permute.xlu0 0
      %963 = vperm.xlu0 %962, %v401
      %v964 = vpop.permute.xlu0 %963
      %967 = vset.pattern.permute.xlu0 0
      %968 = vperm.xlu0 %967, %v402
      %v969 = vpop.permute.xlu0 %968
      %972 = vset.pattern.permute.xlu0 0
      %973 = vperm.xlu0 %972, %v403
      %v974 = vpop.permute.xlu0 %973
      %977 = vset.pattern.permute.xlu0 0
      %978 = vperm.xlu0 %977, %v404
      %v979 = vpop.permute.xlu0 %978
      %982 = vset.pattern.permute.xlu0 0
      %983 = vperm.xlu0 %982, %v405
      %v984 = vpop.permute.xlu0 %983
      %987 = vset.pattern.permute.xlu0 0
      %988 = vperm.xlu0 %987, %v406
      %v989 = vpop.permute.xlu0 %988
      %992 = vset.pattern.permute.xlu0 0
      %993 = vperm.xlu0 %992, %v407
      %v994 = vpop.permute.xlu0 %993
      %997 = vset.pattern.permute.xlu0 0
      %998 = vperm.xlu0 %997, %v408
      %v999 = vpop.permute.xlu0 %998
      %1002 = vset.pattern.permute.xlu0 0
      %1003 = vperm.xlu0 %1002, %v409
      %v1004 = vpop.permute.xlu0 %1003
      %1007 = vset.pattern.permute.xlu0 0
      %1008 = vperm.xlu0 %1007, %v410
      %v1009 = vpop.permute.xlu0 %1008
      %1012 = vset.pattern.permute.xlu0 0
      %1013 = vperm.xlu0 %1012, %v411
      %v1014 = vpop.permute.xlu0 %1013
      %1017 = vset.pattern.permute.xlu0 0
      %1018 = vperm.xlu0 %1017, %v412
      %v1019 = vpop.permute.xlu0 %1018
      %1022 = vset.pattern.permute.xlu0 0
      %1023 = vperm.xlu0 %1022, %v413
      %v1024 = vpop.permute.xlu0 %1023
      %1027 = vset.pattern.permute.xlu0 0
      %1028 = vperm.xlu0 %1027, %v414
      %v1029 = vpop.permute.xlu0 %1028
      %1032 = vset.pattern.permute.xlu0 0
      %1033 = vperm.xlu0 %1032, %v415
      %v1034 = vpop.permute.xlu0 %1033
      %1037 = vset.pattern.permute.xlu0 0
      %1038 = vperm.xlu0 %1037, %v416
      %v1039 = vpop.permute.xlu0 %1038
      %1042 = vset.pattern.permute.xlu0 0
      %1043 = vperm.xlu0 %1042, %v417
      %v1044 = vpop.permute.xlu0 %1043
      %1047 = vset.pattern.permute.xlu0 0
      %1048 = vperm.xlu0 %1047, %v418
      %v1049 = vpop.permute.xlu0 %1048
      %1052 = vset.pattern.permute.xlu0 0
      %1053 = vperm.xlu0 %1052, %v419
      %v1054 = vpop.permute.xlu0 %1053
      %1057 = vset.pattern.permute.xlu0 0
      %1058 = vperm.xlu0 %1057, %v420
      %v1059 = vpop.permute.xlu0 %1058
      %1062 = vset.pattern.permute.xlu0 0
      %1063 = vperm.xlu0 %1062, %v421
      %v1064 = vpop.permute.xlu0 %1063
      %1067 = vset.pattern.permute.xlu0 0
      %1068 = vperm.xlu0 %1067, %v422
      %v1069 = vpop.permute.xlu0 %1068
      %1072 = vset.pattern.permute.xlu0 0
      %1073 = vperm.xlu0 %1072, %v423
      %v1074 = vpop.permute.xlu0 %1073
      %1077 = vset.pattern.permute.xlu0 0
      %1078 = vperm.xlu0 %1077, %v424
      %v1079 = vpop.permute.xlu0 %1078
      %1082 = vset.pattern.permute.xlu0 0
      %1083 = vperm.xlu0 %1082, %v425
      %v1084 = vpop.permute.xlu0 %1083
      %1087 = vset.pattern.permute.xlu0 0
      %1088 = vperm.xlu0 %1087, %v426
      %v1089 = vpop.permute.xlu0 %1088
      %1092 = vset.pattern.permute.xlu0 0
      %1093 = vperm.xlu0 %1092, %v427
      %v1094 = vpop.permute.xlu0 %1093
      %1097 = vset.pattern.permute.xlu0 0
      %1098 = vperm.xlu0 %1097, %v428
      %v1099 = vpop.permute.xlu0 %1098
      %1102 = vset.pattern.permute.xlu0 0
      %1103 = vperm.xlu0 %1102, %v429
      %v1104 = vpop.permute.xlu0 %1103
      %1107 = vset.pattern.permute.xlu0 0
      %1108 = vperm.xlu0 %1107, %v430
      %v1109 = vpop.permute.xlu0 %1108
      %1112 = vset.pattern.permute.xlu0 0
      %1113 = vperm.xlu0 %1112, %v431
      %v1114 = vpop.permute.xlu0 %1113
      %1117 = vset.pattern.permute.xlu0 0
      %1118 = vperm.xlu0 %1117, %v432
      %v1119 = vpop.permute.xlu0 %1118
      %1122 = vset.pattern.permute.xlu0 0
      %1123 = vperm.xlu0 %1122, %v433
      %v1124 = vpop.permute.xlu0 %1123
      %1127 = vset.pattern.permute.xlu0 0
      %1128 = vperm.xlu0 %1127, %v434
      %v1129 = vpop.permute.xlu0 %1128
      %1132 = vset.pattern.permute.xlu0 0
      %1133 = vperm.xlu0 %1132, %v435
      %v1134 = vpop.permute.xlu0 %1133
      %1137 = vset.pattern.permute.xlu0 0
      %1138 = vperm.xlu0 %1137, %v436
      %v1139 = vpop.permute.xlu0 %1138
      %1142 = vset.pattern.permute.xlu0 0
      %1143 = vperm.xlu0 %1142, %v437
      %v1144 = vpop.permute.xlu0 %1143
      %1147 = vset.pattern.permute.xlu0 0
      %1148 = vperm.xlu0 %1147, %v438
      %v1149 = vpop.permute.xlu0 %1148
      %1152 = vset.pattern.permute.xlu0 0
      %1153 = vperm.xlu0 %1152, %v439
      %v1154 = vpop.permute.xlu0 %1153
      %1157 = vset.pattern.permute.xlu0 0
      %1158 = vperm.xlu0 %1157, %v440
      %v1159 = vpop.permute.xlu0 %1158
      %1162 = vset.pattern.permute.xlu0 0
      %1163 = vperm.xlu0 %1162, %v441
      %v1164 = vpop.permute.xlu0 %1163
      %1167 = vset.pattern.permute.xlu0 0
      %1168 = vperm.xlu0 %1167, %v442
      %v1169 = vpop.permute.xlu0 %1168
      %1172 = vset.pattern.permute.xlu0 0
      %1173 = vperm.xlu0 %1172, %v443
      %v1174 = vpop.permute.xlu0 %1173
      %1177 = vset.pattern.permute.xlu0 0
      %1178 = vperm.xlu0 %1177, %v444
      %v1179 = vpop.permute.xlu0 %1178
      %1182 = vset.pattern.permute.xlu0 0
      %1183 = vperm.xlu0 %1182, %v445
      %v1184 = vpop.permute.xlu0 %1183
      %1187 = vset.pattern.permute.xlu0 0
      %1188 = vperm.xlu0 %1187, %v446
      %v1189 = vpop.permute.xlu0 %1188
      %1192 = vset.pattern.permute.xlu0 0
      %1193 = vperm.xlu0 %1192, %v447
      %v1194 = vpop.permute.xlu0 %1193
      %1197 = vset.pattern.permute.xlu0 0
      %1198 = vperm.xlu0 %1197, %v448
      %v1199 = vpop.permute.xlu0 %1198
      %1202 = vset.pattern.permute.xlu0 0
      %1203 = vperm.xlu0 %1202, %v449
      %v1204 = vpop.permute.xlu0 %1203
      %1207 = vset.pattern.permute.xlu0 0
      %1208 = vperm.xlu0 %1207, %v450
      %v1209 = vpop.permute.xlu0 %1208
      %1212 = vset.pattern.permute.xlu0 0
      %1213 = vperm.xlu0 %1212, %v451
      %v1214 = vpop.permute.xlu0 %1213
      %1217 = vset.pattern.permute.xlu0 0
      %1218 = vperm.xlu0 %1217, %v452
      %v1219 = vpop.permute.xlu0 %1218
      %v1221 = vmul.f32 %v584, %v453
      %v1222 = vmul.f32 %v589, %v454
      %v1223 = vmul.f32 %v594, %v455
      %v1224 = vmul.f32 %v599, %v456
      %v1225 = vmul.f32 %v604, %v457
      %v1226 = vmul.f32 %v609, %v458
      %v1227 = vmul.f32 %v614, %v459
      %v1228 = vmul.f32 %v619, %v460
      %v1229 = vmul.f32 %v624, %v461
      %v1230 = vmul.f32 %v629, %v462
      %v1231 = vmul.f32 %v634, %v463
      %v1232 = vmul.f32 %v639, %v464
      %v1233 = vmul.f32 %v644, %v465
      %v1234 = vmul.f32 %v649, %v466
      %v1235 = vmul.f32 %v654, %v467
      %v1236 = vmul.f32 %v659, %v468
      %v1237 = vmul.f32 %v664, %v469
      %v1238 = vmul.f32 %v669, %v470
      %v1239 = vmul.f32 %v674, %v471
      %v1240 = vmul.f32 %v679, %v472
      %v1241 = vmul.f32 %v684, %v473
      %v1242 = vmul.f32 %v689, %v474
      %v1243 = vmul.f32 %v694, %v475
      %v1244 = vmul.f32 %v699, %v476
      %v1245 = vmul.f32 %v704, %v477
      %v1246 = vmul.f32 %v709, %v478
      %v1247 = vmul.f32 %v714, %v479
      %v1248 = vmul.f32 %v719, %v480
      %v1249 = vmul.f32 %v724, %v481
      %v1250 = vmul.f32 %v729, %v482
      %v1251 = vmul.f32 %v734, %v483
      %v1252 = vmul.f32 %v739, %v484
      %v1253 = vmul.f32 %v744, %v485
      %v1254 = vmul.f32 %v749, %v486
      %v1255 = vmul.f32 %v754, %v487
      %v1256 = vmul.f32 %v759, %v488
      %v1257 = vmul.f32 %v764, %v489
      %v1258 = vmul.f32 %v769, %v490
      %v1259 = vmul.f32 %v774, %v491
      %v1260 = vmul.f32 %v779, %v492
      %v1261 = vmul.f32 %v784, %v493
      %v1262 = vmul.f32 %v789, %v494
      %v1263 = vmul.f32 %v794, %v495
      %v1264 = vmul.f32 %v799, %v496
      %v1265 = vmul.f32 %v804, %v497
      %v1266 = vmul.f32 %v809, %v498
      %v1267 = vmul.f32 %v814, %v499
      %v1268 = vmul.f32 %v819, %v500
      %v1269 = vmul.f32 %v824, %v501
      %v1270 = vmul.f32 %v829, %v502
      %v1271 = vmul.f32 %v834, %v503
      %v1272 = vmul.f32 %v839, %v504
      %v1273 = vmul.f32 %v844, %v505
      %v1274 = vmul.f32 %v849, %v506
      %v1275 = vmul.f32 %v854, %v507
      %v1276 = vmul.f32 %v859, %v508
      %v1277 = vmul.f32 %v864, %v509
      %v1278 = vmul.f32 %v869, %v510
      %v1279 = vmul.f32 %v874, %v511
      %v1280 = vmul.f32 %v879, %v512
      %v1281 = vmul.f32 %v884, %v513
      %v1282 = vmul.f32 %v889, %v514
      %v1283 = vmul.f32 %v894, %v515
      %v1284 = vmul.f32 %v899, %v516
      %v1285 = vmul.f32 %v904, %v517
      %v1286 = vmul.f32 %v909, %v518
      %v1287 = vmul.f32 %v914, %v519
      %v1288 = vmul.f32 %v919, %v520
      %v1289 = vmul.f32 %v924, %v521
      %v1290 = vmul.f32 %v929, %v522
      %v1291 = vmul.f32 %v934, %v523
      %v1292 = vmul.f32 %v939, %v524
      %v1293 = vmul.f32 %v944, %v525
      %v1294 = vmul.f32 %v949, %v526
      %v1295 = vmul.f32 %v954, %v527
      %v1296 = vmul.f32 %v959, %v528
      %v1297 = vmul.f32 %v964, %v529
      %v1298 = vmul.f32 %v969, %v530
      %v1299 = vmul.f32 %v974, %v531
      %v1300 = vmul.f32 %v979, %v532
      %v1301 = vmul.f32 %v984, %v533
      %v1302 = vmul.f32 %v989, %v534
      %v1303 = vmul.f32 %v994, %v535
      %v1304 = vmul.f32 %v999, %v536
      %v1305 = vmul.f32 %v1004, %v537
      %v1306 = vmul.f32 %v1009, %v538
      %v1307 = vmul.f32 %v1014, %v539
      %v1308 = vmul.f32 %v1019, %v540
      %v1309 = vmul.f32 %v1024, %v541
      %v1310 = vmul.f32 %v1029, %v542
      %v1311 = vmul.f32 %v1034, %v543
      %v1312 = vmul.f32 %v1039, %v544
      %v1313 = vmul.f32 %v1044, %v545
      %v1314 = vmul.f32 %v1049, %v546
      %v1315 = vmul.f32 %v1054, %v547
      %v1316 = vmul.f32 %v1059, %v548
      %v1317 = vmul.f32 %v1064, %v549
      %v1318 = vmul.f32 %v1069, %v550
      %v1319 = vmul.f32 %v1074, %v551
      %v1320 = vmul.f32 %v1079, %v552
      %v1321 = vmul.f32 %v1084, %v553
      %v1322 = vmul.f32 %v1089, %v554
      %v1323 = vmul.f32 %v1094, %v555
      %v1324 = vmul.f32 %v1099, %v556
      %v1325 = vmul.f32 %v1104, %v557
      %v1326 = vmul.f32 %v1109, %v558
      %v1327 = vmul.f32 %v1114, %v559
      %v1328 = vmul.f32 %v1119, %v560
      %v1329 = vmul.f32 %v1124, %v561
      %v1330 = vmul.f32 %v1129, %v562
      %v1331 = vmul.f32 %v1134, %v563
      %v1332 = vmul.f32 %v1139, %v564
      %v1333 = vmul.f32 %v1144, %v565
      %v1334 = vmul.f32 %v1149, %v566
      %v1335 = vmul.f32 %v1154, %v567
      %v1336 = vmul.f32 %v1159, %v568
      %v1337 = vmul.f32 %v1164, %v569
      %v1338 = vmul.f32 %v1169, %v570
      %v1339 = vmul.f32 %v1174, %v571
      %v1340 = vmul.f32 %v1179, %v572
      %v1341 = vmul.f32 %v1184, %v573
      %v1342 = vmul.f32 %v1189, %v574
      %v1343 = vmul.f32 %v1194, %v575
      %v1344 = vmul.f32 %v1199, %v576
      %v1345 = vmul.f32 %v1204, %v577
      %v1346 = vmul.f32 %v1209, %v578
      %v1347 = vmul.f32 %v1214, %v579
      %v1348 = vmul.f32 %v1219, %v580
      %1349 = vset.pattern.permute.xlu0 1
      %1350 = vperm.xlu0 %1349, %v325
      %v1351 = vpop.permute.xlu0 %1350
      %1353 = vset.pattern.permute.xlu0 1
      %1354 = vperm.xlu0 %1353, %v326
      %v1355 = vpop.permute.xlu0 %1354
      %1357 = vset.pattern.permute.xlu0 1
      %1358 = vperm.xlu0 %1357, %v327
      %v1359 = vpop.permute.xlu0 %1358
      %1361 = vset.pattern.permute.xlu0 1
      %1362 = vperm.xlu0 %1361, %v328
      %v1363 = vpop.permute.xlu0 %1362
      %1365 = vset.pattern.permute.xlu0 1
      %1366 = vperm.xlu0 %1365, %v329
      %v1367 = vpop.permute.xlu0 %1366
      %1369 = vset.pattern.permute.xlu0 1
      %1370 = vperm.xlu0 %1369, %v330
      %v1371 = vpop.permute.xlu0 %1370
      %1373 = vset.pattern.permute.xlu0 1
      %1374 = vperm.xlu0 %1373, %v331
      %v1375 = vpop.permute.xlu0 %1374
      %1377 = vset.pattern.permute.xlu0 1
      %1378 = vperm.xlu0 %1377, %v332
      %v1379 = vpop.permute.xlu0 %1378
      %1381 = vset.pattern.permute.xlu0 1
      %1382 = vperm.xlu0 %1381, %v333
      %v1383 = vpop.permute.xlu0 %1382
      %1385 = vset.pattern.permute.xlu0 1
      %1386 = vperm.xlu0 %1385, %v334
      %v1387 = vpop.permute.xlu0 %1386
      %1389 = vset.pattern.permute.xlu0 1
      %1390 = vperm.xlu0 %1389, %v335
      %v1391 = vpop.permute.xlu0 %1390
      %1393 = vset.pattern.permute.xlu0 1
      %1394 = vperm.xlu0 %1393, %v336
      %v1395 = vpop.permute.xlu0 %1394
      %1397 = vset.pattern.permute.xlu0 1
      %1398 = vperm.xlu0 %1397, %v337
      %v1399 = vpop.permute.xlu0 %1398
      %1401 = vset.pattern.permute.xlu0 1
      %1402 = vperm.xlu0 %1401, %v338
      %v1403 = vpop.permute.xlu0 %1402
      %1405 = vset.pattern.permute.xlu0 1
      %1406 = vperm.xlu0 %1405, %v339
      %v1407 = vpop.permute.xlu0 %1406
      %1409 = vset.pattern.permute.xlu0 1
      %1410 = vperm.xlu0 %1409, %v340
      %v1411 = vpop.permute.xlu0 %1410
      %1413 = vset.pattern.permute.xlu0 1
      %1414 = vperm.xlu0 %1413, %v341
      %v1415 = vpop.permute.xlu0 %1414
      %1417 = vset.pattern.permute.xlu0 1
      %1418 = vperm.xlu0 %1417, %v342
      %v1419 = vpop.permute.xlu0 %1418
      %1421 = vset.pattern.permute.xlu0 1
      %1422 = vperm.xlu0 %1421, %v343
      %v1423 = vpop.permute.xlu0 %1422
      %1425 = vset.pattern.permute.xlu0 1
      %1426 = vperm.xlu0 %1425, %v344
      %v1427 = vpop.permute.xlu0 %1426
      %1429 = vset.pattern.permute.xlu0 1
      %1430 = vperm.xlu0 %1429, %v345
      %v1431 = vpop.permute.xlu0 %1430
      %1433 = vset.pattern.permute.xlu0 1
      %1434 = vperm.xlu0 %1433, %v346
      %v1435 = vpop.permute.xlu0 %1434
      %1437 = vset.pattern.permute.xlu0 1
      %1438 = vperm.xlu0 %1437, %v347
      %v1439 = vpop.permute.xlu0 %1438
      %1441 = vset.pattern.permute.xlu0 1
      %1442 = vperm.xlu0 %1441, %v348
      %v1443 = vpop.permute.xlu0 %1442
      %1445 = vset.pattern.permute.xlu0 1
      %1446 = vperm.xlu0 %1445, %v349
      %v1447 = vpop.permute.xlu0 %1446
      %1449 = vset.pattern.permute.xlu0 1
      %1450 = vperm.xlu0 %1449, %v350
      %v1451 = vpop.permute.xlu0 %1450
      %1453 = vset.pattern.permute.xlu0 1
      %1454 = vperm.xlu0 %1453, %v351
      %v1455 = vpop.permute.xlu0 %1454
      %1457 = vset.pattern.permute.xlu0 1
      %1458 = vperm.xlu0 %1457, %v352
      %v1459 = vpop.permute.xlu0 %1458
      %1461 = vset.pattern.permute.xlu0 1
      %1462 = vperm.xlu0 %1461, %v353
      %v1463 = vpop.permute.xlu0 %1462
      %1465 = vset.pattern.permute.xlu0 1
      %1466 = vperm.xlu0 %1465, %v354
      %v1467 = vpop.permute.xlu0 %1466
      %1469 = vset.pattern.permute.xlu0 1
      %1470 = vperm.xlu0 %1469, %v355
      %v1471 = vpop.permute.xlu0 %1470
      %1473 = vset.pattern.permute.xlu0 1
      %1474 = vperm.xlu0 %1473, %v356
      %v1475 = vpop.permute.xlu0 %1474
      %1477 = vset.pattern.permute.xlu0 1
      %1478 = vperm.xlu0 %1477, %v357
      %v1479 = vpop.permute.xlu0 %1478
      %1481 = vset.pattern.permute.xlu0 1
      %1482 = vperm.xlu0 %1481, %v358
      %v1483 = vpop.permute.xlu0 %1482
      %1485 = vset.pattern.permute.xlu0 1
      %1486 = vperm.xlu0 %1485, %v359
      %v1487 = vpop.permute.xlu0 %1486
      %1489 = vset.pattern.permute.xlu0 1
      %1490 = vperm.xlu0 %1489, %v360
      %v1491 = vpop.permute.xlu0 %1490
      %1493 = vset.pattern.permute.xlu0 1
      %1494 = vperm.xlu0 %1493, %v361
      %v1495 = vpop.permute.xlu0 %1494
      %1497 = vset.pattern.permute.xlu0 1
      %1498 = vperm.xlu0 %1497, %v362
      %v1499 = vpop.permute.xlu0 %1498
      %1501 = vset.pattern.permute.xlu0 1
      %1502 = vperm.xlu0 %1501, %v363
      %v1503 = vpop.permute.xlu0 %1502
      %1505 = vset.pattern.permute.xlu0 1
      %1506 = vperm.xlu0 %1505, %v364
      %v1507 = vpop.permute.xlu0 %1506
      %1509 = vset.pattern.permute.xlu0 1
      %1510 = vperm.xlu0 %1509, %v365
      %v1511 = vpop.permute.xlu0 %1510
      %1513 = vset.pattern.permute.xlu0 1
      %1514 = vperm.xlu0 %1513, %v366
      %v1515 = vpop.permute.xlu0 %1514
      %1517 = vset.pattern.permute.xlu0 1
      %1518 = vperm.xlu0 %1517, %v367
      %v1519 = vpop.permute.xlu0 %1518
      %1521 = vset.pattern.permute.xlu0 1
      %1522 = vperm.xlu0 %1521, %v368
      %v1523 = vpop.permute.xlu0 %1522
      %1525 = vset.pattern.permute.xlu0 1
      %1526 = vperm.xlu0 %1525, %v369
      %v1527 = vpop.permute.xlu0 %1526
      %1529 = vset.pattern.permute.xlu0 1
      %1530 = vperm.xlu0 %1529, %v370
      %v1531 = vpop.permute.xlu0 %1530
      %1533 = vset.pattern.permute.xlu0 1
      %1534 = vperm.xlu0 %1533, %v371
      %v1535 = vpop.permute.xlu0 %1534
      %1537 = vset.pattern.permute.xlu0 1
      %1538 = vperm.xlu0 %1537, %v372
      %v1539 = vpop.permute.xlu0 %1538
      %1541 = vset.pattern.permute.xlu0 1
      %1542 = vperm.xlu0 %1541, %v373
      %v1543 = vpop.permute.xlu0 %1542
      %1545 = vset.pattern.permute.xlu0 1
      %1546 = vperm.xlu0 %1545, %v374
      %v1547 = vpop.permute.xlu0 %1546
      %1549 = vset.pattern.permute.xlu0 1
      %1550 = vperm.xlu0 %1549, %v375
      %v1551 = vpop.permute.xlu0 %1550
      %1553 = vset.pattern.permute.xlu0 1
      %1554 = vperm.xlu0 %1553, %v376
      %v1555 = vpop.permute.xlu0 %1554
      %1557 = vset.pattern.permute.xlu0 1
      %1558 = vperm.xlu0 %1557, %v377
      %v1559 = vpop.permute.xlu0 %1558
      %1561 = vset.pattern.permute.xlu0 1
      %1562 = vperm.xlu0 %1561, %v378
      %v1563 = vpop.permute.xlu0 %1562
      %1565 = vset.pattern.permute.xlu0 1
      %1566 = vperm.xlu0 %1565, %v379
      %v1567 = vpop.permute.xlu0 %1566
      %1569 = vset.pattern.permute.xlu0 1
      %1570 = vperm.xlu0 %1569, %v380
      %v1571 = vpop.permute.xlu0 %1570
      %1573 = vset.pattern.permute.xlu0 1
      %1574 = vperm.xlu0 %1573, %v381
      %v1575 = vpop.permute.xlu0 %1574
      %1577 = vset.pattern.permute.xlu0 1
      %1578 = vperm.xlu0 %1577, %v382
      %v1579 = vpop.permute.xlu0 %1578
      %1581 = vset.pattern.permute.xlu0 1
      %1582 = vperm.xlu0 %1581, %v383
      %v1583 = vpop.permute.xlu0 %1582
      %1585 = vset.pattern.permute.xlu0 1
      %1586 = vperm.xlu0 %1585, %v384
      %v1587 = vpop.permute.xlu0 %1586
      %1589 = vset.pattern.permute.xlu0 1
      %1590 = vperm.xlu0 %1589, %v385
      %v1591 = vpop.permute.xlu0 %1590
      %1593 = vset.pattern.permute.xlu0 1
      %1594 = vperm.xlu0 %1593, %v386
      %v1595 = vpop.permute.xlu0 %1594
      %1597 = vset.pattern.permute.xlu0 1
      %1598 = vperm.xlu0 %1597, %v387
      %v1599 = vpop.permute.xlu0 %1598
      %1601 = vset.pattern.permute.xlu0 1
      %1602 = vperm.xlu0 %1601, %v388
      %v1603 = vpop.permute.xlu0 %1602
      %1605 = vset.pattern.permute.xlu0 1
      %1606 = vperm.xlu0 %1605, %v389
      %v1607 = vpop.permute.xlu0 %1606
      %1609 = vset.pattern.permute.xlu0 1
      %1610 = vperm.xlu0 %1609, %v390
      %v1611 = vpop.permute.xlu0 %1610
      %1613 = vset.pattern.permute.xlu0 1
      %1614 = vperm.xlu0 %1613, %v391
      %v1615 = vpop.permute.xlu0 %1614
      %1617 = vset.pattern.permute.xlu0 1
      %1618 = vperm.xlu0 %1617, %v392
      %v1619 = vpop.permute.xlu0 %1618
      %1621 = vset.pattern.permute.xlu0 1
      %1622 = vperm.xlu0 %1621, %v393
      %v1623 = vpop.permute.xlu0 %1622
      %1625 = vset.pattern.permute.xlu0 1
      %1626 = vperm.xlu0 %1625, %v394
      %v1627 = vpop.permute.xlu0 %1626
      %1629 = vset.pattern.permute.xlu0 1
      %1630 = vperm.xlu0 %1629, %v395
      %v1631 = vpop.permute.xlu0 %1630
      %1633 = vset.pattern.permute.xlu0 1
      %1634 = vperm.xlu0 %1633, %v396
      %v1635 = vpop.permute.xlu0 %1634
      %1637 = vset.pattern.permute.xlu0 1
      %1638 = vperm.xlu0 %1637, %v397
      %v1639 = vpop.permute.xlu0 %1638
      %1641 = vset.pattern.permute.xlu0 1
      %1642 = vperm.xlu0 %1641, %v398
      %v1643 = vpop.permute.xlu0 %1642
      %1645 = vset.pattern.permute.xlu0 1
      %1646 = vperm.xlu0 %1645, %v399
      %v1647 = vpop.permute.xlu0 %1646
      %1649 = vset.pattern.permute.xlu0 1
      %1650 = vperm.xlu0 %1649, %v400
      %v1651 = vpop.permute.xlu0 %1650
      %1653 = vset.pattern.permute.xlu0 1
      %1654 = vperm.xlu0 %1653, %v401
      %v1655 = vpop.permute.xlu0 %1654
      %1657 = vset.pattern.permute.xlu0 1
      %1658 = vperm.xlu0 %1657, %v402
      %v1659 = vpop.permute.xlu0 %1658
      %1661 = vset.pattern.permute.xlu0 1
      %1662 = vperm.xlu0 %1661, %v403
      %v1663 = vpop.permute.xlu0 %1662
      %1665 = vset.pattern.permute.xlu0 1
      %1666 = vperm.xlu0 %1665, %v404
      %v1667 = vpop.permute.xlu0 %1666
      %1669 = vset.pattern.permute.xlu0 1
      %1670 = vperm.xlu0 %1669, %v405
      %v1671 = vpop.permute.xlu0 %1670
      %1673 = vset.pattern.permute.xlu0 1
      %1674 = vperm.xlu0 %1673, %v406
      %v1675 = vpop.permute.xlu0 %1674
      %1677 = vset.pattern.permute.xlu0 1
      %1678 = vperm.xlu0 %1677, %v407
      %v1679 = vpop.permute.xlu0 %1678
      %1681 = vset.pattern.permute.xlu0 1
      %1682 = vperm.xlu0 %1681, %v408
      %v1683 = vpop.permute.xlu0 %1682
      %1685 = vset.pattern.permute.xlu0 1
      %1686 = vperm.xlu0 %1685, %v409
      %v1687 = vpop.permute.xlu0 %1686
      %1689 = vset.pattern.permute.xlu0 1
      %1690 = vperm.xlu0 %1689, %v410
      %v1691 = vpop.permute.xlu0 %1690
      %1693 = vset.pattern.permute.xlu0 1
      %1694 = vperm.xlu0 %1693, %v411
      %v1695 = vpop.permute.xlu0 %1694
      %1697 = vset.pattern.permute.xlu0 1
      %1698 = vperm.xlu0 %1697, %v412
      %v1699 = vpop.permute.xlu0 %1698
      %1701 = vset.pattern.permute.xlu0 1
      %1702 = vperm.xlu0 %1701, %v413
      %v1703 = vpop.permute.xlu0 %1702
      %1705 = vset.pattern.permute.xlu0 1
      %1706 = vperm.xlu0 %1705, %v414
      %v1707 = vpop.permute.xlu0 %1706
      %1709 = vset.pattern.permute.xlu0 1
      %1710 = vperm.xlu0 %1709, %v415
      %v1711 = vpop.permute.xlu0 %1710
      %1713 = vset.pattern.permute.xlu0 1
      %1714 = vperm.xlu0 %1713, %v416
      %v1715 = vpop.permute.xlu0 %1714
      %1717 = vset.pattern.permute.xlu0 1
      %1718 = vperm.xlu0 %1717, %v417
      %v1719 = vpop.permute.xlu0 %1718
      %1721 = vset.pattern.permute.xlu0 1
      %1722 = vperm.xlu0 %1721, %v418
      %v1723 = vpop.permute.xlu0 %1722
      %1725 = vset.pattern.permute.xlu0 1
      %1726 = vperm.xlu0 %1725, %v419
      %v1727 = vpop.permute.xlu0 %1726
      %1729 = vset.pattern.permute.xlu0 1
      %1730 = vperm.xlu0 %1729, %v420
      %v1731 = vpop.permute.xlu0 %1730
      %1733 = vset.pattern.permute.xlu0 1
      %1734 = vperm.xlu0 %1733, %v421
      %v1735 = vpop.permute.xlu0 %1734
      %1737 = vset.pattern.permute.xlu0 1
      %1738 = vperm.xlu0 %1737, %v422
      %v1739 = vpop.permute.xlu0 %1738
      %1741 = vset.pattern.permute.xlu0 1
      %1742 = vperm.xlu0 %1741, %v423
      %v1743 = vpop.permute.xlu0 %1742
      %1745 = vset.pattern.permute.xlu0 1
      %1746 = vperm.xlu0 %1745, %v424
      %v1747 = vpop.permute.xlu0 %1746
      %1749 = vset.pattern.permute.xlu0 1
      %1750 = vperm.xlu0 %1749, %v425
      %v1751 = vpop.permute.xlu0 %1750
      %1753 = vset.pattern.permute.xlu0 1
      %1754 = vperm.xlu0 %1753, %v426
      %v1755 = vpop.permute.xlu0 %1754
      %1757 = vset.pattern.permute.xlu0 1
      %1758 = vperm.xlu0 %1757, %v427
      %v1759 = vpop.permute.xlu0 %1758
      %1761 = vset.pattern.permute.xlu0 1
      %1762 = vperm.xlu0 %1761, %v428
      %v1763 = vpop.permute.xlu0 %1762
      %1765 = vset.pattern.permute.xlu0 1
      %1766 = vperm.xlu0 %1765, %v429
      %v1767 = vpop.permute.xlu0 %1766
      %1769 = vset.pattern.permute.xlu0 1
      %1770 = vperm.xlu0 %1769, %v430
      %v1771 = vpop.permute.xlu0 %1770
      %1773 = vset.pattern.permute.xlu0 1
      %1774 = vperm.xlu0 %1773, %v431
      %v1775 = vpop.permute.xlu0 %1774
      %1777 = vset.pattern.permute.xlu0 1
      %1778 = vperm.xlu0 %1777, %v432
      %v1779 = vpop.permute.xlu0 %1778
      %1781 = vset.pattern.permute.xlu0 1
      %1782 = vperm.xlu0 %1781, %v433
      %v1783 = vpop.permute.xlu0 %1782
      %1785 = vset.pattern.permute.xlu0 1
      %1786 = vperm.xlu0 %1785, %v434
      %v1787 = vpop.permute.xlu0 %1786
      %1789 = vset.pattern.permute.xlu0 1
      %1790 = vperm.xlu0 %1789, %v435
      %v1791 = vpop.permute.xlu0 %1790
      %1793 = vset.pattern.permute.xlu0 1
      %1794 = vperm.xlu0 %1793, %v436
      %v1795 = vpop.permute.xlu0 %1794
      %1797 = vset.pattern.permute.xlu0 1
      %1798 = vperm.xlu0 %1797, %v437
      %v1799 = vpop.permute.xlu0 %1798
      %1801 = vset.pattern.permute.xlu0 1
      %1802 = vperm.xlu0 %1801, %v438
      %v1803 = vpop.permute.xlu0 %1802
      %1805 = vset.pattern.permute.xlu0 1
      %1806 = vperm.xlu0 %1805, %v439
      %v1807 = vpop.permute.xlu0 %1806
      %1809 = vset.pattern.permute.xlu0 1
      %1810 = vperm.xlu0 %1809, %v440
      %v1811 = vpop.permute.xlu0 %1810
      %1813 = vset.pattern.permute.xlu0 1
      %1814 = vperm.xlu0 %1813, %v441
      %v1815 = vpop.permute.xlu0 %1814
      %1817 = vset.pattern.permute.xlu0 1
      %1818 = vperm.xlu0 %1817, %v442
      %v1819 = vpop.permute.xlu0 %1818
      %1821 = vset.pattern.permute.xlu0 1
      %1822 = vperm.xlu0 %1821, %v443
      %v1823 = vpop.permute.xlu0 %1822
      %1825 = vset.pattern.permute.xlu0 1
      %1826 = vperm.xlu0 %1825, %v444
      %v1827 = vpop.permute.xlu0 %1826
      %1829 = vset.pattern.permute.xlu0 1
      %1830 = vperm.xlu0 %1829, %v445
      %v1831 = vpop.permute.xlu0 %1830
      %1833 = vset.pattern.permute.xlu0 1
      %1834 = vperm.xlu0 %1833, %v446
      %v1835 = vpop.permute.xlu0 %1834
      %1837 = vset.pattern.permute.xlu0 1
      %1838 = vperm.xlu0 %1837, %v447
      %v1839 = vpop.permute.xlu0 %1838
      %1841 = vset.pattern.permute.xlu0 1
      %1842 = vperm.xlu0 %1841, %v448
      %v1843 = vpop.permute.xlu0 %1842
      %1845 = vset.pattern.permute.xlu0 1
      %1846 = vperm.xlu0 %1845, %v449
      %v1847 = vpop.permute.xlu0 %1846
      %1849 = vset.pattern.permute.xlu0 1
      %1850 = vperm.xlu0 %1849, %v450
      %v1851 = vpop.permute.xlu0 %1850
      %1853 = vset.pattern.permute.xlu0 1
      %1854 = vperm.xlu0 %1853, %v451
      %v1855 = vpop.permute.xlu0 %1854
      %1857 = vset.pattern.permute.xlu0 1
      %1858 = vperm.xlu0 %1857, %v452
      %v1859 = vpop.permute.xlu0 %1858
      %v1861 = vmul.f32 %v1351, %v453
      %v1862 = vmul.f32 %v1355, %v454
      %v1863 = vmul.f32 %v1359, %v455
      %v1864 = vmul.f32 %v1363, %v456
      %v1865 = vmul.f32 %v1367, %v457
      %v1866 = vmul.f32 %v1371, %v458
      %v1867 = vmul.f32 %v1375, %v459
      %v1868 = vmul.f32 %v1379, %v460
      %v1869 = vmul.f32 %v1383, %v461
      %v1870 = vmul.f32 %v1387, %v462
      %v1871 = vmul.f32 %v1391, %v463
      %v1872 = vmul.f32 %v1395, %v464
      %v1873 = vmul.f32 %v1399, %v465
      %v1874 = vmul.f32 %v1403, %v466
      %v1875 = vmul.f32 %v1407, %v467
      %v1876 = vmul.f32 %v1411, %v468
      %v1877 = vmul.f32 %v1415, %v469
      %v1878 = vmul.f32 %v1419, %v470
      %v1879 = vmul.f32 %v1423, %v471
      %v1880 = vmul.f32 %v1427, %v472
      %v1881 = vmul.f32 %v1431, %v473
      %v1882 = vmul.f32 %v1435, %v474
      %v1883 = vmul.f32 %v1439, %v475
      %v1884 = vmul.f32 %v1443, %v476
      %v1885 = vmul.f32 %v1447, %v477
      %v1886 = vmul.f32 %v1451, %v478
      %v1887 = vmul.f32 %v1455, %v479
      %v1888 = vmul.f32 %v1459, %v480
      %v1889 = vmul.f32 %v1463, %v481
      %v1890 = vmul.f32 %v1467, %v482
      %v1891 = vmul.f32 %v1471, %v483
      %v1892 = vmul.f32 %v1475, %v484
      %v1893 = vmul.f32 %v1479, %v485
      %v1894 = vmul.f32 %v1483, %v486
      %v1895 = vmul.f32 %v1487, %v487
      %v1896 = vmul.f32 %v1491, %v488
      %v1897 = vmul.f32 %v1495, %v489
      %v1898 = vmul.f32 %v1499, %v490
      %v1899 = vmul.f32 %v1503, %v491
      %v1900 = vmul.f32 %v1507, %v492
      %v1901 = vmul.f32 %v1511, %v493
      %v1902 = vmul.f32 %v1515, %v494
      %v1903 = vmul.f32 %v1519, %v495
      %v1904 = vmul.f32 %v1523, %v496
      %v1905 = vmul.f32 %v1527, %v497
      %v1906 = vmul.f32 %v1531, %v498
      %v1907 = vmul.f32 %v1535, %v499
      %v1908 = vmul.f32 %v1539, %v500
      %v1909 = vmul.f32 %v1543, %v501
      %v1910 = vmul.f32 %v1547, %v502
      %v1911 = vmul.f32 %v1551, %v503
      %v1912 = vmul.f32 %v1555, %v504
      %v1913 = vmul.f32 %v1559, %v505
      %v1914 = vmul.f32 %v1563, %v506
      %v1915 = vmul.f32 %v1567, %v507
      %v1916 = vmul.f32 %v1571, %v508
      %v1917 = vmul.f32 %v1575, %v509
      %v1918 = vmul.f32 %v1579, %v510
      %v1919 = vmul.f32 %v1583, %v511
      %v1920 = vmul.f32 %v1587, %v512
      %v1921 = vmul.f32 %v1591, %v513
      %v1922 = vmul.f32 %v1595, %v514
      %v1923 = vmul.f32 %v1599, %v515
      %v1924 = vmul.f32 %v1603, %v516
      %v1925 = vmul.f32 %v1607, %v517
      %v1926 = vmul.f32 %v1611, %v518
      %v1927 = vmul.f32 %v1615, %v519
      %v1928 = vmul.f32 %v1619, %v520
      %v1929 = vmul.f32 %v1623, %v521
      %v1930 = vmul.f32 %v1627, %v522
      %v1931 = vmul.f32 %v1631, %v523
      %v1932 = vmul.f32 %v1635, %v524
      %v1933 = vmul.f32 %v1639, %v525
      %v1934 = vmul.f32 %v1643, %v526
      %v1935 = vmul.f32 %v1647, %v527
      %v1936 = vmul.f32 %v1651, %v528
      %v1937 = vmul.f32 %v1655, %v529
      %v1938 = vmul.f32 %v1659, %v530
      %v1939 = vmul.f32 %v1663, %v531
      %v1940 = vmul.f32 %v1667, %v532
      %v1941 = vmul.f32 %v1671, %v533
      %v1942 = vmul.f32 %v1675, %v534
      %v1943 = vmul.f32 %v1679, %v535
      %v1944 = vmul.f32 %v1683, %v536
      %v1945 = vmul.f32 %v1687, %v537
      %v1946 = vmul.f32 %v1691, %v538
      %v1947 = vmul.f32 %v1695, %v539
      %v1948 = vmul.f32 %v1699, %v540
      %v1949 = vmul.f32 %v1703, %v541
      %v1950 = vmul.f32 %v1707, %v542
      %v1951 = vmul.f32 %v1711, %v543
      %v1952 = vmul.f32 %v1715, %v544
      %v1953 = vmul.f32 %v1719, %v545
      %v1954 = vmul.f32 %v1723, %v546
      %v1955 = vmul.f32 %v1727, %v547
      %v1956 = vmul.f32 %v1731, %v548
      %v1957 = vmul.f32 %v1735, %v549
      %v1958 = vmul.f32 %v1739, %v550
      %v1959 = vmul.f32 %v1743, %v551
      %v1960 = vmul.f32 %v1747, %v552
      %v1961 = vmul.f32 %v1751, %v553
      %v1962 = vmul.f32 %v1755, %v554
      %v1963 = vmul.f32 %v1759, %v555
      %v1964 = vmul.f32 %v1763, %v556
      %v1965 = vmul.f32 %v1767, %v557
      %v1966 = vmul.f32 %v1771, %v558
      %v1967 = vmul.f32 %v1775, %v559
      %v1968 = vmul.f32 %v1779, %v560
      %v1969 = vmul.f32 %v1783, %v561
      %v1970 = vmul.f32 %v1787, %v562
      %v1971 = vmul.f32 %v1791, %v563
      %v1972 = vmul.f32 %v1795, %v564
      %v1973 = vmul.f32 %v1799, %v565
      %v1974 = vmul.f32 %v1803, %v566
      %v1975 = vmul.f32 %v1807, %v567
      %v1976 = vmul.f32 %v1811, %v568
      %v1977 = vmul.f32 %v1815, %v569
      %v1978 = vmul.f32 %v1819, %v570
      %v1979 = vmul.f32 %v1823, %v571
      %v1980 = vmul.f32 %v1827, %v572
      %v1981 = vmul.f32 %v1831, %v573
      %v1982 = vmul.f32 %v1835, %v574
      %v1983 = vmul.f32 %v1839, %v575
      %v1984 = vmul.f32 %v1843, %v576
      %v1985 = vmul.f32 %v1847, %v577
      %v1986 = vmul.f32 %v1851, %v578
      %v1987 = vmul.f32 %v1855, %v579
      %v1988 = vmul.f32 %v1859, %v580
      %1989 = vset.pattern.permute.xlu0 2
      %1990 = vperm.xlu0 %1989, %v325
      %v1991 = vpop.permute.xlu0 %1990
      %1993 = vset.pattern.permute.xlu0 2
      %1994 = vperm.xlu0 %1993, %v326
      %v1995 = vpop.permute.xlu0 %1994
      %1997 = vset.pattern.permute.xlu0 2
      %1998 = vperm.xlu0 %1997, %v327
      %v1999 = vpop.permute.xlu0 %1998
      %2001 = vset.pattern.permute.xlu0 2
      %2002 = vperm.xlu0 %2001, %v328
      %v2003 = vpop.permute.xlu0 %2002
      %2005 = vset.pattern.permute.xlu0 2
      %2006 = vperm.xlu0 %2005, %v329
      %v2007 = vpop.permute.xlu0 %2006
      %2009 = vset.pattern.permute.xlu0 2
      %2010 = vperm.xlu0 %2009, %v330
      %v2011 = vpop.permute.xlu0 %2010
      %2013 = vset.pattern.permute.xlu0 2
      %2014 = vperm.xlu0 %2013, %v331
      %v2015 = vpop.permute.xlu0 %2014
      %2017 = vset.pattern.permute.xlu0 2
      %2018 = vperm.xlu0 %2017, %v332
      %v2019 = vpop.permute.xlu0 %2018
      %2021 = vset.pattern.permute.xlu0 2
      %2022 = vperm.xlu0 %2021, %v333
      %v2023 = vpop.permute.xlu0 %2022
      %2025 = vset.pattern.permute.xlu0 2
      %2026 = vperm.xlu0 %2025, %v334
      %v2027 = vpop.permute.xlu0 %2026
      %2029 = vset.pattern.permute.xlu0 2
      %2030 = vperm.xlu0 %2029, %v335
      %v2031 = vpop.permute.xlu0 %2030
      %2033 = vset.pattern.permute.xlu0 2
      %2034 = vperm.xlu0 %2033, %v336
      %v2035 = vpop.permute.xlu0 %2034
      %2037 = vset.pattern.permute.xlu0 2
      %2038 = vperm.xlu0 %2037, %v337
      %v2039 = vpop.permute.xlu0 %2038
      %2041 = vset.pattern.permute.xlu0 2
      %2042 = vperm.xlu0 %2041, %v338
      %v2043 = vpop.permute.xlu0 %2042
      %2045 = vset.pattern.permute.xlu0 2
      %2046 = vperm.xlu0 %2045, %v339
      %v2047 = vpop.permute.xlu0 %2046
      %2049 = vset.pattern.permute.xlu0 2
      %2050 = vperm.xlu0 %2049, %v340
      %v2051 = vpop.permute.xlu0 %2050
      %2053 = vset.pattern.permute.xlu0 2
      %2054 = vperm.xlu0 %2053, %v341
      %v2055 = vpop.permute.xlu0 %2054
      %2057 = vset.pattern.permute.xlu0 2
      %2058 = vperm.xlu0 %2057, %v342
      %v2059 = vpop.permute.xlu0 %2058
      %2061 = vset.pattern.permute.xlu0 2
      %2062 = vperm.xlu0 %2061, %v343
      %v2063 = vpop.permute.xlu0 %2062
      %2065 = vset.pattern.permute.xlu0 2
      %2066 = vperm.xlu0 %2065, %v344
      %v2067 = vpop.permute.xlu0 %2066
      %2069 = vset.pattern.permute.xlu0 2
      %2070 = vperm.xlu0 %2069, %v345
      %v2071 = vpop.permute.xlu0 %2070
      %2073 = vset.pattern.permute.xlu0 2
      %2074 = vperm.xlu0 %2073, %v346
      %v2075 = vpop.permute.xlu0 %2074
      %2077 = vset.pattern.permute.xlu0 2
      %2078 = vperm.xlu0 %2077, %v347
      %v2079 = vpop.permute.xlu0 %2078
      %2081 = vset.pattern.permute.xlu0 2
      %2082 = vperm.xlu0 %2081, %v348
      %v2083 = vpop.permute.xlu0 %2082
      %2085 = vset.pattern.permute.xlu0 2
      %2086 = vperm.xlu0 %2085, %v349
      %v2087 = vpop.permute.xlu0 %2086
      %2089 = vset.pattern.permute.xlu0 2
      %2090 = vperm.xlu0 %2089, %v350
      %v2091 = vpop.permute.xlu0 %2090
      %2093 = vset.pattern.permute.xlu0 2
      %2094 = vperm.xlu0 %2093, %v351
      %v2095 = vpop.permute.xlu0 %2094
      %2097 = vset.pattern.permute.xlu0 2
      %2098 = vperm.xlu0 %2097, %v352
      %v2099 = vpop.permute.xlu0 %2098
      %2101 = vset.pattern.permute.xlu0 2
      %2102 = vperm.xlu0 %2101, %v353
      %v2103 = vpop.permute.xlu0 %2102
      %2105 = vset.pattern.permute.xlu0 2
      %2106 = vperm.xlu0 %2105, %v354
      %v2107 = vpop.permute.xlu0 %2106
      %2109 = vset.pattern.permute.xlu0 2
      %2110 = vperm.xlu0 %2109, %v355
      %v2111 = vpop.permute.xlu0 %2110
      %2113 = vset.pattern.permute.xlu0 2
      %2114 = vperm.xlu0 %2113, %v356
      %v2115 = vpop.permute.xlu0 %2114
      %2117 = vset.pattern.permute.xlu0 2
      %2118 = vperm.xlu0 %2117, %v357
      %v2119 = vpop.permute.xlu0 %2118
      %2121 = vset.pattern.permute.xlu0 2
      %2122 = vperm.xlu0 %2121, %v358
      %v2123 = vpop.permute.xlu0 %2122
      %2125 = vset.pattern.permute.xlu0 2
      %2126 = vperm.xlu0 %2125, %v359
      %v2127 = vpop.permute.xlu0 %2126
      %2129 = vset.pattern.permute.xlu0 2
      %2130 = vperm.xlu0 %2129, %v360
      %v2131 = vpop.permute.xlu0 %2130
      %2133 = vset.pattern.permute.xlu0 2
      %2134 = vperm.xlu0 %2133, %v361
      %v2135 = vpop.permute.xlu0 %2134
      %2137 = vset.pattern.permute.xlu0 2
      %2138 = vperm.xlu0 %2137, %v362
      %v2139 = vpop.permute.xlu0 %2138
      %2141 = vset.pattern.permute.xlu0 2
      %2142 = vperm.xlu0 %2141, %v363
      %v2143 = vpop.permute.xlu0 %2142
      %2145 = vset.pattern.permute.xlu0 2
      %2146 = vperm.xlu0 %2145, %v364
      %v2147 = vpop.permute.xlu0 %2146
      %2149 = vset.pattern.permute.xlu0 2
      %2150 = vperm.xlu0 %2149, %v365
      %v2151 = vpop.permute.xlu0 %2150
      %2153 = vset.pattern.permute.xlu0 2
      %2154 = vperm.xlu0 %2153, %v366
      %v2155 = vpop.permute.xlu0 %2154
      %2157 = vset.pattern.permute.xlu0 2
      %2158 = vperm.xlu0 %2157, %v367
      %v2159 = vpop.permute.xlu0 %2158
      %2161 = vset.pattern.permute.xlu0 2
      %2162 = vperm.xlu0 %2161, %v368
      %v2163 = vpop.permute.xlu0 %2162
      %2165 = vset.pattern.permute.xlu0 2
      %2166 = vperm.xlu0 %2165, %v369
      %v2167 = vpop.permute.xlu0 %2166
      %2169 = vset.pattern.permute.xlu0 2
      %2170 = vperm.xlu0 %2169, %v370
      %v2171 = vpop.permute.xlu0 %2170
      %2173 = vset.pattern.permute.xlu0 2
      %2174 = vperm.xlu0 %2173, %v371
      %v2175 = vpop.permute.xlu0 %2174
      %2177 = vset.pattern.permute.xlu0 2
      %2178 = vperm.xlu0 %2177, %v372
      %v2179 = vpop.permute.xlu0 %2178
      %2181 = vset.pattern.permute.xlu0 2
      %2182 = vperm.xlu0 %2181, %v373
      %v2183 = vpop.permute.xlu0 %2182
      %2185 = vset.pattern.permute.xlu0 2
      %2186 = vperm.xlu0 %2185, %v374
      %v2187 = vpop.permute.xlu0 %2186
      %2189 = vset.pattern.permute.xlu0 2
      %2190 = vperm.xlu0 %2189, %v375
      %v2191 = vpop.permute.xlu0 %2190
      %2193 = vset.pattern.permute.xlu0 2
      %2194 = vperm.xlu0 %2193, %v376
      %v2195 = vpop.permute.xlu0 %2194
      %2197 = vset.pattern.permute.xlu0 2
      %2198 = vperm.xlu0 %2197, %v377
      %v2199 = vpop.permute.xlu0 %2198
      %2201 = vset.pattern.permute.xlu0 2
      %2202 = vperm.xlu0 %2201, %v378
      %v2203 = vpop.permute.xlu0 %2202
      %2205 = vset.pattern.permute.xlu0 2
      %2206 = vperm.xlu0 %2205, %v379
      %v2207 = vpop.permute.xlu0 %2206
      %2209 = vset.pattern.permute.xlu0 2
      %2210 = vperm.xlu0 %2209, %v380
      %v2211 = vpop.permute.xlu0 %2210
      %2213 = vset.pattern.permute.xlu0 2
      %2214 = vperm.xlu0 %2213, %v381
      %v2215 = vpop.permute.xlu0 %2214
      %2217 = vset.pattern.permute.xlu0 2
      %2218 = vperm.xlu0 %2217, %v382
      %v2219 = vpop.permute.xlu0 %2218
      %2221 = vset.pattern.permute.xlu0 2
      %2222 = vperm.xlu0 %2221, %v383
      %v2223 = vpop.permute.xlu0 %2222
      %2225 = vset.pattern.permute.xlu0 2
      %2226 = vperm.xlu0 %2225, %v384
      %v2227 = vpop.permute.xlu0 %2226
      %2229 = vset.pattern.permute.xlu0 2
      %2230 = vperm.xlu0 %2229, %v385
      %v2231 = vpop.permute.xlu0 %2230
      %2233 = vset.pattern.permute.xlu0 2
      %2234 = vperm.xlu0 %2233, %v386
      %v2235 = vpop.permute.xlu0 %2234
      %2237 = vset.pattern.permute.xlu0 2
      %2238 = vperm.xlu0 %2237, %v387
      %v2239 = vpop.permute.xlu0 %2238
      %2241 = vset.pattern.permute.xlu0 2
      %2242 = vperm.xlu0 %2241, %v388
      %v2243 = vpop.permute.xlu0 %2242
      %2245 = vset.pattern.permute.xlu0 2
      %2246 = vperm.xlu0 %2245, %v389
      %v2247 = vpop.permute.xlu0 %2246
      %2249 = vset.pattern.permute.xlu0 2
      %2250 = vperm.xlu0 %2249, %v390
      %v2251 = vpop.permute.xlu0 %2250
      %2253 = vset.pattern.permute.xlu0 2
      %2254 = vperm.xlu0 %2253, %v391
      %v2255 = vpop.permute.xlu0 %2254
      %2257 = vset.pattern.permute.xlu0 2
      %2258 = vperm.xlu0 %2257, %v392
      %v2259 = vpop.permute.xlu0 %2258
      %2261 = vset.pattern.permute.xlu0 2
      %2262 = vperm.xlu0 %2261, %v393
      %v2263 = vpop.permute.xlu0 %2262
      %2265 = vset.pattern.permute.xlu0 2
      %2266 = vperm.xlu0 %2265, %v394
      %v2267 = vpop.permute.xlu0 %2266
      %2269 = vset.pattern.permute.xlu0 2
      %2270 = vperm.xlu0 %2269, %v395
      %v2271 = vpop.permute.xlu0 %2270
      %2273 = vset.pattern.permute.xlu0 2
      %2274 = vperm.xlu0 %2273, %v396
      %v2275 = vpop.permute.xlu0 %2274
      %2277 = vset.pattern.permute.xlu0 2
      %2278 = vperm.xlu0 %2277, %v397
      %v2279 = vpop.permute.xlu0 %2278
      %2281 = vset.pattern.permute.xlu0 2
      %2282 = vperm.xlu0 %2281, %v398
      %v2283 = vpop.permute.xlu0 %2282
      %2285 = vset.pattern.permute.xlu0 2
      %2286 = vperm.xlu0 %2285, %v399
      %v2287 = vpop.permute.xlu0 %2286
      %2289 = vset.pattern.permute.xlu0 2
      %2290 = vperm.xlu0 %2289, %v400
      %v2291 = vpop.permute.xlu0 %2290
      %2293 = vset.pattern.permute.xlu0 2
      %2294 = vperm.xlu0 %2293, %v401
      %v2295 = vpop.permute.xlu0 %2294
      %2297 = vset.pattern.permute.xlu0 2
      %2298 = vperm.xlu0 %2297, %v402
      %v2299 = vpop.permute.xlu0 %2298
      %2301 = vset.pattern.permute.xlu0 2
      %2302 = vperm.xlu0 %2301, %v403
      %v2303 = vpop.permute.xlu0 %2302
      %2305 = vset.pattern.permute.xlu0 2
      %2306 = vperm.xlu0 %2305, %v404
      %v2307 = vpop.permute.xlu0 %2306
      %2309 = vset.pattern.permute.xlu0 2
      %2310 = vperm.xlu0 %2309, %v405
      %v2311 = vpop.permute.xlu0 %2310
      %2313 = vset.pattern.permute.xlu0 2
      %2314 = vperm.xlu0 %2313, %v406
      %v2315 = vpop.permute.xlu0 %2314
      %2317 = vset.pattern.permute.xlu0 2
      %2318 = vperm.xlu0 %2317, %v407
      %v2319 = vpop.permute.xlu0 %2318
      %2321 = vset.pattern.permute.xlu0 2
      %2322 = vperm.xlu0 %2321, %v408
      %v2323 = vpop.permute.xlu0 %2322
      %2325 = vset.pattern.permute.xlu0 2
      %2326 = vperm.xlu0 %2325, %v409
      %v2327 = vpop.permute.xlu0 %2326
      %2329 = vset.pattern.permute.xlu0 2
      %2330 = vperm.xlu0 %2329, %v410
      %v2331 = vpop.permute.xlu0 %2330
      %2333 = vset.pattern.permute.xlu0 2
      %2334 = vperm.xlu0 %2333, %v411
      %v2335 = vpop.permute.xlu0 %2334
      %2337 = vset.pattern.permute.xlu0 2
      %2338 = vperm.xlu0 %2337, %v412
      %v2339 = vpop.permute.xlu0 %2338
      %2341 = vset.pattern.permute.xlu0 2
      %2342 = vperm.xlu0 %2341, %v413
      %v2343 = vpop.permute.xlu0 %2342
      %2345 = vset.pattern.permute.xlu0 2
      %2346 = vperm.xlu0 %2345, %v414
      %v2347 = vpop.permute.xlu0 %2346
      %2349 = vset.pattern.permute.xlu0 2
      %2350 = vperm.xlu0 %2349, %v415
      %v2351 = vpop.permute.xlu0 %2350
      %2353 = vset.pattern.permute.xlu0 2
      %2354 = vperm.xlu0 %2353, %v416
      %v2355 = vpop.permute.xlu0 %2354
      %2357 = vset.pattern.permute.xlu0 2
      %2358 = vperm.xlu0 %2357, %v417
      %v2359 = vpop.permute.xlu0 %2358
      %2361 = vset.pattern.permute.xlu0 2
      %2362 = vperm.xlu0 %2361, %v418
      %v2363 = vpop.permute.xlu0 %2362
      %2365 = vset.pattern.permute.xlu0 2
      %2366 = vperm.xlu0 %2365, %v419
      %v2367 = vpop.permute.xlu0 %2366
      %2369 = vset.pattern.permute.xlu0 2
      %2370 = vperm.xlu0 %2369, %v420
      %v2371 = vpop.permute.xlu0 %2370
      %2373 = vset.pattern.permute.xlu0 2
      %2374 = vperm.xlu0 %2373, %v421
      %v2375 = vpop.permute.xlu0 %2374
      %2377 = vset.pattern.permute.xlu0 2
      %2378 = vperm.xlu0 %2377, %v422
      %v2379 = vpop.permute.xlu0 %2378
      %2381 = vset.pattern.permute.xlu0 2
      %2382 = vperm.xlu0 %2381, %v423
      %v2383 = vpop.permute.xlu0 %2382
      %2385 = vset.pattern.permute.xlu0 2
      %2386 = vperm.xlu0 %2385, %v424
      %v2387 = vpop.permute.xlu0 %2386
      %2389 = vset.pattern.permute.xlu0 2
      %2390 = vperm.xlu0 %2389, %v425
      %v2391 = vpop.permute.xlu0 %2390
      %2393 = vset.pattern.permute.xlu0 2
      %2394 = vperm.xlu0 %2393, %v426
      %v2395 = vpop.permute.xlu0 %2394
      %2397 = vset.pattern.permute.xlu0 2
      %2398 = vperm.xlu0 %2397, %v427
      %v2399 = vpop.permute.xlu0 %2398
      %2401 = vset.pattern.permute.xlu0 2
      %2402 = vperm.xlu0 %2401, %v428
      %v2403 = vpop.permute.xlu0 %2402
      %2405 = vset.pattern.permute.xlu0 2
      %2406 = vperm.xlu0 %2405, %v429
      %v2407 = vpop.permute.xlu0 %2406
      %2409 = vset.pattern.permute.xlu0 2
      %2410 = vperm.xlu0 %2409, %v430
      %v2411 = vpop.permute.xlu0 %2410
      %2413 = vset.pattern.permute.xlu0 2
      %2414 = vperm.xlu0 %2413, %v431
      %v2415 = vpop.permute.xlu0 %2414
      %2417 = vset.pattern.permute.xlu0 2
      %2418 = vperm.xlu0 %2417, %v432
      %v2419 = vpop.permute.xlu0 %2418
      %2421 = vset.pattern.permute.xlu0 2
      %2422 = vperm.xlu0 %2421, %v433
      %v2423 = vpop.permute.xlu0 %2422
      %2425 = vset.pattern.permute.xlu0 2
      %2426 = vperm.xlu0 %2425, %v434
      %v2427 = vpop.permute.xlu0 %2426
      %2429 = vset.pattern.permute.xlu0 2
      %2430 = vperm.xlu0 %2429, %v435
      %v2431 = vpop.permute.xlu0 %2430
      %2433 = vset.pattern.permute.xlu0 2
      %2434 = vperm.xlu0 %2433, %v436
      %v2435 = vpop.permute.xlu0 %2434
      %2437 = vset.pattern.permute.xlu0 2
      %2438 = vperm.xlu0 %2437, %v437
      %v2439 = vpop.permute.xlu0 %2438
      %2441 = vset.pattern.permute.xlu0 2
      %2442 = vperm.xlu0 %2441, %v438
      %v2443 = vpop.permute.xlu0 %2442
      %2445 = vset.pattern.permute.xlu0 2
      %2446 = vperm.xlu0 %2445, %v439
      %v2447 = vpop.permute.xlu0 %2446
      %2449 = vset.pattern.permute.xlu0 2
      %2450 = vperm.xlu0 %2449, %v440
      %v2451 = vpop.permute.xlu0 %2450
      %2453 = vset.pattern.permute.xlu0 2
      %2454 = vperm.xlu0 %2453, %v441
      %v2455 = vpop.permute.xlu0 %2454
      %2457 = vset.pattern.permute.xlu0 2
      %2458 = vperm.xlu0 %2457, %v442
      %v2459 = vpop.permute.xlu0 %2458
      %2461 = vset.pattern.permute.xlu0 2
      %2462 = vperm.xlu0 %2461, %v443
      %v2463 = vpop.permute.xlu0 %2462
      %2465 = vset.pattern.permute.xlu0 2
      %2466 = vperm.xlu0 %2465, %v444
      %v2467 = vpop.permute.xlu0 %2466
      %2469 = vset.pattern.permute.xlu0 2
      %2470 = vperm.xlu0 %2469, %v445
      %v2471 = vpop.permute.xlu0 %2470
      %2473 = vset.pattern.permute.xlu0 2
      %2474 = vperm.xlu0 %2473, %v446
      %v2475 = vpop.permute.xlu0 %2474
      %2477 = vset.pattern.permute.xlu0 2
      %2478 = vperm.xlu0 %2477, %v447
      %v2479 = vpop.permute.xlu0 %2478
      %2481 = vset.pattern.permute.xlu0 2
      %2482 = vperm.xlu0 %2481, %v448
      %v2483 = vpop.permute.xlu0 %2482
      %2485 = vset.pattern.permute.xlu0 2
      %2486 = vperm.xlu0 %2485, %v449
      %v2487 = vpop.permute.xlu0 %2486
      %2489 = vset.pattern.permute.xlu0 2
      %2490 = vperm.xlu0 %2489, %v450
      %v2491 = vpop.permute.xlu0 %2490
      %2493 = vset.pattern.permute.xlu0 2
      %2494 = vperm.xlu0 %2493, %v451
      %v2495 = vpop.permute.xlu0 %2494
      %2497 = vset.pattern.permute.xlu0 2
      %2498 = vperm.xlu0 %2497, %v452
      %v2499 = vpop.permute.xlu0 %2498
      %v2501 = vmul.f32 %v1991, %v453
      %v2502 = vmul.f32 %v1995, %v454
      %v2503 = vmul.f32 %v1999, %v455
      %v2504 = vmul.f32 %v2003, %v456
      %v2505 = vmul.f32 %v2007, %v457
      %v2506 = vmul.f32 %v2011, %v458
      %v2507 = vmul.f32 %v2015, %v459
      %v2508 = vmul.f32 %v2019, %v460
      %v2509 = vmul.f32 %v2023, %v461
      %v2510 = vmul.f32 %v2027, %v462
      %v2511 = vmul.f32 %v2031, %v463
      %v2512 = vmul.f32 %v2035, %v464
      %v2513 = vmul.f32 %v2039, %v465
      %v2514 = vmul.f32 %v2043, %v466
      %v2515 = vmul.f32 %v2047, %v467
      %v2516 = vmul.f32 %v2051, %v468
      %v2517 = vmul.f32 %v2055, %v469
      %v2518 = vmul.f32 %v2059, %v470
      %v2519 = vmul.f32 %v2063, %v471
      %v2520 = vmul.f32 %v2067, %v472
      %v2521 = vmul.f32 %v2071, %v473
      %v2522 = vmul.f32 %v2075, %v474
      %v2523 = vmul.f32 %v2079, %v475
      %v2524 = vmul.f32 %v2083, %v476
      %v2525 = vmul.f32 %v2087, %v477
      %v2526 = vmul.f32 %v2091, %v478
      %v2527 = vmul.f32 %v2095, %v479
      %v2528 = vmul.f32 %v2099, %v480
      %v2529 = vmul.f32 %v2103, %v481
      %v2530 = vmul.f32 %v2107, %v482
      %v2531 = vmul.f32 %v2111, %v483
      %v2532 = vmul.f32 %v2115, %v484
      %v2533 = vmul.f32 %v2119, %v485
      %v2534 = vmul.f32 %v2123, %v486
      %v2535 = vmul.f32 %v2127, %v487
      %v2536 = vmul.f32 %v2131, %v488
      %v2537 = vmul.f32 %v2135, %v489
      %v2538 = vmul.f32 %v2139, %v490
      %v2539 = vmul.f32 %v2143, %v491
      %v2540 = vmul.f32 %v2147, %v492
      %v2541 = vmul.f32 %v2151, %v493
      %v2542 = vmul.f32 %v2155, %v494
      %v2543 = vmul.f32 %v2159, %v495
      %v2544 = vmul.f32 %v2163, %v496
      %v2545 = vmul.f32 %v2167, %v497
      %v2546 = vmul.f32 %v2171, %v498
      %v2547 = vmul.f32 %v2175, %v499
      %v2548 = vmul.f32 %v2179, %v500
      %v2549 = vmul.f32 %v2183, %v501
      %v2550 = vmul.f32 %v2187, %v502
      %v2551 = vmul.f32 %v2191, %v503
      %v2552 = vmul.f32 %v2195, %v504
      %v2553 = vmul.f32 %v2199, %v505
      %v2554 = vmul.f32 %v2203, %v506
      %v2555 = vmul.f32 %v2207, %v507
      %v2556 = vmul.f32 %v2211, %v508
      %v2557 = vmul.f32 %v2215, %v509
      %v2558 = vmul.f32 %v2219, %v510
      %v2559 = vmul.f32 %v2223, %v511
      %v2560 = vmul.f32 %v2227, %v512
      %v2561 = vmul.f32 %v2231, %v513
      %v2562 = vmul.f32 %v2235, %v514
      %v2563 = vmul.f32 %v2239, %v515
      %v2564 = vmul.f32 %v2243, %v516
      %v2565 = vmul.f32 %v2247, %v517
      %v2566 = vmul.f32 %v2251, %v518
      %v2567 = vmul.f32 %v2255, %v519
      %v2568 = vmul.f32 %v2259, %v520
      %v2569 = vmul.f32 %v2263, %v521
      %v2570 = vmul.f32 %v2267, %v522
      %v2571 = vmul.f32 %v2271, %v523
      %v2572 = vmul.f32 %v2275, %v524
      %v2573 = vmul.f32 %v2279, %v525
      %v2574 = vmul.f32 %v2283, %v526
      %v2575 = vmul.f32 %v2287, %v527
      %v2576 = vmul.f32 %v2291, %v528
      %v2577 = vmul.f32 %v2295, %v529
      %v2578 = vmul.f32 %v2299, %v530
      %v2579 = vmul.f32 %v2303, %v531
      %v2580 = vmul.f32 %v2307, %v532
      %v2581 = vmul.f32 %v2311, %v533
      %v2582 = vmul.f32 %v2315, %v534
      %v2583 = vmul.f32 %v2319, %v535
      %v2584 = vmul.f32 %v2323, %v536
      %v2585 = vmul.f32 %v2327, %v537
      %v2586 = vmul.f32 %v2331, %v538
      %v2587 = vmul.f32 %v2335, %v539
      %v2588 = vmul.f32 %v2339, %v540
      %v2589 = vmul.f32 %v2343, %v541
      %v2590 = vmul.f32 %v2347, %v542
      %v2591 = vmul.f32 %v2351, %v543
      %v2592 = vmul.f32 %v2355, %v544
      %v2593 = vmul.f32 %v2359, %v545
      %v2594 = vmul.f32 %v2363, %v546
      %v2595 = vmul.f32 %v2367, %v547
      %v2596 = vmul.f32 %v2371, %v548
      %v2597 = vmul.f32 %v2375, %v549
      %v2598 = vmul.f32 %v2379, %v550
      %v2599 = vmul.f32 %v2383, %v551
      %v2600 = vmul.f32 %v2387, %v552
      %v2601 = vmul.f32 %v2391, %v553
      %v2602 = vmul.f32 %v2395, %v554
      %v2603 = vmul.f32 %v2399, %v555
      %v2604 = vmul.f32 %v2403, %v556
      %v2605 = vmul.f32 %v2407, %v557
      %v2606 = vmul.f32 %v2411, %v558
      %v2607 = vmul.f32 %v2415, %v559
      %v2608 = vmul.f32 %v2419, %v560
      %v2609 = vmul.f32 %v2423, %v561
      %v2610 = vmul.f32 %v2427, %v562
      %v2611 = vmul.f32 %v2431, %v563
      %v2612 = vmul.f32 %v2435, %v564
      %v2613 = vmul.f32 %v2439, %v565
      %v2614 = vmul.f32 %v2443, %v566
      %v2615 = vmul.f32 %v2447, %v567
      %v2616 = vmul.f32 %v2451, %v568
      %v2617 = vmul.f32 %v2455, %v569
      %v2618 = vmul.f32 %v2459, %v570
      %v2619 = vmul.f32 %v2463, %v571
      %v2620 = vmul.f32 %v2467, %v572
      %v2621 = vmul.f32 %v2471, %v573
      %v2622 = vmul.f32 %v2475, %v574
      %v2623 = vmul.f32 %v2479, %v575
      %v2624 = vmul.f32 %v2483, %v576
      %v2625 = vmul.f32 %v2487, %v577
      %v2626 = vmul.f32 %v2491, %v578
      %v2627 = vmul.f32 %v2495, %v579
      %v2628 = vmul.f32 %v2499, %v580
      %2629 = vset.pattern.permute.xlu0 3
      %2630 = vperm.xlu0 %2629, %v325
      %v2631 = vpop.permute.xlu0 %2630
      %2633 = vset.pattern.permute.xlu0 3
      %2634 = vperm.xlu0 %2633, %v326
      %v2635 = vpop.permute.xlu0 %2634
      %2637 = vset.pattern.permute.xlu0 3
      %2638 = vperm.xlu0 %2637, %v327
      %v2639 = vpop.permute.xlu0 %2638
      %2641 = vset.pattern.permute.xlu0 3
      %2642 = vperm.xlu0 %2641, %v328
      %v2643 = vpop.permute.xlu0 %2642
      %2645 = vset.pattern.permute.xlu0 3
      %2646 = vperm.xlu0 %2645, %v329
      %v2647 = vpop.permute.xlu0 %2646
      %2649 = vset.pattern.permute.xlu0 3
      %2650 = vperm.xlu0 %2649, %v330
      %v2651 = vpop.permute.xlu0 %2650
      %2653 = vset.pattern.permute.xlu0 3
      %2654 = vperm.xlu0 %2653, %v331
      %v2655 = vpop.permute.xlu0 %2654
      %2657 = vset.pattern.permute.xlu0 3
      %2658 = vperm.xlu0 %2657, %v332
      %v2659 = vpop.permute.xlu0 %2658
      %2661 = vset.pattern.permute.xlu0 3
      %2662 = vperm.xlu0 %2661, %v333
      %v2663 = vpop.permute.xlu0 %2662
      %2665 = vset.pattern.permute.xlu0 3
      %2666 = vperm.xlu0 %2665, %v334
      %v2667 = vpop.permute.xlu0 %2666
      %2669 = vset.pattern.permute.xlu0 3
      %2670 = vperm.xlu0 %2669, %v335
      %v2671 = vpop.permute.xlu0 %2670
      %2673 = vset.pattern.permute.xlu0 3
      %2674 = vperm.xlu0 %2673, %v336
      %v2675 = vpop.permute.xlu0 %2674
      %2677 = vset.pattern.permute.xlu0 3
      %2678 = vperm.xlu0 %2677, %v337
      %v2679 = vpop.permute.xlu0 %2678
      %2681 = vset.pattern.permute.xlu0 3
      %2682 = vperm.xlu0 %2681, %v338
      %v2683 = vpop.permute.xlu0 %2682
      %2685 = vset.pattern.permute.xlu0 3
      %2686 = vperm.xlu0 %2685, %v339
      %v2687 = vpop.permute.xlu0 %2686
      %2689 = vset.pattern.permute.xlu0 3
      %2690 = vperm.xlu0 %2689, %v340
      %v2691 = vpop.permute.xlu0 %2690
      %2693 = vset.pattern.permute.xlu0 3
      %2694 = vperm.xlu0 %2693, %v341
      %v2695 = vpop.permute.xlu0 %2694
      %2697 = vset.pattern.permute.xlu0 3
      %2698 = vperm.xlu0 %2697, %v342
      %v2699 = vpop.permute.xlu0 %2698
      %2701 = vset.pattern.permute.xlu0 3
      %2702 = vperm.xlu0 %2701, %v343
      %v2703 = vpop.permute.xlu0 %2702
      %2705 = vset.pattern.permute.xlu0 3
      %2706 = vperm.xlu0 %2705, %v344
      %v2707 = vpop.permute.xlu0 %2706
      %2709 = vset.pattern.permute.xlu0 3
      %2710 = vperm.xlu0 %2709, %v345
      %v2711 = vpop.permute.xlu0 %2710
      %2713 = vset.pattern.permute.xlu0 3
      %2714 = vperm.xlu0 %2713, %v346
      %v2715 = vpop.permute.xlu0 %2714
      %2717 = vset.pattern.permute.xlu0 3
      %2718 = vperm.xlu0 %2717, %v347
      %v2719 = vpop.permute.xlu0 %2718
      %2721 = vset.pattern.permute.xlu0 3
      %2722 = vperm.xlu0 %2721, %v348
      %v2723 = vpop.permute.xlu0 %2722
      %2725 = vset.pattern.permute.xlu0 3
      %2726 = vperm.xlu0 %2725, %v349
      %v2727 = vpop.permute.xlu0 %2726
      %2729 = vset.pattern.permute.xlu0 3
      %2730 = vperm.xlu0 %2729, %v350
      %v2731 = vpop.permute.xlu0 %2730
      %2733 = vset.pattern.permute.xlu0 3
      %2734 = vperm.xlu0 %2733, %v351
      %v2735 = vpop.permute.xlu0 %2734
      %2737 = vset.pattern.permute.xlu0 3
      %2738 = vperm.xlu0 %2737, %v352
      %v2739 = vpop.permute.xlu0 %2738
      %2741 = vset.pattern.permute.xlu0 3
      %2742 = vperm.xlu0 %2741, %v353
      %v2743 = vpop.permute.xlu0 %2742
      %2745 = vset.pattern.permute.xlu0 3
      %2746 = vperm.xlu0 %2745, %v354
      %v2747 = vpop.permute.xlu0 %2746
      %2749 = vset.pattern.permute.xlu0 3
      %2750 = vperm.xlu0 %2749, %v355
      %v2751 = vpop.permute.xlu0 %2750
      %2753 = vset.pattern.permute.xlu0 3
      %2754 = vperm.xlu0 %2753, %v356
      %v2755 = vpop.permute.xlu0 %2754
      %2757 = vset.pattern.permute.xlu0 3
      %2758 = vperm.xlu0 %2757, %v357
      %v2759 = vpop.permute.xlu0 %2758
      %2761 = vset.pattern.permute.xlu0 3
      %2762 = vperm.xlu0 %2761, %v358
      %v2763 = vpop.permute.xlu0 %2762
      %2765 = vset.pattern.permute.xlu0 3
      %2766 = vperm.xlu0 %2765, %v359
      %v2767 = vpop.permute.xlu0 %2766
      %2769 = vset.pattern.permute.xlu0 3
      %2770 = vperm.xlu0 %2769, %v360
      %v2771 = vpop.permute.xlu0 %2770
      %2773 = vset.pattern.permute.xlu0 3
      %2774 = vperm.xlu0 %2773, %v361
      %v2775 = vpop.permute.xlu0 %2774
      %2777 = vset.pattern.permute.xlu0 3
      %2778 = vperm.xlu0 %2777, %v362
      %v2779 = vpop.permute.xlu0 %2778
      %2781 = vset.pattern.permute.xlu0 3
      %2782 = vperm.xlu0 %2781, %v363
      %v2783 = vpop.permute.xlu0 %2782
      %2785 = vset.pattern.permute.xlu0 3
      %2786 = vperm.xlu0 %2785, %v364
      %v2787 = vpop.permute.xlu0 %2786
      %2789 = vset.pattern.permute.xlu0 3
      %2790 = vperm.xlu0 %2789, %v365
      %v2791 = vpop.permute.xlu0 %2790
      %2793 = vset.pattern.permute.xlu0 3
      %2794 = vperm.xlu0 %2793, %v366
      %v2795 = vpop.permute.xlu0 %2794
      %2797 = vset.pattern.permute.xlu0 3
      %2798 = vperm.xlu0 %2797, %v367
      %v2799 = vpop.permute.xlu0 %2798
      %2801 = vset.pattern.permute.xlu0 3
      %2802 = vperm.xlu0 %2801, %v368
      %v2803 = vpop.permute.xlu0 %2802
      %2805 = vset.pattern.permute.xlu0 3
      %2806 = vperm.xlu0 %2805, %v369
      %v2807 = vpop.permute.xlu0 %2806
      %2809 = vset.pattern.permute.xlu0 3
      %2810 = vperm.xlu0 %2809, %v370
      %v2811 = vpop.permute.xlu0 %2810
      %2813 = vset.pattern.permute.xlu0 3
      %2814 = vperm.xlu0 %2813, %v371
      %v2815 = vpop.permute.xlu0 %2814
      %2817 = vset.pattern.permute.xlu0 3
      %2818 = vperm.xlu0 %2817, %v372
      %v2819 = vpop.permute.xlu0 %2818
      %2821 = vset.pattern.permute.xlu0 3
      %2822 = vperm.xlu0 %2821, %v373
      %v2823 = vpop.permute.xlu0 %2822
      %2825 = vset.pattern.permute.xlu0 3
      %2826 = vperm.xlu0 %2825, %v374
      %v2827 = vpop.permute.xlu0 %2826
      %2829 = vset.pattern.permute.xlu0 3
      %2830 = vperm.xlu0 %2829, %v375
      %v2831 = vpop.permute.xlu0 %2830
      %2833 = vset.pattern.permute.xlu0 3
      %2834 = vperm.xlu0 %2833, %v376
      %v2835 = vpop.permute.xlu0 %2834
      %2837 = vset.pattern.permute.xlu0 3
      %2838 = vperm.xlu0 %2837, %v377
      %v2839 = vpop.permute.xlu0 %2838
      %2841 = vset.pattern.permute.xlu0 3
      %2842 = vperm.xlu0 %2841, %v378
      %v2843 = vpop.permute.xlu0 %2842
      %2845 = vset.pattern.permute.xlu0 3
      %2846 = vperm.xlu0 %2845, %v379
      %v2847 = vpop.permute.xlu0 %2846
      %2849 = vset.pattern.permute.xlu0 3
      %2850 = vperm.xlu0 %2849, %v380
      %v2851 = vpop.permute.xlu0 %2850
      %2853 = vset.pattern.permute.xlu0 3
      %2854 = vperm.xlu0 %2853, %v381
      %v2855 = vpop.permute.xlu0 %2854
      %2857 = vset.pattern.permute.xlu0 3
      %2858 = vperm.xlu0 %2857, %v382
      %v2859 = vpop.permute.xlu0 %2858
      %2861 = vset.pattern.permute.xlu0 3
      %2862 = vperm.xlu0 %2861, %v383
      %v2863 = vpop.permute.xlu0 %2862
      %2865 = vset.pattern.permute.xlu0 3
      %2866 = vperm.xlu0 %2865, %v384
      %v2867 = vpop.permute.xlu0 %2866
      %2869 = vset.pattern.permute.xlu0 3
      %2870 = vperm.xlu0 %2869, %v385
      %v2871 = vpop.permute.xlu0 %2870
      %2873 = vset.pattern.permute.xlu0 3
      %2874 = vperm.xlu0 %2873, %v386
      %v2875 = vpop.permute.xlu0 %2874
      %2877 = vset.pattern.permute.xlu0 3
      %2878 = vperm.xlu0 %2877, %v387
      %v2879 = vpop.permute.xlu0 %2878
      %2881 = vset.pattern.permute.xlu0 3
      %2882 = vperm.xlu0 %2881, %v388
      %v2883 = vpop.permute.xlu0 %2882
      %2885 = vset.pattern.permute.xlu0 3
      %2886 = vperm.xlu0 %2885, %v389
      %v2887 = vpop.permute.xlu0 %2886
      %2889 = vset.pattern.permute.xlu0 3
      %2890 = vperm.xlu0 %2889, %v390
      %v2891 = vpop.permute.xlu0 %2890
      %2893 = vset.pattern.permute.xlu0 3
      %2894 = vperm.xlu0 %2893, %v391
      %v2895 = vpop.permute.xlu0 %2894
      %2897 = vset.pattern.permute.xlu0 3
      %2898 = vperm.xlu0 %2897, %v392
      %v2899 = vpop.permute.xlu0 %2898
      %2901 = vset.pattern.permute.xlu0 3
      %2902 = vperm.xlu0 %2901, %v393
      %v2903 = vpop.permute.xlu0 %2902
      %2905 = vset.pattern.permute.xlu0 3
      %2906 = vperm.xlu0 %2905, %v394
      %v2907 = vpop.permute.xlu0 %2906
      %2909 = vset.pattern.permute.xlu0 3
      %2910 = vperm.xlu0 %2909, %v395
      %v2911 = vpop.permute.xlu0 %2910
      %2913 = vset.pattern.permute.xlu0 3
      %2914 = vperm.xlu0 %2913, %v396
      %v2915 = vpop.permute.xlu0 %2914
      %2917 = vset.pattern.permute.xlu0 3
      %2918 = vperm.xlu0 %2917, %v397
      %v2919 = vpop.permute.xlu0 %2918
      %2921 = vset.pattern.permute.xlu0 3
      %2922 = vperm.xlu0 %2921, %v398
      %v2923 = vpop.permute.xlu0 %2922
      %2925 = vset.pattern.permute.xlu0 3
      %2926 = vperm.xlu0 %2925, %v399
      %v2927 = vpop.permute.xlu0 %2926
      %2929 = vset.pattern.permute.xlu0 3
      %2930 = vperm.xlu0 %2929, %v400
      %v2931 = vpop.permute.xlu0 %2930
      %2933 = vset.pattern.permute.xlu0 3
      %2934 = vperm.xlu0 %2933, %v401
      %v2935 = vpop.permute.xlu0 %2934
      %2937 = vset.pattern.permute.xlu0 3
      %2938 = vperm.xlu0 %2937, %v402
      %v2939 = vpop.permute.xlu0 %2938
      %2941 = vset.pattern.permute.xlu0 3
      %2942 = vperm.xlu0 %2941, %v403
      %v2943 = vpop.permute.xlu0 %2942
      %2945 = vset.pattern.permute.xlu0 3
      %2946 = vperm.xlu0 %2945, %v404
      %v2947 = vpop.permute.xlu0 %2946
      %2949 = vset.pattern.permute.xlu0 3
      %2950 = vperm.xlu0 %2949, %v405
      %v2951 = vpop.permute.xlu0 %2950
      %2953 = vset.pattern.permute.xlu0 3
      %2954 = vperm.xlu0 %2953, %v406
      %v2955 = vpop.permute.xlu0 %2954
      %2957 = vset.pattern.permute.xlu0 3
      %2958 = vperm.xlu0 %2957, %v407
      %v2959 = vpop.permute.xlu0 %2958
      %2961 = vset.pattern.permute.xlu0 3
      %2962 = vperm.xlu0 %2961, %v408
      %v2963 = vpop.permute.xlu0 %2962
      %2965 = vset.pattern.permute.xlu0 3
      %2966 = vperm.xlu0 %2965, %v409
      %v2967 = vpop.permute.xlu0 %2966
      %2969 = vset.pattern.permute.xlu0 3
      %2970 = vperm.xlu0 %2969, %v410
      %v2971 = vpop.permute.xlu0 %2970
      %2973 = vset.pattern.permute.xlu0 3
      %2974 = vperm.xlu0 %2973, %v411
      %v2975 = vpop.permute.xlu0 %2974
      %2977 = vset.pattern.permute.xlu0 3
      %2978 = vperm.xlu0 %2977, %v412
      %v2979 = vpop.permute.xlu0 %2978
      %2981 = vset.pattern.permute.xlu0 3
      %2982 = vperm.xlu0 %2981, %v413
      %v2983 = vpop.permute.xlu0 %2982
      %2985 = vset.pattern.permute.xlu0 3
      %2986 = vperm.xlu0 %2985, %v414
      %v2987 = vpop.permute.xlu0 %2986
      %2989 = vset.pattern.permute.xlu0 3
      %2990 = vperm.xlu0 %2989, %v415
      %v2991 = vpop.permute.xlu0 %2990
      %2993 = vset.pattern.permute.xlu0 3
      %2994 = vperm.xlu0 %2993, %v416
      %v2995 = vpop.permute.xlu0 %2994
      %2997 = vset.pattern.permute.xlu0 3
      %2998 = vperm.xlu0 %2997, %v417
      %v2999 = vpop.permute.xlu0 %2998
      %3001 = vset.pattern.permute.xlu0 3
      %3002 = vperm.xlu0 %3001, %v418
      %v3003 = vpop.permute.xlu0 %3002
      %3005 = vset.pattern.permute.xlu0 3
      %3006 = vperm.xlu0 %3005, %v419
      %v3007 = vpop.permute.xlu0 %3006
      %3009 = vset.pattern.permute.xlu0 3
      %3010 = vperm.xlu0 %3009, %v420
      %v3011 = vpop.permute.xlu0 %3010
      %3013 = vset.pattern.permute.xlu0 3
      %3014 = vperm.xlu0 %3013, %v421
      %v3015 = vpop.permute.xlu0 %3014
      %3017 = vset.pattern.permute.xlu0 3
      %3018 = vperm.xlu0 %3017, %v422
      %v3019 = vpop.permute.xlu0 %3018
      %3021 = vset.pattern.permute.xlu0 3
      %3022 = vperm.xlu0 %3021, %v423
      %v3023 = vpop.permute.xlu0 %3022
      %3025 = vset.pattern.permute.xlu0 3
      %3026 = vperm.xlu0 %3025, %v424
      %v3027 = vpop.permute.xlu0 %3026
      %3029 = vset.pattern.permute.xlu0 3
      %3030 = vperm.xlu0 %3029, %v425
      %v3031 = vpop.permute.xlu0 %3030
      %3033 = vset.pattern.permute.xlu0 3
      %3034 = vperm.xlu0 %3033, %v426
      %v3035 = vpop.permute.xlu0 %3034
      %3037 = vset.pattern.permute.xlu0 3
      %3038 = vperm.xlu0 %3037, %v427
      %v3039 = vpop.permute.xlu0 %3038
      %3041 = vset.pattern.permute.xlu0 3
      %3042 = vperm.xlu0 %3041, %v428
      %v3043 = vpop.permute.xlu0 %3042
      %3045 = vset.pattern.permute.xlu0 3
      %3046 = vperm.xlu0 %3045, %v429
      %v3047 = vpop.permute.xlu0 %3046
      %3049 = vset.pattern.permute.xlu0 3
      %3050 = vperm.xlu0 %3049, %v430
      %v3051 = vpop.permute.xlu0 %3050
      %3053 = vset.pattern.permute.xlu0 3
      %3054 = vperm.xlu0 %3053, %v431
      %v3055 = vpop.permute.xlu0 %3054
      %3057 = vset.pattern.permute.xlu0 3
      %3058 = vperm.xlu0 %3057, %v432
      %v3059 = vpop.permute.xlu0 %3058
      %3061 = vset.pattern.permute.xlu0 3
      %3062 = vperm.xlu0 %3061, %v433
      %v3063 = vpop.permute.xlu0 %3062
      %3065 = vset.pattern.permute.xlu0 3
      %3066 = vperm.xlu0 %3065, %v434
      %v3067 = vpop.permute.xlu0 %3066
      %3069 = vset.pattern.permute.xlu0 3
      %3070 = vperm.xlu0 %3069, %v435
      %v3071 = vpop.permute.xlu0 %3070
      %3073 = vset.pattern.permute.xlu0 3
      %3074 = vperm.xlu0 %3073, %v436
      %v3075 = vpop.permute.xlu0 %3074
      %3077 = vset.pattern.permute.xlu0 3
      %3078 = vperm.xlu0 %3077, %v437
      %v3079 = vpop.permute.xlu0 %3078
      %3081 = vset.pattern.permute.xlu0 3
      %3082 = vperm.xlu0 %3081, %v438
      %v3083 = vpop.permute.xlu0 %3082
      %3085 = vset.pattern.permute.xlu0 3
      %3086 = vperm.xlu0 %3085, %v439
      %v3087 = vpop.permute.xlu0 %3086
      %3089 = vset.pattern.permute.xlu0 3
      %3090 = vperm.xlu0 %3089, %v440
      %v3091 = vpop.permute.xlu0 %3090
      %3093 = vset.pattern.permute.xlu0 3
      %3094 = vperm.xlu0 %3093, %v441
      %v3095 = vpop.permute.xlu0 %3094
      %3097 = vset.pattern.permute.xlu0 3
      %3098 = vperm.xlu0 %3097, %v442
      %v3099 = vpop.permute.xlu0 %3098
      %3101 = vset.pattern.permute.xlu0 3
      %3102 = vperm.xlu0 %3101, %v443
      %v3103 = vpop.permute.xlu0 %3102
      %3105 = vset.pattern.permute.xlu0 3
      %3106 = vperm.xlu0 %3105, %v444
      %v3107 = vpop.permute.xlu0 %3106
      %3109 = vset.pattern.permute.xlu0 3
      %3110 = vperm.xlu0 %3109, %v445
      %v3111 = vpop.permute.xlu0 %3110
      %3113 = vset.pattern.permute.xlu0 3
      %3114 = vperm.xlu0 %3113, %v446
      %v3115 = vpop.permute.xlu0 %3114
      %3117 = vset.pattern.permute.xlu0 3
      %3118 = vperm.xlu0 %3117, %v447
      %v3119 = vpop.permute.xlu0 %3118
      %3121 = vset.pattern.permute.xlu0 3
      %3122 = vperm.xlu0 %3121, %v448
      %v3123 = vpop.permute.xlu0 %3122
      %3125 = vset.pattern.permute.xlu0 3
      %3126 = vperm.xlu0 %3125, %v449
      %v3127 = vpop.permute.xlu0 %3126
      %3129 = vset.pattern.permute.xlu0 3
      %3130 = vperm.xlu0 %3129, %v450
      %v3131 = vpop.permute.xlu0 %3130
      %3133 = vset.pattern.permute.xlu0 3
      %3134 = vperm.xlu0 %3133, %v451
      %v3135 = vpop.permute.xlu0 %3134
      %3137 = vset.pattern.permute.xlu0 3
      %3138 = vperm.xlu0 %3137, %v452
      %v3139 = vpop.permute.xlu0 %3138
      %v3141 = vmul.f32 %v2631, %v453
      %v3142 = vmul.f32 %v2635, %v454
      %v3143 = vmul.f32 %v2639, %v455
      %v3144 = vmul.f32 %v2643, %v456
      %v3145 = vmul.f32 %v2647, %v457
      %v3146 = vmul.f32 %v2651, %v458
      %v3147 = vmul.f32 %v2655, %v459
      %v3148 = vmul.f32 %v2659, %v460
      %v3149 = vmul.f32 %v2663, %v461
      %v3150 = vmul.f32 %v2667, %v462
      %v3151 = vmul.f32 %v2671, %v463
      %v3152 = vmul.f32 %v2675, %v464
      %v3153 = vmul.f32 %v2679, %v465
      %v3154 = vmul.f32 %v2683, %v466
      %v3155 = vmul.f32 %v2687, %v467
      %v3156 = vmul.f32 %v2691, %v468
      %v3157 = vmul.f32 %v2695, %v469
      %v3158 = vmul.f32 %v2699, %v470
      %v3159 = vmul.f32 %v2703, %v471
      %v3160 = vmul.f32 %v2707, %v472
      %v3161 = vmul.f32 %v2711, %v473
      %v3162 = vmul.f32 %v2715, %v474
      %v3163 = vmul.f32 %v2719, %v475
      %v3164 = vmul.f32 %v2723, %v476
      %v3165 = vmul.f32 %v2727, %v477
      %v3166 = vmul.f32 %v2731, %v478
      %v3167 = vmul.f32 %v2735, %v479
      %v3168 = vmul.f32 %v2739, %v480
      %v3169 = vmul.f32 %v2743, %v481
      %v3170 = vmul.f32 %v2747, %v482
      %v3171 = vmul.f32 %v2751, %v483
      %v3172 = vmul.f32 %v2755, %v484
      %v3173 = vmul.f32 %v2759, %v485
      %v3174 = vmul.f32 %v2763, %v486
      %v3175 = vmul.f32 %v2767, %v487
      %v3176 = vmul.f32 %v2771, %v488
      %v3177 = vmul.f32 %v2775, %v489
      %v3178 = vmul.f32 %v2779, %v490
      %v3179 = vmul.f32 %v2783, %v491
      %v3180 = vmul.f32 %v2787, %v492
      %v3181 = vmul.f32 %v2791, %v493
      %v3182 = vmul.f32 %v2795, %v494
      %v3183 = vmul.f32 %v2799, %v495
      %v3184 = vmul.f32 %v2803, %v496
      %v3185 = vmul.f32 %v2807, %v497
      %v3186 = vmul.f32 %v2811, %v498
      %v3187 = vmul.f32 %v2815, %v499
      %v3188 = vmul.f32 %v2819, %v500
      %v3189 = vmul.f32 %v2823, %v501
      %v3190 = vmul.f32 %v2827, %v502
      %v3191 = vmul.f32 %v2831, %v503
      %v3192 = vmul.f32 %v2835, %v504
      %v3193 = vmul.f32 %v2839, %v505
      %v3194 = vmul.f32 %v2843, %v506
      %v3195 = vmul.f32 %v2847, %v507
      %v3196 = vmul.f32 %v2851, %v508
      %v3197 = vmul.f32 %v2855, %v509
      %v3198 = vmul.f32 %v2859, %v510
      %v3199 = vmul.f32 %v2863, %v511
      %v3200 = vmul.f32 %v2867, %v512
      %v3201 = vmul.f32 %v2871, %v513
      %v3202 = vmul.f32 %v2875, %v514
      %v3203 = vmul.f32 %v2879, %v515
      %v3204 = vmul.f32 %v2883, %v516
      %v3205 = vmul.f32 %v2887, %v517
      %v3206 = vmul.f32 %v2891, %v518
      %v3207 = vmul.f32 %v2895, %v519
      %v3208 = vmul.f32 %v2899, %v520
      %v3209 = vmul.f32 %v2903, %v521
      %v3210 = vmul.f32 %v2907, %v522
      %v3211 = vmul.f32 %v2911, %v523
      %v3212 = vmul.f32 %v2915, %v524
      %v3213 = vmul.f32 %v2919, %v525
      %v3214 = vmul.f32 %v2923, %v526
      %v3215 = vmul.f32 %v2927, %v527
      %v3216 = vmul.f32 %v2931, %v528
      %v3217 = vmul.f32 %v2935, %v529
      %v3218 = vmul.f32 %v2939, %v530
      %v3219 = vmul.f32 %v2943, %v531
      %v3220 = vmul.f32 %v2947, %v532
      %v3221 = vmul.f32 %v2951, %v533
      %v3222 = vmul.f32 %v2955, %v534
      %v3223 = vmul.f32 %v2959, %v535
      %v3224 = vmul.f32 %v2963, %v536
      %v3225 = vmul.f32 %v2967, %v537
      %v3226 = vmul.f32 %v2971, %v538
      %v3227 = vmul.f32 %v2975, %v539
      %v3228 = vmul.f32 %v2979, %v540
      %v3229 = vmul.f32 %v2983, %v541
      %v3230 = vmul.f32 %v2987, %v542
      %v3231 = vmul.f32 %v2991, %v543
      %v3232 = vmul.f32 %v2995, %v544
      %v3233 = vmul.f32 %v2999, %v545
      %v3234 = vmul.f32 %v3003, %v546
      %v3235 = vmul.f32 %v3007, %v547
      %v3236 = vmul.f32 %v3011, %v548
      %v3237 = vmul.f32 %v3015, %v549
      %v3238 = vmul.f32 %v3019, %v550
      %v3239 = vmul.f32 %v3023, %v551
      %v3240 = vmul.f32 %v3027, %v552
      %v3241 = vmul.f32 %v3031, %v553
      %v3242 = vmul.f32 %v3035, %v554
      %v3243 = vmul.f32 %v3039, %v555
      %v3244 = vmul.f32 %v3043, %v556
      %v3245 = vmul.f32 %v3047, %v557
      %v3246 = vmul.f32 %v3051, %v558
      %v3247 = vmul.f32 %v3055, %v559
      %v3248 = vmul.f32 %v3059, %v560
      %v3249 = vmul.f32 %v3063, %v561
      %v3250 = vmul.f32 %v3067, %v562
      %v3251 = vmul.f32 %v3071, %v563
      %v3252 = vmul.f32 %v3075, %v564
      %v3253 = vmul.f32 %v3079, %v565
      %v3254 = vmul.f32 %v3083, %v566
      %v3255 = vmul.f32 %v3087, %v567
      %v3256 = vmul.f32 %v3091, %v568
      %v3257 = vmul.f32 %v3095, %v569
      %v3258 = vmul.f32 %v3099, %v570
      %v3259 = vmul.f32 %v3103, %v571
      %v3260 = vmul.f32 %v3107, %v572
      %v3261 = vmul.f32 %v3111, %v573
      %v3262 = vmul.f32 %v3115, %v574
      %v3263 = vmul.f32 %v3119, %v575
      %v3264 = vmul.f32 %v3123, %v576
      %v3265 = vmul.f32 %v3127, %v577
      %v3266 = vmul.f32 %v3131, %v578
      %v3267 = vmul.f32 %v3135, %v579
      %v3268 = vmul.f32 %v3139, %v580
      %3397 = vrot.lane.b32.xlu0 %v1861, 32
      %v3398 = vpop.permute.xlu0 %3397
      %3399 = vrot.lane.b32.xlu0 %v1862, 32
      %v3400 = vpop.permute.xlu0 %3399
      %3401 = vrot.lane.b32.xlu0 %v1863, 32
      %v3402 = vpop.permute.xlu0 %3401
      %3403 = vrot.lane.b32.xlu0 %v1864, 32
      %v3404 = vpop.permute.xlu0 %3403
      %3405 = vrot.lane.b32.xlu0 %v1865, 32
      %v3406 = vpop.permute.xlu0 %3405
      %3407 = vrot.lane.b32.xlu0 %v1866, 32
      %v3408 = vpop.permute.xlu0 %3407
      %3409 = vrot.lane.b32.xlu0 %v1867, 32
      %v3410 = vpop.permute.xlu0 %3409
      %3411 = vrot.lane.b32.xlu0 %v1868, 32
      %v3412 = vpop.permute.xlu0 %3411
      %3413 = vrot.lane.b32.xlu0 %v1869, 32
      %v3414 = vpop.permute.xlu0 %3413
      %3415 = vrot.lane.b32.xlu0 %v1870, 32
      %v3416 = vpop.permute.xlu0 %3415
      %3417 = vrot.lane.b32.xlu0 %v1871, 32
      %v3418 = vpop.permute.xlu0 %3417
      %3419 = vrot.lane.b32.xlu0 %v1872, 32
      %v3420 = vpop.permute.xlu0 %3419
      %3421 = vrot.lane.b32.xlu0 %v1873, 32
      %v3422 = vpop.permute.xlu0 %3421
      %3423 = vrot.lane.b32.xlu0 %v1874, 32
      %v3424 = vpop.permute.xlu0 %3423
      %3425 = vrot.lane.b32.xlu0 %v1875, 32
      %v3426 = vpop.permute.xlu0 %3425
      %3427 = vrot.lane.b32.xlu0 %v1876, 32
      %v3428 = vpop.permute.xlu0 %3427
      %3429 = vrot.lane.b32.xlu0 %v1877, 32
      %v3430 = vpop.permute.xlu0 %3429
      %3431 = vrot.lane.b32.xlu0 %v1878, 32
      %v3432 = vpop.permute.xlu0 %3431
      %3433 = vrot.lane.b32.xlu0 %v1879, 32
      %v3434 = vpop.permute.xlu0 %3433
      %3435 = vrot.lane.b32.xlu0 %v1880, 32
      %v3436 = vpop.permute.xlu0 %3435
      %3437 = vrot.lane.b32.xlu0 %v1881, 32
      %v3438 = vpop.permute.xlu0 %3437
      %3439 = vrot.lane.b32.xlu0 %v1882, 32
      %v3440 = vpop.permute.xlu0 %3439
      %3441 = vrot.lane.b32.xlu0 %v1883, 32
      %v3442 = vpop.permute.xlu0 %3441
      %3443 = vrot.lane.b32.xlu0 %v1884, 32
      %v3444 = vpop.permute.xlu0 %3443
      %3445 = vrot.lane.b32.xlu0 %v1885, 32
      %v3446 = vpop.permute.xlu0 %3445
      %3447 = vrot.lane.b32.xlu0 %v1886, 32
      %v3448 = vpop.permute.xlu0 %3447
      %3449 = vrot.lane.b32.xlu0 %v1887, 32
      %v3450 = vpop.permute.xlu0 %3449
      %3451 = vrot.lane.b32.xlu0 %v1888, 32
      %v3452 = vpop.permute.xlu0 %3451
      %3453 = vrot.lane.b32.xlu0 %v1889, 32
      %v3454 = vpop.permute.xlu0 %3453
      %3455 = vrot.lane.b32.xlu0 %v1890, 32
      %v3456 = vpop.permute.xlu0 %3455
      %3457 = vrot.lane.b32.xlu0 %v1891, 32
      %v3458 = vpop.permute.xlu0 %3457
      %3459 = vrot.lane.b32.xlu0 %v1892, 32
      %v3460 = vpop.permute.xlu0 %3459
      %3461 = vrot.lane.b32.xlu0 %v1893, 32
      %v3462 = vpop.permute.xlu0 %3461
      %3463 = vrot.lane.b32.xlu0 %v1894, 32
      %v3464 = vpop.permute.xlu0 %3463
      %3465 = vrot.lane.b32.xlu0 %v1895, 32
      %v3466 = vpop.permute.xlu0 %3465
      %3467 = vrot.lane.b32.xlu0 %v1896, 32
      %v3468 = vpop.permute.xlu0 %3467
      %3469 = vrot.lane.b32.xlu0 %v1897, 32
      %v3470 = vpop.permute.xlu0 %3469
      %3471 = vrot.lane.b32.xlu0 %v1898, 32
      %v3472 = vpop.permute.xlu0 %3471
      %3473 = vrot.lane.b32.xlu0 %v1899, 32
      %v3474 = vpop.permute.xlu0 %3473
      %3475 = vrot.lane.b32.xlu0 %v1900, 32
      %v3476 = vpop.permute.xlu0 %3475
      %3477 = vrot.lane.b32.xlu0 %v1901, 32
      %v3478 = vpop.permute.xlu0 %3477
      %3479 = vrot.lane.b32.xlu0 %v1902, 32
      %v3480 = vpop.permute.xlu0 %3479
      %3481 = vrot.lane.b32.xlu0 %v1903, 32
      %v3482 = vpop.permute.xlu0 %3481
      %3483 = vrot.lane.b32.xlu0 %v1904, 32
      %v3484 = vpop.permute.xlu0 %3483
      %3485 = vrot.lane.b32.xlu0 %v1905, 32
      %v3486 = vpop.permute.xlu0 %3485
      %3487 = vrot.lane.b32.xlu0 %v1906, 32
      %v3488 = vpop.permute.xlu0 %3487
      %3489 = vrot.lane.b32.xlu0 %v1907, 32
      %v3490 = vpop.permute.xlu0 %3489
      %3491 = vrot.lane.b32.xlu0 %v1908, 32
      %v3492 = vpop.permute.xlu0 %3491
      %3493 = vrot.lane.b32.xlu0 %v1909, 32
      %v3494 = vpop.permute.xlu0 %3493
      %3495 = vrot.lane.b32.xlu0 %v1910, 32
      %v3496 = vpop.permute.xlu0 %3495
      %3497 = vrot.lane.b32.xlu0 %v1911, 32
      %v3498 = vpop.permute.xlu0 %3497
      %3499 = vrot.lane.b32.xlu0 %v1912, 32
      %v3500 = vpop.permute.xlu0 %3499
      %3501 = vrot.lane.b32.xlu0 %v1913, 32
      %v3502 = vpop.permute.xlu0 %3501
      %3503 = vrot.lane.b32.xlu0 %v1914, 32
      %v3504 = vpop.permute.xlu0 %3503
      %3505 = vrot.lane.b32.xlu0 %v1915, 32
      %v3506 = vpop.permute.xlu0 %3505
      %3507 = vrot.lane.b32.xlu0 %v1916, 32
      %v3508 = vpop.permute.xlu0 %3507
      %3509 = vrot.lane.b32.xlu0 %v1917, 32
      %v3510 = vpop.permute.xlu0 %3509
      %3511 = vrot.lane.b32.xlu0 %v1918, 32
      %v3512 = vpop.permute.xlu0 %3511
      %3513 = vrot.lane.b32.xlu0 %v1919, 32
      %v3514 = vpop.permute.xlu0 %3513
      %3515 = vrot.lane.b32.xlu0 %v1920, 32
      %v3516 = vpop.permute.xlu0 %3515
      %3517 = vrot.lane.b32.xlu0 %v1921, 32
      %v3518 = vpop.permute.xlu0 %3517
      %3519 = vrot.lane.b32.xlu0 %v1922, 32
      %v3520 = vpop.permute.xlu0 %3519
      %3521 = vrot.lane.b32.xlu0 %v1923, 32
      %v3522 = vpop.permute.xlu0 %3521
      %3523 = vrot.lane.b32.xlu0 %v1924, 32
      %v3524 = vpop.permute.xlu0 %3523
      %3525 = vrot.lane.b32.xlu0 %v1925, 32
      %v3526 = vpop.permute.xlu0 %3525
      %3527 = vrot.lane.b32.xlu0 %v1926, 32
      %v3528 = vpop.permute.xlu0 %3527
      %3529 = vrot.lane.b32.xlu0 %v1927, 32
      %v3530 = vpop.permute.xlu0 %3529
      %3531 = vrot.lane.b32.xlu0 %v1928, 32
      %v3532 = vpop.permute.xlu0 %3531
      %3533 = vrot.lane.b32.xlu0 %v1929, 32
      %v3534 = vpop.permute.xlu0 %3533
      %3535 = vrot.lane.b32.xlu0 %v1930, 32
      %v3536 = vpop.permute.xlu0 %3535
      %3537 = vrot.lane.b32.xlu0 %v1931, 32
      %v3538 = vpop.permute.xlu0 %3537
      %3539 = vrot.lane.b32.xlu0 %v1932, 32
      %v3540 = vpop.permute.xlu0 %3539
      %3541 = vrot.lane.b32.xlu0 %v1933, 32
      %v3542 = vpop.permute.xlu0 %3541
      %3543 = vrot.lane.b32.xlu0 %v1934, 32
      %v3544 = vpop.permute.xlu0 %3543
      %3545 = vrot.lane.b32.xlu0 %v1935, 32
      %v3546 = vpop.permute.xlu0 %3545
      %3547 = vrot.lane.b32.xlu0 %v1936, 32
      %v3548 = vpop.permute.xlu0 %3547
      %3549 = vrot.lane.b32.xlu0 %v1937, 32
      %v3550 = vpop.permute.xlu0 %3549
      %3551 = vrot.lane.b32.xlu0 %v1938, 32
      %v3552 = vpop.permute.xlu0 %3551
      %3553 = vrot.lane.b32.xlu0 %v1939, 32
      %v3554 = vpop.permute.xlu0 %3553
      %3555 = vrot.lane.b32.xlu0 %v1940, 32
      %v3556 = vpop.permute.xlu0 %3555
      %3557 = vrot.lane.b32.xlu0 %v1941, 32
      %v3558 = vpop.permute.xlu0 %3557
      %3559 = vrot.lane.b32.xlu0 %v1942, 32
      %v3560 = vpop.permute.xlu0 %3559
      %3561 = vrot.lane.b32.xlu0 %v1943, 32
      %v3562 = vpop.permute.xlu0 %3561
      %3563 = vrot.lane.b32.xlu0 %v1944, 32
      %v3564 = vpop.permute.xlu0 %3563
      %3565 = vrot.lane.b32.xlu0 %v1945, 32
      %v3566 = vpop.permute.xlu0 %3565
      %3567 = vrot.lane.b32.xlu0 %v1946, 32
      %v3568 = vpop.permute.xlu0 %3567
      %3569 = vrot.lane.b32.xlu0 %v1947, 32
      %v3570 = vpop.permute.xlu0 %3569
      %3571 = vrot.lane.b32.xlu0 %v1948, 32
      %v3572 = vpop.permute.xlu0 %3571
      %3573 = vrot.lane.b32.xlu0 %v1949, 32
      %v3574 = vpop.permute.xlu0 %3573
      %3575 = vrot.lane.b32.xlu0 %v1950, 32
      %v3576 = vpop.permute.xlu0 %3575
      %3577 = vrot.lane.b32.xlu0 %v1951, 32
      %v3578 = vpop.permute.xlu0 %3577
      %3579 = vrot.lane.b32.xlu0 %v1952, 32
      %v3580 = vpop.permute.xlu0 %3579
      %3581 = vrot.lane.b32.xlu0 %v1953, 32
      %v3582 = vpop.permute.xlu0 %3581
      %3583 = vrot.lane.b32.xlu0 %v1954, 32
      %v3584 = vpop.permute.xlu0 %3583
      %3585 = vrot.lane.b32.xlu0 %v1955, 32
      %v3586 = vpop.permute.xlu0 %3585
      %3587 = vrot.lane.b32.xlu0 %v1956, 32
      %v3588 = vpop.permute.xlu0 %3587
      %3589 = vrot.lane.b32.xlu0 %v1957, 32
      %v3590 = vpop.permute.xlu0 %3589
      %3591 = vrot.lane.b32.xlu0 %v1958, 32
      %v3592 = vpop.permute.xlu0 %3591
      %3593 = vrot.lane.b32.xlu0 %v1959, 32
      %v3594 = vpop.permute.xlu0 %3593
      %3595 = vrot.lane.b32.xlu0 %v1960, 32
      %v3596 = vpop.permute.xlu0 %3595
      %3597 = vrot.lane.b32.xlu0 %v1961, 32
      %v3598 = vpop.permute.xlu0 %3597
      %3599 = vrot.lane.b32.xlu0 %v1962, 32
      %v3600 = vpop.permute.xlu0 %3599
      %3601 = vrot.lane.b32.xlu0 %v1963, 32
      %v3602 = vpop.permute.xlu0 %3601
      %3603 = vrot.lane.b32.xlu0 %v1964, 32
      %v3604 = vpop.permute.xlu0 %3603
      %3605 = vrot.lane.b32.xlu0 %v1965, 32
      %v3606 = vpop.permute.xlu0 %3605
      %3607 = vrot.lane.b32.xlu0 %v1966, 32
      %v3608 = vpop.permute.xlu0 %3607
      %3609 = vrot.lane.b32.xlu0 %v1967, 32
      %v3610 = vpop.permute.xlu0 %3609
      %3611 = vrot.lane.b32.xlu0 %v1968, 32
      %v3612 = vpop.permute.xlu0 %3611
      %3613 = vrot.lane.b32.xlu0 %v1969, 32
      %v3614 = vpop.permute.xlu0 %3613
      %3615 = vrot.lane.b32.xlu0 %v1970, 32
      %v3616 = vpop.permute.xlu0 %3615
      %3617 = vrot.lane.b32.xlu0 %v1971, 32
      %v3618 = vpop.permute.xlu0 %3617
      %3619 = vrot.lane.b32.xlu0 %v1972, 32
      %v3620 = vpop.permute.xlu0 %3619
      %3621 = vrot.lane.b32.xlu0 %v1973, 32
      %v3622 = vpop.permute.xlu0 %3621
      %3623 = vrot.lane.b32.xlu0 %v1974, 32
      %v3624 = vpop.permute.xlu0 %3623
      %3625 = vrot.lane.b32.xlu0 %v1975, 32
      %v3626 = vpop.permute.xlu0 %3625
      %3627 = vrot.lane.b32.xlu0 %v1976, 32
      %v3628 = vpop.permute.xlu0 %3627
      %3629 = vrot.lane.b32.xlu0 %v1977, 32
      %v3630 = vpop.permute.xlu0 %3629
      %3631 = vrot.lane.b32.xlu0 %v1978, 32
      %v3632 = vpop.permute.xlu0 %3631
      %3633 = vrot.lane.b32.xlu0 %v1979, 32
      %v3634 = vpop.permute.xlu0 %3633
      %3635 = vrot.lane.b32.xlu0 %v1980, 32
      %v3636 = vpop.permute.xlu0 %3635
      %3637 = vrot.lane.b32.xlu0 %v1981, 32
      %v3638 = vpop.permute.xlu0 %3637
      %3639 = vrot.lane.b32.xlu0 %v1982, 32
      %v3640 = vpop.permute.xlu0 %3639
      %3641 = vrot.lane.b32.xlu0 %v1983, 32
      %v3642 = vpop.permute.xlu0 %3641
      %3643 = vrot.lane.b32.xlu0 %v1984, 32
      %v3644 = vpop.permute.xlu0 %3643
      %3645 = vrot.lane.b32.xlu0 %v1985, 32
      %v3646 = vpop.permute.xlu0 %3645
      %3647 = vrot.lane.b32.xlu0 %v1986, 32
      %v3648 = vpop.permute.xlu0 %3647
      %3649 = vrot.lane.b32.xlu0 %v1987, 32
      %v3650 = vpop.permute.xlu0 %3649
      %3651 = vrot.lane.b32.xlu0 %v1988, 32
      %v3652 = vpop.permute.xlu0 %3651
      %3909 = vrot.lane.b32.xlu0 %v2501, 64
      %v3910 = vpop.permute.xlu0 %3909
      %3911 = vrot.lane.b32.xlu0 %v2502, 64
      %v3912 = vpop.permute.xlu0 %3911
      %3913 = vrot.lane.b32.xlu0 %v2503, 64
      %v3914 = vpop.permute.xlu0 %3913
      %3915 = vrot.lane.b32.xlu0 %v2504, 64
      %v3916 = vpop.permute.xlu0 %3915
      %3917 = vrot.lane.b32.xlu0 %v2505, 64
      %v3918 = vpop.permute.xlu0 %3917
      %3919 = vrot.lane.b32.xlu0 %v2506, 64
      %v3920 = vpop.permute.xlu0 %3919
      %3921 = vrot.lane.b32.xlu0 %v2507, 64
      %v3922 = vpop.permute.xlu0 %3921
      %3923 = vrot.lane.b32.xlu0 %v2508, 64
      %v3924 = vpop.permute.xlu0 %3923
      %3925 = vrot.lane.b32.xlu0 %v2509, 64
      %v3926 = vpop.permute.xlu0 %3925
      %3927 = vrot.lane.b32.xlu0 %v2510, 64
      %v3928 = vpop.permute.xlu0 %3927
      %3929 = vrot.lane.b32.xlu0 %v2511, 64
      %v3930 = vpop.permute.xlu0 %3929
      %3931 = vrot.lane.b32.xlu0 %v2512, 64
      %v3932 = vpop.permute.xlu0 %3931
      %3933 = vrot.lane.b32.xlu0 %v2513, 64
      %v3934 = vpop.permute.xlu0 %3933
      %3935 = vrot.lane.b32.xlu0 %v2514, 64
      %v3936 = vpop.permute.xlu0 %3935
      %3937 = vrot.lane.b32.xlu0 %v2515, 64
      %v3938 = vpop.permute.xlu0 %3937
      %3939 = vrot.lane.b32.xlu0 %v2516, 64
      %v3940 = vpop.permute.xlu0 %3939
      %3941 = vrot.lane.b32.xlu0 %v2517, 64
      %v3942 = vpop.permute.xlu0 %3941
      %3943 = vrot.lane.b32.xlu0 %v2518, 64
      %v3944 = vpop.permute.xlu0 %3943
      %3945 = vrot.lane.b32.xlu0 %v2519, 64
      %v3946 = vpop.permute.xlu0 %3945
      %3947 = vrot.lane.b32.xlu0 %v2520, 64
      %v3948 = vpop.permute.xlu0 %3947
      %3949 = vrot.lane.b32.xlu0 %v2521, 64
      %v3950 = vpop.permute.xlu0 %3949
      %3951 = vrot.lane.b32.xlu0 %v2522, 64
      %v3952 = vpop.permute.xlu0 %3951
      %3953 = vrot.lane.b32.xlu0 %v2523, 64
      %v3954 = vpop.permute.xlu0 %3953
      %3955 = vrot.lane.b32.xlu0 %v2524, 64
      %v3956 = vpop.permute.xlu0 %3955
      %3957 = vrot.lane.b32.xlu0 %v2525, 64
      %v3958 = vpop.permute.xlu0 %3957
      %3959 = vrot.lane.b32.xlu0 %v2526, 64
      %v3960 = vpop.permute.xlu0 %3959
      %3961 = vrot.lane.b32.xlu0 %v2527, 64
      %v3962 = vpop.permute.xlu0 %3961
      %3963 = vrot.lane.b32.xlu0 %v2528, 64
      %v3964 = vpop.permute.xlu0 %3963
      %3965 = vrot.lane.b32.xlu0 %v2529, 64
      %v3966 = vpop.permute.xlu0 %3965
      %3967 = vrot.lane.b32.xlu0 %v2530, 64
      %v3968 = vpop.permute.xlu0 %3967
      %3969 = vrot.lane.b32.xlu0 %v2531, 64
      %v3970 = vpop.permute.xlu0 %3969
      %3971 = vrot.lane.b32.xlu0 %v2532, 64
      %v3972 = vpop.permute.xlu0 %3971
      %3973 = vrot.lane.b32.xlu0 %v2533, 64
      %v3974 = vpop.permute.xlu0 %3973
      %3975 = vrot.lane.b32.xlu0 %v2534, 64
      %v3976 = vpop.permute.xlu0 %3975
      %3977 = vrot.lane.b32.xlu0 %v2535, 64
      %v3978 = vpop.permute.xlu0 %3977
      %3979 = vrot.lane.b32.xlu0 %v2536, 64
      %v3980 = vpop.permute.xlu0 %3979
      %3981 = vrot.lane.b32.xlu0 %v2537, 64
      %v3982 = vpop.permute.xlu0 %3981
      %3983 = vrot.lane.b32.xlu0 %v2538, 64
      %v3984 = vpop.permute.xlu0 %3983
      %3985 = vrot.lane.b32.xlu0 %v2539, 64
      %v3986 = vpop.permute.xlu0 %3985
      %3987 = vrot.lane.b32.xlu0 %v2540, 64
      %v3988 = vpop.permute.xlu0 %3987
      %3989 = vrot.lane.b32.xlu0 %v2541, 64
      %v3990 = vpop.permute.xlu0 %3989
      %3991 = vrot.lane.b32.xlu0 %v2542, 64
      %v3992 = vpop.permute.xlu0 %3991
      %3993 = vrot.lane.b32.xlu0 %v2543, 64
      %v3994 = vpop.permute.xlu0 %3993
      %3995 = vrot.lane.b32.xlu0 %v2544, 64
      %v3996 = vpop.permute.xlu0 %3995
      %3997 = vrot.lane.b32.xlu0 %v2545, 64
      %v3998 = vpop.permute.xlu0 %3997
      %3999 = vrot.lane.b32.xlu0 %v2546, 64
      %v4000 = vpop.permute.xlu0 %3999
      %4001 = vrot.lane.b32.xlu0 %v2547, 64
      %v4002 = vpop.permute.xlu0 %4001
      %4003 = vrot.lane.b32.xlu0 %v2548, 64
      %v4004 = vpop.permute.xlu0 %4003
      %4005 = vrot.lane.b32.xlu0 %v2549, 64
      %v4006 = vpop.permute.xlu0 %4005
      %4007 = vrot.lane.b32.xlu0 %v2550, 64
      %v4008 = vpop.permute.xlu0 %4007
      %4009 = vrot.lane.b32.xlu0 %v2551, 64
      %v4010 = vpop.permute.xlu0 %4009
      %4011 = vrot.lane.b32.xlu0 %v2552, 64
      %v4012 = vpop.permute.xlu0 %4011
      %4013 = vrot.lane.b32.xlu0 %v2553, 64
      %v4014 = vpop.permute.xlu0 %4013
      %4015 = vrot.lane.b32.xlu0 %v2554, 64
      %v4016 = vpop.permute.xlu0 %4015
      %4017 = vrot.lane.b32.xlu0 %v2555, 64
      %v4018 = vpop.permute.xlu0 %4017
      %4019 = vrot.lane.b32.xlu0 %v2556, 64
      %v4020 = vpop.permute.xlu0 %4019
      %4021 = vrot.lane.b32.xlu0 %v2557, 64
      %v4022 = vpop.permute.xlu0 %4021
      %4023 = vrot.lane.b32.xlu0 %v2558, 64
      %v4024 = vpop.permute.xlu0 %4023
      %4025 = vrot.lane.b32.xlu0 %v2559, 64
      %v4026 = vpop.permute.xlu0 %4025
      %4027 = vrot.lane.b32.xlu0 %v2560, 64
      %v4028 = vpop.permute.xlu0 %4027
      %4029 = vrot.lane.b32.xlu0 %v2561, 64
      %v4030 = vpop.permute.xlu0 %4029
      %4031 = vrot.lane.b32.xlu0 %v2562, 64
      %v4032 = vpop.permute.xlu0 %4031
      %4033 = vrot.lane.b32.xlu0 %v2563, 64
      %v4034 = vpop.permute.xlu0 %4033
      %4035 = vrot.lane.b32.xlu0 %v2564, 64
      %v4036 = vpop.permute.xlu0 %4035
      %4037 = vrot.lane.b32.xlu0 %v2565, 64
      %v4038 = vpop.permute.xlu0 %4037
      %4039 = vrot.lane.b32.xlu0 %v2566, 64
      %v4040 = vpop.permute.xlu0 %4039
      %4041 = vrot.lane.b32.xlu0 %v2567, 64
      %v4042 = vpop.permute.xlu0 %4041
      %4043 = vrot.lane.b32.xlu0 %v2568, 64
      %v4044 = vpop.permute.xlu0 %4043
      %4045 = vrot.lane.b32.xlu0 %v2569, 64
      %v4046 = vpop.permute.xlu0 %4045
      %4047 = vrot.lane.b32.xlu0 %v2570, 64
      %v4048 = vpop.permute.xlu0 %4047
      %4049 = vrot.lane.b32.xlu0 %v2571, 64
      %v4050 = vpop.permute.xlu0 %4049
      %4051 = vrot.lane.b32.xlu0 %v2572, 64
      %v4052 = vpop.permute.xlu0 %4051
      %4053 = vrot.lane.b32.xlu0 %v2573, 64
      %v4054 = vpop.permute.xlu0 %4053
      %4055 = vrot.lane.b32.xlu0 %v2574, 64
      %v4056 = vpop.permute.xlu0 %4055
      %4057 = vrot.lane.b32.xlu0 %v2575, 64
      %v4058 = vpop.permute.xlu0 %4057
      %4059 = vrot.lane.b32.xlu0 %v2576, 64
      %v4060 = vpop.permute.xlu0 %4059
      %4061 = vrot.lane.b32.xlu0 %v2577, 64
      %v4062 = vpop.permute.xlu0 %4061
      %4063 = vrot.lane.b32.xlu0 %v2578, 64
      %v4064 = vpop.permute.xlu0 %4063
      %4065 = vrot.lane.b32.xlu0 %v2579, 64
      %v4066 = vpop.permute.xlu0 %4065
      %4067 = vrot.lane.b32.xlu0 %v2580, 64
      %v4068 = vpop.permute.xlu0 %4067
      %4069 = vrot.lane.b32.xlu0 %v2581, 64
      %v4070 = vpop.permute.xlu0 %4069
      %4071 = vrot.lane.b32.xlu0 %v2582, 64
      %v4072 = vpop.permute.xlu0 %4071
      %4073 = vrot.lane.b32.xlu0 %v2583, 64
      %v4074 = vpop.permute.xlu0 %4073
      %4075 = vrot.lane.b32.xlu0 %v2584, 64
      %v4076 = vpop.permute.xlu0 %4075
      %4077 = vrot.lane.b32.xlu0 %v2585, 64
      %v4078 = vpop.permute.xlu0 %4077
      %4079 = vrot.lane.b32.xlu0 %v2586, 64
      %v4080 = vpop.permute.xlu0 %4079
      %4081 = vrot.lane.b32.xlu0 %v2587, 64
      %v4082 = vpop.permute.xlu0 %4081
      %4083 = vrot.lane.b32.xlu0 %v2588, 64
      %v4084 = vpop.permute.xlu0 %4083
      %4085 = vrot.lane.b32.xlu0 %v2589, 64
      %v4086 = vpop.permute.xlu0 %4085
      %4087 = vrot.lane.b32.xlu0 %v2590, 64
      %v4088 = vpop.permute.xlu0 %4087
      %4089 = vrot.lane.b32.xlu0 %v2591, 64
      %v4090 = vpop.permute.xlu0 %4089
      %4091 = vrot.lane.b32.xlu0 %v2592, 64
      %v4092 = vpop.permute.xlu0 %4091
      %4093 = vrot.lane.b32.xlu0 %v2593, 64
      %v4094 = vpop.permute.xlu0 %4093
      %4095 = vrot.lane.b32.xlu0 %v2594, 64
      %v4096 = vpop.permute.xlu0 %4095
      %4097 = vrot.lane.b32.xlu0 %v2595, 64
      %v4098 = vpop.permute.xlu0 %4097
      %4099 = vrot.lane.b32.xlu0 %v2596, 64
      %v4100 = vpop.permute.xlu0 %4099
      %4101 = vrot.lane.b32.xlu0 %v2597, 64
      %v4102 = vpop.permute.xlu0 %4101
      %4103 = vrot.lane.b32.xlu0 %v2598, 64
      %v4104 = vpop.permute.xlu0 %4103
      %4105 = vrot.lane.b32.xlu0 %v2599, 64
      %v4106 = vpop.permute.xlu0 %4105
      %4107 = vrot.lane.b32.xlu0 %v2600, 64
      %v4108 = vpop.permute.xlu0 %4107
      %4109 = vrot.lane.b32.xlu0 %v2601, 64
      %v4110 = vpop.permute.xlu0 %4109
      %4111 = vrot.lane.b32.xlu0 %v2602, 64
      %v4112 = vpop.permute.xlu0 %4111
      %4113 = vrot.lane.b32.xlu0 %v2603, 64
      %v4114 = vpop.permute.xlu0 %4113
      %4115 = vrot.lane.b32.xlu0 %v2604, 64
      %v4116 = vpop.permute.xlu0 %4115
      %4117 = vrot.lane.b32.xlu0 %v2605, 64
      %v4118 = vpop.permute.xlu0 %4117
      %4119 = vrot.lane.b32.xlu0 %v2606, 64
      %v4120 = vpop.permute.xlu0 %4119
      %4121 = vrot.lane.b32.xlu0 %v2607, 64
      %v4122 = vpop.permute.xlu0 %4121
      %4123 = vrot.lane.b32.xlu0 %v2608, 64
      %v4124 = vpop.permute.xlu0 %4123
      %4125 = vrot.lane.b32.xlu0 %v2609, 64
      %v4126 = vpop.permute.xlu0 %4125
      %4127 = vrot.lane.b32.xlu0 %v2610, 64
      %v4128 = vpop.permute.xlu0 %4127
      %4129 = vrot.lane.b32.xlu0 %v2611, 64
      %v4130 = vpop.permute.xlu0 %4129
      %4131 = vrot.lane.b32.xlu0 %v2612, 64
      %v4132 = vpop.permute.xlu0 %4131
      %4133 = vrot.lane.b32.xlu0 %v2613, 64
      %v4134 = vpop.permute.xlu0 %4133
      %4135 = vrot.lane.b32.xlu0 %v2614, 64
      %v4136 = vpop.permute.xlu0 %4135
      %4137 = vrot.lane.b32.xlu0 %v2615, 64
      %v4138 = vpop.permute.xlu0 %4137
      %4139 = vrot.lane.b32.xlu0 %v2616, 64
      %v4140 = vpop.permute.xlu0 %4139
      %4141 = vrot.lane.b32.xlu0 %v2617, 64
      %v4142 = vpop.permute.xlu0 %4141
      %4143 = vrot.lane.b32.xlu0 %v2618, 64
      %v4144 = vpop.permute.xlu0 %4143
      %4145 = vrot.lane.b32.xlu0 %v2619, 64
      %v4146 = vpop.permute.xlu0 %4145
      %4147 = vrot.lane.b32.xlu0 %v2620, 64
      %v4148 = vpop.permute.xlu0 %4147
      %4149 = vrot.lane.b32.xlu0 %v2621, 64
      %v4150 = vpop.permute.xlu0 %4149
      %4151 = vrot.lane.b32.xlu0 %v2622, 64
      %v4152 = vpop.permute.xlu0 %4151
      %4153 = vrot.lane.b32.xlu0 %v2623, 64
      %v4154 = vpop.permute.xlu0 %4153
      %4155 = vrot.lane.b32.xlu0 %v2624, 64
      %v4156 = vpop.permute.xlu0 %4155
      %4157 = vrot.lane.b32.xlu0 %v2625, 64
      %v4158 = vpop.permute.xlu0 %4157
      %4159 = vrot.lane.b32.xlu0 %v2626, 64
      %v4160 = vpop.permute.xlu0 %4159
      %4161 = vrot.lane.b32.xlu0 %v2627, 64
      %v4162 = vpop.permute.xlu0 %4161
      %4163 = vrot.lane.b32.xlu0 %v2628, 64
      %v4164 = vpop.permute.xlu0 %4163
      %4421 = vrot.lane.b32.xlu0 %v3141, 96
      %v4422 = vpop.permute.xlu0 %4421
      %4423 = vrot.lane.b32.xlu0 %v3142, 96
      %v4424 = vpop.permute.xlu0 %4423
      %4425 = vrot.lane.b32.xlu0 %v3143, 96
      %v4426 = vpop.permute.xlu0 %4425
      %4427 = vrot.lane.b32.xlu0 %v3144, 96
      %v4428 = vpop.permute.xlu0 %4427
      %4429 = vrot.lane.b32.xlu0 %v3145, 96
      %v4430 = vpop.permute.xlu0 %4429
      %4431 = vrot.lane.b32.xlu0 %v3146, 96
      %v4432 = vpop.permute.xlu0 %4431
      %4433 = vrot.lane.b32.xlu0 %v3147, 96
      %v4434 = vpop.permute.xlu0 %4433
      %4435 = vrot.lane.b32.xlu0 %v3148, 96
      %v4436 = vpop.permute.xlu0 %4435
      %4437 = vrot.lane.b32.xlu0 %v3149, 96
      %v4438 = vpop.permute.xlu0 %4437
      %4439 = vrot.lane.b32.xlu0 %v3150, 96
      %v4440 = vpop.permute.xlu0 %4439
      %4441 = vrot.lane.b32.xlu0 %v3151, 96
      %v4442 = vpop.permute.xlu0 %4441
      %4443 = vrot.lane.b32.xlu0 %v3152, 96
      %v4444 = vpop.permute.xlu0 %4443
      %4445 = vrot.lane.b32.xlu0 %v3153, 96
      %v4446 = vpop.permute.xlu0 %4445
      %4447 = vrot.lane.b32.xlu0 %v3154, 96
      %v4448 = vpop.permute.xlu0 %4447
      %4449 = vrot.lane.b32.xlu0 %v3155, 96
      %v4450 = vpop.permute.xlu0 %4449
      %4451 = vrot.lane.b32.xlu0 %v3156, 96
      %v4452 = vpop.permute.xlu0 %4451
      %4453 = vrot.lane.b32.xlu0 %v3157, 96
      %v4454 = vpop.permute.xlu0 %4453
      %4455 = vrot.lane.b32.xlu0 %v3158, 96
      %v4456 = vpop.permute.xlu0 %4455
      %4457 = vrot.lane.b32.xlu0 %v3159, 96
      %v4458 = vpop.permute.xlu0 %4457
      %4459 = vrot.lane.b32.xlu0 %v3160, 96
      %v4460 = vpop.permute.xlu0 %4459
      %4461 = vrot.lane.b32.xlu0 %v3161, 96
      %v4462 = vpop.permute.xlu0 %4461
      %4463 = vrot.lane.b32.xlu0 %v3162, 96
      %v4464 = vpop.permute.xlu0 %4463
      %4465 = vrot.lane.b32.xlu0 %v3163, 96
      %v4466 = vpop.permute.xlu0 %4465
      %4467 = vrot.lane.b32.xlu0 %v3164, 96
      %v4468 = vpop.permute.xlu0 %4467
      %4469 = vrot.lane.b32.xlu0 %v3165, 96
      %v4470 = vpop.permute.xlu0 %4469
      %4471 = vrot.lane.b32.xlu0 %v3166, 96
      %v4472 = vpop.permute.xlu0 %4471
      %4473 = vrot.lane.b32.xlu0 %v3167, 96
      %v4474 = vpop.permute.xlu0 %4473
      %4475 = vrot.lane.b32.xlu0 %v3168, 96
      %v4476 = vpop.permute.xlu0 %4475
      %4477 = vrot.lane.b32.xlu0 %v3169, 96
      %v4478 = vpop.permute.xlu0 %4477
      %4479 = vrot.lane.b32.xlu0 %v3170, 96
      %v4480 = vpop.permute.xlu0 %4479
      %4481 = vrot.lane.b32.xlu0 %v3171, 96
      %v4482 = vpop.permute.xlu0 %4481
      %4483 = vrot.lane.b32.xlu0 %v3172, 96
      %v4484 = vpop.permute.xlu0 %4483
      %4485 = vrot.lane.b32.xlu0 %v3173, 96
      %v4486 = vpop.permute.xlu0 %4485
      %4487 = vrot.lane.b32.xlu0 %v3174, 96
      %v4488 = vpop.permute.xlu0 %4487
      %4489 = vrot.lane.b32.xlu0 %v3175, 96
      %v4490 = vpop.permute.xlu0 %4489
      %4491 = vrot.lane.b32.xlu0 %v3176, 96
      %v4492 = vpop.permute.xlu0 %4491
      %4493 = vrot.lane.b32.xlu0 %v3177, 96
      %v4494 = vpop.permute.xlu0 %4493
      %4495 = vrot.lane.b32.xlu0 %v3178, 96
      %v4496 = vpop.permute.xlu0 %4495
      %4497 = vrot.lane.b32.xlu0 %v3179, 96
      %v4498 = vpop.permute.xlu0 %4497
      %4499 = vrot.lane.b32.xlu0 %v3180, 96
      %v4500 = vpop.permute.xlu0 %4499
      %4501 = vrot.lane.b32.xlu0 %v3181, 96
      %v4502 = vpop.permute.xlu0 %4501
      %4503 = vrot.lane.b32.xlu0 %v3182, 96
      %v4504 = vpop.permute.xlu0 %4503
      %4505 = vrot.lane.b32.xlu0 %v3183, 96
      %v4506 = vpop.permute.xlu0 %4505
      %4507 = vrot.lane.b32.xlu0 %v3184, 96
      %v4508 = vpop.permute.xlu0 %4507
      %4509 = vrot.lane.b32.xlu0 %v3185, 96
      %v4510 = vpop.permute.xlu0 %4509
      %4511 = vrot.lane.b32.xlu0 %v3186, 96
      %v4512 = vpop.permute.xlu0 %4511
      %4513 = vrot.lane.b32.xlu0 %v3187, 96
      %v4514 = vpop.permute.xlu0 %4513
      %4515 = vrot.lane.b32.xlu0 %v3188, 96
      %v4516 = vpop.permute.xlu0 %4515
      %4517 = vrot.lane.b32.xlu0 %v3189, 96
      %v4518 = vpop.permute.xlu0 %4517
      %4519 = vrot.lane.b32.xlu0 %v3190, 96
      %v4520 = vpop.permute.xlu0 %4519
      %4521 = vrot.lane.b32.xlu0 %v3191, 96
      %v4522 = vpop.permute.xlu0 %4521
      %4523 = vrot.lane.b32.xlu0 %v3192, 96
      %v4524 = vpop.permute.xlu0 %4523
      %4525 = vrot.lane.b32.xlu0 %v3193, 96
      %v4526 = vpop.permute.xlu0 %4525
      %4527 = vrot.lane.b32.xlu0 %v3194, 96
      %v4528 = vpop.permute.xlu0 %4527
      %4529 = vrot.lane.b32.xlu0 %v3195, 96
      %v4530 = vpop.permute.xlu0 %4529
      %4531 = vrot.lane.b32.xlu0 %v3196, 96
      %v4532 = vpop.permute.xlu0 %4531
      %4533 = vrot.lane.b32.xlu0 %v3197, 96
      %v4534 = vpop.permute.xlu0 %4533
      %4535 = vrot.lane.b32.xlu0 %v3198, 96
      %v4536 = vpop.permute.xlu0 %4535
      %4537 = vrot.lane.b32.xlu0 %v3199, 96
      %v4538 = vpop.permute.xlu0 %4537
      %4539 = vrot.lane.b32.xlu0 %v3200, 96
      %v4540 = vpop.permute.xlu0 %4539
      %4541 = vrot.lane.b32.xlu0 %v3201, 96
      %v4542 = vpop.permute.xlu0 %4541
      %4543 = vrot.lane.b32.xlu0 %v3202, 96
      %v4544 = vpop.permute.xlu0 %4543
      %4545 = vrot.lane.b32.xlu0 %v3203, 96
      %v4546 = vpop.permute.xlu0 %4545
      %4547 = vrot.lane.b32.xlu0 %v3204, 96
      %v4548 = vpop.permute.xlu0 %4547
      %4549 = vrot.lane.b32.xlu0 %v3205, 96
      %v4550 = vpop.permute.xlu0 %4549
      %4551 = vrot.lane.b32.xlu0 %v3206, 96
      %v4552 = vpop.permute.xlu0 %4551
      %4553 = vrot.lane.b32.xlu0 %v3207, 96
      %v4554 = vpop.permute.xlu0 %4553
      %4555 = vrot.lane.b32.xlu0 %v3208, 96
      %v4556 = vpop.permute.xlu0 %4555
      %4557 = vrot.lane.b32.xlu0 %v3209, 96
      %v4558 = vpop.permute.xlu0 %4557
      %4559 = vrot.lane.b32.xlu0 %v3210, 96
      %v4560 = vpop.permute.xlu0 %4559
      %4561 = vrot.lane.b32.xlu0 %v3211, 96
      %v4562 = vpop.permute.xlu0 %4561
      %4563 = vrot.lane.b32.xlu0 %v3212, 96
      %v4564 = vpop.permute.xlu0 %4563
      %4565 = vrot.lane.b32.xlu0 %v3213, 96
      %v4566 = vpop.permute.xlu0 %4565
      %4567 = vrot.lane.b32.xlu0 %v3214, 96
      %v4568 = vpop.permute.xlu0 %4567
      %4569 = vrot.lane.b32.xlu0 %v3215, 96
      %v4570 = vpop.permute.xlu0 %4569
      %4571 = vrot.lane.b32.xlu0 %v3216, 96
      %v4572 = vpop.permute.xlu0 %4571
      %4573 = vrot.lane.b32.xlu0 %v3217, 96
      %v4574 = vpop.permute.xlu0 %4573
      %4575 = vrot.lane.b32.xlu0 %v3218, 96
      %v4576 = vpop.permute.xlu0 %4575
      %4577 = vrot.lane.b32.xlu0 %v3219, 96
      %v4578 = vpop.permute.xlu0 %4577
      %4579 = vrot.lane.b32.xlu0 %v3220, 96
      %v4580 = vpop.permute.xlu0 %4579
      %4581 = vrot.lane.b32.xlu0 %v3221, 96
      %v4582 = vpop.permute.xlu0 %4581
      %4583 = vrot.lane.b32.xlu0 %v3222, 96
      %v4584 = vpop.permute.xlu0 %4583
      %4585 = vrot.lane.b32.xlu0 %v3223, 96
      %v4586 = vpop.permute.xlu0 %4585
      %4587 = vrot.lane.b32.xlu0 %v3224, 96
      %v4588 = vpop.permute.xlu0 %4587
      %4589 = vrot.lane.b32.xlu0 %v3225, 96
      %v4590 = vpop.permute.xlu0 %4589
      %4591 = vrot.lane.b32.xlu0 %v3226, 96
      %v4592 = vpop.permute.xlu0 %4591
      %4593 = vrot.lane.b32.xlu0 %v3227, 96
      %v4594 = vpop.permute.xlu0 %4593
      %4595 = vrot.lane.b32.xlu0 %v3228, 96
      %v4596 = vpop.permute.xlu0 %4595
      %4597 = vrot.lane.b32.xlu0 %v3229, 96
      %v4598 = vpop.permute.xlu0 %4597
      %4599 = vrot.lane.b32.xlu0 %v3230, 96
      %v4600 = vpop.permute.xlu0 %4599
      %4601 = vrot.lane.b32.xlu0 %v3231, 96
      %v4602 = vpop.permute.xlu0 %4601
      %4603 = vrot.lane.b32.xlu0 %v3232, 96
      %v4604 = vpop.permute.xlu0 %4603
      %4605 = vrot.lane.b32.xlu0 %v3233, 96
      %v4606 = vpop.permute.xlu0 %4605
      %4607 = vrot.lane.b32.xlu0 %v3234, 96
      %v4608 = vpop.permute.xlu0 %4607
      %4609 = vrot.lane.b32.xlu0 %v3235, 96
      %v4610 = vpop.permute.xlu0 %4609
      %4611 = vrot.lane.b32.xlu0 %v3236, 96
      %v4612 = vpop.permute.xlu0 %4611
      %4613 = vrot.lane.b32.xlu0 %v3237, 96
      %v4614 = vpop.permute.xlu0 %4613
      %4615 = vrot.lane.b32.xlu0 %v3238, 96
      %v4616 = vpop.permute.xlu0 %4615
      %4617 = vrot.lane.b32.xlu0 %v3239, 96
      %v4618 = vpop.permute.xlu0 %4617
      %4619 = vrot.lane.b32.xlu0 %v3240, 96
      %v4620 = vpop.permute.xlu0 %4619
      %4621 = vrot.lane.b32.xlu0 %v3241, 96
      %v4622 = vpop.permute.xlu0 %4621
      %4623 = vrot.lane.b32.xlu0 %v3242, 96
      %v4624 = vpop.permute.xlu0 %4623
      %4625 = vrot.lane.b32.xlu0 %v3243, 96
      %v4626 = vpop.permute.xlu0 %4625
      %4627 = vrot.lane.b32.xlu0 %v3244, 96
      %v4628 = vpop.permute.xlu0 %4627
      %4629 = vrot.lane.b32.xlu0 %v3245, 96
      %v4630 = vpop.permute.xlu0 %4629
      %4631 = vrot.lane.b32.xlu0 %v3246, 96
      %v4632 = vpop.permute.xlu0 %4631
      %4633 = vrot.lane.b32.xlu0 %v3247, 96
      %v4634 = vpop.permute.xlu0 %4633
      %4635 = vrot.lane.b32.xlu0 %v3248, 96
      %v4636 = vpop.permute.xlu0 %4635
      %4637 = vrot.lane.b32.xlu0 %v3249, 96
      %v4638 = vpop.permute.xlu0 %4637
      %4639 = vrot.lane.b32.xlu0 %v3250, 96
      %v4640 = vpop.permute.xlu0 %4639
      %4641 = vrot.lane.b32.xlu0 %v3251, 96
      %v4642 = vpop.permute.xlu0 %4641
      %4643 = vrot.lane.b32.xlu0 %v3252, 96
      %v4644 = vpop.permute.xlu0 %4643
      %4645 = vrot.lane.b32.xlu0 %v3253, 96
      %v4646 = vpop.permute.xlu0 %4645
      %4647 = vrot.lane.b32.xlu0 %v3254, 96
      %v4648 = vpop.permute.xlu0 %4647
      %4649 = vrot.lane.b32.xlu0 %v3255, 96
      %v4650 = vpop.permute.xlu0 %4649
      %4651 = vrot.lane.b32.xlu0 %v3256, 96
      %v4652 = vpop.permute.xlu0 %4651
      %4653 = vrot.lane.b32.xlu0 %v3257, 96
      %v4654 = vpop.permute.xlu0 %4653
      %4655 = vrot.lane.b32.xlu0 %v3258, 96
      %v4656 = vpop.permute.xlu0 %4655
      %4657 = vrot.lane.b32.xlu0 %v3259, 96
      %v4658 = vpop.permute.xlu0 %4657
      %4659 = vrot.lane.b32.xlu0 %v3260, 96
      %v4660 = vpop.permute.xlu0 %4659
      %4661 = vrot.lane.b32.xlu0 %v3261, 96
      %v4662 = vpop.permute.xlu0 %4661
      %4663 = vrot.lane.b32.xlu0 %v3262, 96
      %v4664 = vpop.permute.xlu0 %4663
      %4665 = vrot.lane.b32.xlu0 %v3263, 96
      %v4666 = vpop.permute.xlu0 %4665
      %4667 = vrot.lane.b32.xlu0 %v3264, 96
      %v4668 = vpop.permute.xlu0 %4667
      %4669 = vrot.lane.b32.xlu0 %v3265, 96
      %v4670 = vpop.permute.xlu0 %4669
      %4671 = vrot.lane.b32.xlu0 %v3266, 96
      %v4672 = vpop.permute.xlu0 %4671
      %4673 = vrot.lane.b32.xlu0 %v3267, 96
      %v4674 = vpop.permute.xlu0 %4673
      %4675 = vrot.lane.b32.xlu0 %v3268, 96
      %v4676 = vpop.permute.xlu0 %4675
      %vm4805 = vcmask 261120
      %v4806 = vsel %vm4805, %v1221, %v3398
      %v4807 = vsel %vm4805, %v1222, %v3400
      %v4808 = vsel %vm4805, %v1223, %v3402
      %v4809 = vsel %vm4805, %v1224, %v3404
      %v4810 = vsel %vm4805, %v1225, %v3406
      %v4811 = vsel %vm4805, %v1226, %v3408
      %v4812 = vsel %vm4805, %v1227, %v3410
      %v4813 = vsel %vm4805, %v1228, %v3412
      %v4814 = vsel %vm4805, %v1229, %v3414
      %v4815 = vsel %vm4805, %v1230, %v3416
      %v4816 = vsel %vm4805, %v1231, %v3418
      %v4817 = vsel %vm4805, %v1232, %v3420
      %v4818 = vsel %vm4805, %v1233, %v3422
      %v4819 = vsel %vm4805, %v1234, %v3424
      %v4820 = vsel %vm4805, %v1235, %v3426
      %v4821 = vsel %vm4805, %v1236, %v3428
      %v4822 = vsel %vm4805, %v1237, %v3430
      %v4823 = vsel %vm4805, %v1238, %v3432
      %v4824 = vsel %vm4805, %v1239, %v3434
      %v4825 = vsel %vm4805, %v1240, %v3436
      %v4826 = vsel %vm4805, %v1241, %v3438
      %v4827 = vsel %vm4805, %v1242, %v3440
      %v4828 = vsel %vm4805, %v1243, %v3442
      %v4829 = vsel %vm4805, %v1244, %v3444
      %v4830 = vsel %vm4805, %v1245, %v3446
      %v4831 = vsel %vm4805, %v1246, %v3448
      %v4832 = vsel %vm4805, %v1247, %v3450
      %v4833 = vsel %vm4805, %v1248, %v3452
      %v4834 = vsel %vm4805, %v1249, %v3454
      %v4835 = vsel %vm4805, %v1250, %v3456
      %v4836 = vsel %vm4805, %v1251, %v3458
      %v4837 = vsel %vm4805, %v1252, %v3460
      %v4838 = vsel %vm4805, %v1253, %v3462
      %v4839 = vsel %vm4805, %v1254, %v3464
      %v4840 = vsel %vm4805, %v1255, %v3466
      %v4841 = vsel %vm4805, %v1256, %v3468
      %v4842 = vsel %vm4805, %v1257, %v3470
      %v4843 = vsel %vm4805, %v1258, %v3472
      %v4844 = vsel %vm4805, %v1259, %v3474
      %v4845 = vsel %vm4805, %v1260, %v3476
      %v4846 = vsel %vm4805, %v1261, %v3478
      %v4847 = vsel %vm4805, %v1262, %v3480
      %v4848 = vsel %vm4805, %v1263, %v3482
      %v4849 = vsel %vm4805, %v1264, %v3484
      %v4850 = vsel %vm4805, %v1265, %v3486
      %v4851 = vsel %vm4805, %v1266, %v3488
      %v4852 = vsel %vm4805, %v1267, %v3490
      %v4853 = vsel %vm4805, %v1268, %v3492
      %v4854 = vsel %vm4805, %v1269, %v3494
      %v4855 = vsel %vm4805, %v1270, %v3496
      %v4856 = vsel %vm4805, %v1271, %v3498
      %v4857 = vsel %vm4805, %v1272, %v3500
      %v4858 = vsel %vm4805, %v1273, %v3502
      %v4859 = vsel %vm4805, %v1274, %v3504
      %v4860 = vsel %vm4805, %v1275, %v3506
      %v4861 = vsel %vm4805, %v1276, %v3508
      %v4862 = vsel %vm4805, %v1277, %v3510
      %v4863 = vsel %vm4805, %v1278, %v3512
      %v4864 = vsel %vm4805, %v1279, %v3514
      %v4865 = vsel %vm4805, %v1280, %v3516
      %v4866 = vsel %vm4805, %v1281, %v3518
      %v4867 = vsel %vm4805, %v1282, %v3520
      %v4868 = vsel %vm4805, %v1283, %v3522
      %v4869 = vsel %vm4805, %v1284, %v3524
      %v4870 = vsel %vm4805, %v1285, %v3526
      %v4871 = vsel %vm4805, %v1286, %v3528
      %v4872 = vsel %vm4805, %v1287, %v3530
      %v4873 = vsel %vm4805, %v1288, %v3532
      %v4874 = vsel %vm4805, %v1289, %v3534
      %v4875 = vsel %vm4805, %v1290, %v3536
      %v4876 = vsel %vm4805, %v1291, %v3538
      %v4877 = vsel %vm4805, %v1292, %v3540
      %v4878 = vsel %vm4805, %v1293, %v3542
      %v4879 = vsel %vm4805, %v1294, %v3544
      %v4880 = vsel %vm4805, %v1295, %v3546
      %v4881 = vsel %vm4805, %v1296, %v3548
      %v4882 = vsel %vm4805, %v1297, %v3550
      %v4883 = vsel %vm4805, %v1298, %v3552
      %v4884 = vsel %vm4805, %v1299, %v3554
      %v4885 = vsel %vm4805, %v1300, %v3556
      %v4886 = vsel %vm4805, %v1301, %v3558
      %v4887 = vsel %vm4805, %v1302, %v3560
      %v4888 = vsel %vm4805, %v1303, %v3562
      %v4889 = vsel %vm4805, %v1304, %v3564
      %v4890 = vsel %vm4805, %v1305, %v3566
      %v4891 = vsel %vm4805, %v1306, %v3568
      %v4892 = vsel %vm4805, %v1307, %v3570
      %v4893 = vsel %vm4805, %v1308, %v3572
      %v4894 = vsel %vm4805, %v1309, %v3574
      %v4895 = vsel %vm4805, %v1310, %v3576
      %v4896 = vsel %vm4805, %v1311, %v3578
      %v4897 = vsel %vm4805, %v1312, %v3580
      %v4898 = vsel %vm4805, %v1313, %v3582
      %v4899 = vsel %vm4805, %v1314, %v3584
      %v4900 = vsel %vm4805, %v1315, %v3586
      %v4901 = vsel %vm4805, %v1316, %v3588
      %v4902 = vsel %vm4805, %v1317, %v3590
      %v4903 = vsel %vm4805, %v1318, %v3592
      %v4904 = vsel %vm4805, %v1319, %v3594
      %v4905 = vsel %vm4805, %v1320, %v3596
      %v4906 = vsel %vm4805, %v1321, %v3598
      %v4907 = vsel %vm4805, %v1322, %v3600
      %v4908 = vsel %vm4805, %v1323, %v3602
      %v4909 = vsel %vm4805, %v1324, %v3604
      %v4910 = vsel %vm4805, %v1325, %v3606
      %v4911 = vsel %vm4805, %v1326, %v3608
      %v4912 = vsel %vm4805, %v1327, %v3610
      %v4913 = vsel %vm4805, %v1328, %v3612
      %v4914 = vsel %vm4805, %v1329, %v3614
      %v4915 = vsel %vm4805, %v1330, %v3616
      %v4916 = vsel %vm4805, %v1331, %v3618
      %v4917 = vsel %vm4805, %v1332, %v3620
      %v4918 = vsel %vm4805, %v1333, %v3622
      %v4919 = vsel %vm4805, %v1334, %v3624
      %v4920 = vsel %vm4805, %v1335, %v3626
      %v4921 = vsel %vm4805, %v1336, %v3628
      %v4922 = vsel %vm4805, %v1337, %v3630
      %v4923 = vsel %vm4805, %v1338, %v3632
      %v4924 = vsel %vm4805, %v1339, %v3634
      %v4925 = vsel %vm4805, %v1340, %v3636
      %v4926 = vsel %vm4805, %v1341, %v3638
      %v4927 = vsel %vm4805, %v1342, %v3640
      %v4928 = vsel %vm4805, %v1343, %v3642
      %v4929 = vsel %vm4805, %v1344, %v3644
      %v4930 = vsel %vm4805, %v1345, %v3646
      %v4931 = vsel %vm4805, %v1346, %v3648
      %v4932 = vsel %vm4805, %v1347, %v3650
      %v4933 = vsel %vm4805, %v1348, %v3652
      %vm4934 = vcmask 523264
      %v4935 = vsel %vm4934, %v4806, %v3910
      %v4936 = vsel %vm4934, %v4807, %v3912
      %v4937 = vsel %vm4934, %v4808, %v3914
      %v4938 = vsel %vm4934, %v4809, %v3916
      %v4939 = vsel %vm4934, %v4810, %v3918
      %v4940 = vsel %vm4934, %v4811, %v3920
      %v4941 = vsel %vm4934, %v4812, %v3922
      %v4942 = vsel %vm4934, %v4813, %v3924
      %v4943 = vsel %vm4934, %v4814, %v3926
      %v4944 = vsel %vm4934, %v4815, %v3928
      %v4945 = vsel %vm4934, %v4816, %v3930
      %v4946 = vsel %vm4934, %v4817, %v3932
      %v4947 = vsel %vm4934, %v4818, %v3934
      %v4948 = vsel %vm4934, %v4819, %v3936
      %v4949 = vsel %vm4934, %v4820, %v3938
      %v4950 = vsel %vm4934, %v4821, %v3940
      %v4951 = vsel %vm4934, %v4822, %v3942
      %v4952 = vsel %vm4934, %v4823, %v3944
      %v4953 = vsel %vm4934, %v4824, %v3946
      %v4954 = vsel %vm4934, %v4825, %v3948
      %v4955 = vsel %vm4934, %v4826, %v3950
      %v4956 = vsel %vm4934, %v4827, %v3952
      %v4957 = vsel %vm4934, %v4828, %v3954
      %v4958 = vsel %vm4934, %v4829, %v3956
      %v4959 = vsel %vm4934, %v4830, %v3958
      %v4960 = vsel %vm4934, %v4831, %v3960
      %v4961 = vsel %vm4934, %v4832, %v3962
      %v4962 = vsel %vm4934, %v4833, %v3964
      %v4963 = vsel %vm4934, %v4834, %v3966
      %v4964 = vsel %vm4934, %v4835, %v3968
      %v4965 = vsel %vm4934, %v4836, %v3970
      %v4966 = vsel %vm4934, %v4837, %v3972
      %v4967 = vsel %vm4934, %v4838, %v3974
      %v4968 = vsel %vm4934, %v4839, %v3976
      %v4969 = vsel %vm4934, %v4840, %v3978
      %v4970 = vsel %vm4934, %v4841, %v3980
      %v4971 = vsel %vm4934, %v4842, %v3982
      %v4972 = vsel %vm4934, %v4843, %v3984
      %v4973 = vsel %vm4934, %v4844, %v3986
      %v4974 = vsel %vm4934, %v4845, %v3988
      %v4975 = vsel %vm4934, %v4846, %v3990
      %v4976 = vsel %vm4934, %v4847, %v3992
      %v4977 = vsel %vm4934, %v4848, %v3994
      %v4978 = vsel %vm4934, %v4849, %v3996
      %v4979 = vsel %vm4934, %v4850, %v3998
      %v4980 = vsel %vm4934, %v4851, %v4000
      %v4981 = vsel %vm4934, %v4852, %v4002
      %v4982 = vsel %vm4934, %v4853, %v4004
      %v4983 = vsel %vm4934, %v4854, %v4006
      %v4984 = vsel %vm4934, %v4855, %v4008
      %v4985 = vsel %vm4934, %v4856, %v4010
      %v4986 = vsel %vm4934, %v4857, %v4012
      %v4987 = vsel %vm4934, %v4858, %v4014
      %v4988 = vsel %vm4934, %v4859, %v4016
      %v4989 = vsel %vm4934, %v4860, %v4018
      %v4990 = vsel %vm4934, %v4861, %v4020
      %v4991 = vsel %vm4934, %v4862, %v4022
      %v4992 = vsel %vm4934, %v4863, %v4024
      %v4993 = vsel %vm4934, %v4864, %v4026
      %v4994 = vsel %vm4934, %v4865, %v4028
      %v4995 = vsel %vm4934, %v4866, %v4030
      %v4996 = vsel %vm4934, %v4867, %v4032
      %v4997 = vsel %vm4934, %v4868, %v4034
      %v4998 = vsel %vm4934, %v4869, %v4036
      %v4999 = vsel %vm4934, %v4870, %v4038
      %v5000 = vsel %vm4934, %v4871, %v4040
      %v5001 = vsel %vm4934, %v4872, %v4042
      %v5002 = vsel %vm4934, %v4873, %v4044
      %v5003 = vsel %vm4934, %v4874, %v4046
      %v5004 = vsel %vm4934, %v4875, %v4048
      %v5005 = vsel %vm4934, %v4876, %v4050
      %v5006 = vsel %vm4934, %v4877, %v4052
      %v5007 = vsel %vm4934, %v4878, %v4054
      %v5008 = vsel %vm4934, %v4879, %v4056
      %v5009 = vsel %vm4934, %v4880, %v4058
      %v5010 = vsel %vm4934, %v4881, %v4060
      %v5011 = vsel %vm4934, %v4882, %v4062
      %v5012 = vsel %vm4934, %v4883, %v4064
      %v5013 = vsel %vm4934, %v4884, %v4066
      %v5014 = vsel %vm4934, %v4885, %v4068
      %v5015 = vsel %vm4934, %v4886, %v4070
      %v5016 = vsel %vm4934, %v4887, %v4072
      %v5017 = vsel %vm4934, %v4888, %v4074
      %v5018 = vsel %vm4934, %v4889, %v4076
      %v5019 = vsel %vm4934, %v4890, %v4078
      %v5020 = vsel %vm4934, %v4891, %v4080
      %v5021 = vsel %vm4934, %v4892, %v4082
      %v5022 = vsel %vm4934, %v4893, %v4084
      %v5023 = vsel %vm4934, %v4894, %v4086
      %v5024 = vsel %vm4934, %v4895, %v4088
      %v5025 = vsel %vm4934, %v4896, %v4090
      %v5026 = vsel %vm4934, %v4897, %v4092
      %v5027 = vsel %vm4934, %v4898, %v4094
      %v5028 = vsel %vm4934, %v4899, %v4096
      %v5029 = vsel %vm4934, %v4900, %v4098
      %v5030 = vsel %vm4934, %v4901, %v4100
      %v5031 = vsel %vm4934, %v4902, %v4102
      %v5032 = vsel %vm4934, %v4903, %v4104
      %v5033 = vsel %vm4934, %v4904, %v4106
      %v5034 = vsel %vm4934, %v4905, %v4108
      %v5035 = vsel %vm4934, %v4906, %v4110
      %v5036 = vsel %vm4934, %v4907, %v4112
      %v5037 = vsel %vm4934, %v4908, %v4114
      %v5038 = vsel %vm4934, %v4909, %v4116
      %v5039 = vsel %vm4934, %v4910, %v4118
      %v5040 = vsel %vm4934, %v4911, %v4120
      %v5041 = vsel %vm4934, %v4912, %v4122
      %v5042 = vsel %vm4934, %v4913, %v4124
      %v5043 = vsel %vm4934, %v4914, %v4126
      %v5044 = vsel %vm4934, %v4915, %v4128
      %v5045 = vsel %vm4934, %v4916, %v4130
      %v5046 = vsel %vm4934, %v4917, %v4132
      %v5047 = vsel %vm4934, %v4918, %v4134
      %v5048 = vsel %vm4934, %v4919, %v4136
      %v5049 = vsel %vm4934, %v4920, %v4138
      %v5050 = vsel %vm4934, %v4921, %v4140
      %v5051 = vsel %vm4934, %v4922, %v4142
      %v5052 = vsel %vm4934, %v4923, %v4144
      %v5053 = vsel %vm4934, %v4924, %v4146
      %v5054 = vsel %vm4934, %v4925, %v4148
      %v5055 = vsel %vm4934, %v4926, %v4150
      %v5056 = vsel %vm4934, %v4927, %v4152
      %v5057 = vsel %vm4934, %v4928, %v4154
      %v5058 = vsel %vm4934, %v4929, %v4156
      %v5059 = vsel %vm4934, %v4930, %v4158
      %v5060 = vsel %vm4934, %v4931, %v4160
      %v5061 = vsel %vm4934, %v4932, %v4162
      %v5062 = vsel %vm4934, %v4933, %v4164
      %vm5063 = vcmask 785408
      %v5064 = vsel %vm5063, %v4935, %v4422
      %v5065 = vsel %vm5063, %v4936, %v4424
      %v5066 = vsel %vm5063, %v4937, %v4426
      %v5067 = vsel %vm5063, %v4938, %v4428
      %v5068 = vsel %vm5063, %v4939, %v4430
      %v5069 = vsel %vm5063, %v4940, %v4432
      %v5070 = vsel %vm5063, %v4941, %v4434
      %v5071 = vsel %vm5063, %v4942, %v4436
      %v5072 = vsel %vm5063, %v4943, %v4438
      %v5073 = vsel %vm5063, %v4944, %v4440
      %v5074 = vsel %vm5063, %v4945, %v4442
      %v5075 = vsel %vm5063, %v4946, %v4444
      %v5076 = vsel %vm5063, %v4947, %v4446
      %v5077 = vsel %vm5063, %v4948, %v4448
      %v5078 = vsel %vm5063, %v4949, %v4450
      %v5079 = vsel %vm5063, %v4950, %v4452
      %v5080 = vsel %vm5063, %v4951, %v4454
      %v5081 = vsel %vm5063, %v4952, %v4456
      %v5082 = vsel %vm5063, %v4953, %v4458
      %v5083 = vsel %vm5063, %v4954, %v4460
      %v5084 = vsel %vm5063, %v4955, %v4462
      %v5085 = vsel %vm5063, %v4956, %v4464
      %v5086 = vsel %vm5063, %v4957, %v4466
      %v5087 = vsel %vm5063, %v4958, %v4468
      %v5088 = vsel %vm5063, %v4959, %v4470
      %v5089 = vsel %vm5063, %v4960, %v4472
      %v5090 = vsel %vm5063, %v4961, %v4474
      %v5091 = vsel %vm5063, %v4962, %v4476
      %v5092 = vsel %vm5063, %v4963, %v4478
      %v5093 = vsel %vm5063, %v4964, %v4480
      %v5094 = vsel %vm5063, %v4965, %v4482
      %v5095 = vsel %vm5063, %v4966, %v4484
      %v5096 = vsel %vm5063, %v4967, %v4486
      %v5097 = vsel %vm5063, %v4968, %v4488
      %v5098 = vsel %vm5063, %v4969, %v4490
      %v5099 = vsel %vm5063, %v4970, %v4492
      %v5100 = vsel %vm5063, %v4971, %v4494
      %v5101 = vsel %vm5063, %v4972, %v4496
      %v5102 = vsel %vm5063, %v4973, %v4498
      %v5103 = vsel %vm5063, %v4974, %v4500
      %v5104 = vsel %vm5063, %v4975, %v4502
      %v5105 = vsel %vm5063, %v4976, %v4504
      %v5106 = vsel %vm5063, %v4977, %v4506
      %v5107 = vsel %vm5063, %v4978, %v4508
      %v5108 = vsel %vm5063, %v4979, %v4510
      %v5109 = vsel %vm5063, %v4980, %v4512
      %v5110 = vsel %vm5063, %v4981, %v4514
      %v5111 = vsel %vm5063, %v4982, %v4516
      %v5112 = vsel %vm5063, %v4983, %v4518
      %v5113 = vsel %vm5063, %v4984, %v4520
      %v5114 = vsel %vm5063, %v4985, %v4522
      %v5115 = vsel %vm5063, %v4986, %v4524
      %v5116 = vsel %vm5063, %v4987, %v4526
      %v5117 = vsel %vm5063, %v4988, %v4528
      %v5118 = vsel %vm5063, %v4989, %v4530
      %v5119 = vsel %vm5063, %v4990, %v4532
      %v5120 = vsel %vm5063, %v4991, %v4534
      %v5121 = vsel %vm5063, %v4992, %v4536
      %v5122 = vsel %vm5063, %v4993, %v4538
      %v5123 = vsel %vm5063, %v4994, %v4540
      %v5124 = vsel %vm5063, %v4995, %v4542
      %v5125 = vsel %vm5063, %v4996, %v4544
      %v5126 = vsel %vm5063, %v4997, %v4546
      %v5127 = vsel %vm5063, %v4998, %v4548
      %v5128 = vsel %vm5063, %v4999, %v4550
      %v5129 = vsel %vm5063, %v5000, %v4552
      %v5130 = vsel %vm5063, %v5001, %v4554
      %v5131 = vsel %vm5063, %v5002, %v4556
      %v5132 = vsel %vm5063, %v5003, %v4558
      %v5133 = vsel %vm5063, %v5004, %v4560
      %v5134 = vsel %vm5063, %v5005, %v4562
      %v5135 = vsel %vm5063, %v5006, %v4564
      %v5136 = vsel %vm5063, %v5007, %v4566
      %v5137 = vsel %vm5063, %v5008, %v4568
      %v5138 = vsel %vm5063, %v5009, %v4570
      %v5139 = vsel %vm5063, %v5010, %v4572
      %v5140 = vsel %vm5063, %v5011, %v4574
      %v5141 = vsel %vm5063, %v5012, %v4576
      %v5142 = vsel %vm5063, %v5013, %v4578
      %v5143 = vsel %vm5063, %v5014, %v4580
      %v5144 = vsel %vm5063, %v5015, %v4582
      %v5145 = vsel %vm5063, %v5016, %v4584
      %v5146 = vsel %vm5063, %v5017, %v4586
      %v5147 = vsel %vm5063, %v5018, %v4588
      %v5148 = vsel %vm5063, %v5019, %v4590
      %v5149 = vsel %vm5063, %v5020, %v4592
      %v5150 = vsel %vm5063, %v5021, %v4594
      %v5151 = vsel %vm5063, %v5022, %v4596
      %v5152 = vsel %vm5063, %v5023, %v4598
      %v5153 = vsel %vm5063, %v5024, %v4600
      %v5154 = vsel %vm5063, %v5025, %v4602
      %v5155 = vsel %vm5063, %v5026, %v4604
      %v5156 = vsel %vm5063, %v5027, %v4606
      %v5157 = vsel %vm5063, %v5028, %v4608
      %v5158 = vsel %vm5063, %v5029, %v4610
      %v5159 = vsel %vm5063, %v5030, %v4612
      %v5160 = vsel %vm5063, %v5031, %v4614
      %v5161 = vsel %vm5063, %v5032, %v4616
      %v5162 = vsel %vm5063, %v5033, %v4618
      %v5163 = vsel %vm5063, %v5034, %v4620
      %v5164 = vsel %vm5063, %v5035, %v4622
      %v5165 = vsel %vm5063, %v5036, %v4624
      %v5166 = vsel %vm5063, %v5037, %v4626
      %v5167 = vsel %vm5063, %v5038, %v4628
      %v5168 = vsel %vm5063, %v5039, %v4630
      %v5169 = vsel %vm5063, %v5040, %v4632
      %v5170 = vsel %vm5063, %v5041, %v4634
      %v5171 = vsel %vm5063, %v5042, %v4636
      %v5172 = vsel %vm5063, %v5043, %v4638
      %v5173 = vsel %vm5063, %v5044, %v4640
      %v5174 = vsel %vm5063, %v5045, %v4642
      %v5175 = vsel %vm5063, %v5046, %v4644
      %v5176 = vsel %vm5063, %v5047, %v4646
      %v5177 = vsel %vm5063, %v5048, %v4648
      %v5178 = vsel %vm5063, %v5049, %v4650
      %v5179 = vsel %vm5063, %v5050, %v4652
      %v5180 = vsel %vm5063, %v5051, %v4654
      %v5181 = vsel %vm5063, %v5052, %v4656
      %v5182 = vsel %vm5063, %v5053, %v4658
      %v5183 = vsel %vm5063, %v5054, %v4660
      %v5184 = vsel %vm5063, %v5055, %v4662
      %v5185 = vsel %vm5063, %v5056, %v4664
      %v5186 = vsel %vm5063, %v5057, %v4666
      %v5187 = vsel %vm5063, %v5058, %v4668
      %v5188 = vsel %vm5063, %v5059, %v4670
      %v5189 = vsel %vm5063, %v5060, %v4672
      %v5190 = vsel %vm5063, %v5061, %v4674
      %v5191 = vsel %vm5063, %v5062, %v4676
      %v5192 = vpack.c.bf16 %v5065, %v5064
      %v5193 = vpack.c.bf16 %v5067, %v5066
      %v5194 = vpack.c.bf16 %v5069, %v5068
      %v5195 = vpack.c.bf16 %v5071, %v5070
      %v5196 = vpack.c.bf16 %v5073, %v5072
      %v5197 = vpack.c.bf16 %v5075, %v5074
      %v5198 = vpack.c.bf16 %v5077, %v5076
      %v5199 = vpack.c.bf16 %v5079, %v5078
      %v5200 = vpack.c.bf16 %v5081, %v5080
      %v5201 = vpack.c.bf16 %v5083, %v5082
      %v5202 = vpack.c.bf16 %v5085, %v5084
      %v5203 = vpack.c.bf16 %v5087, %v5086
      %v5204 = vpack.c.bf16 %v5089, %v5088
      %v5205 = vpack.c.bf16 %v5091, %v5090
      %v5206 = vpack.c.bf16 %v5093, %v5092
      %v5207 = vpack.c.bf16 %v5095, %v5094
      %v5208 = vpack.c.bf16 %v5097, %v5096
      %v5209 = vpack.c.bf16 %v5099, %v5098
      %v5210 = vpack.c.bf16 %v5101, %v5100
      %v5211 = vpack.c.bf16 %v5103, %v5102
      %v5212 = vpack.c.bf16 %v5105, %v5104
      %v5213 = vpack.c.bf16 %v5107, %v5106
      %v5214 = vpack.c.bf16 %v5109, %v5108
      %v5215 = vpack.c.bf16 %v5111, %v5110
      %v5216 = vpack.c.bf16 %v5113, %v5112
      %v5217 = vpack.c.bf16 %v5115, %v5114
      %v5218 = vpack.c.bf16 %v5117, %v5116
      %v5219 = vpack.c.bf16 %v5119, %v5118
      %v5220 = vpack.c.bf16 %v5121, %v5120
      %v5221 = vpack.c.bf16 %v5123, %v5122
      %v5222 = vpack.c.bf16 %v5125, %v5124
      %v5223 = vpack.c.bf16 %v5127, %v5126
      %v5224 = vpack.c.bf16 %v5129, %v5128
      %v5225 = vpack.c.bf16 %v5131, %v5130
      %v5226 = vpack.c.bf16 %v5133, %v5132
      %v5227 = vpack.c.bf16 %v5135, %v5134
      %v5228 = vpack.c.bf16 %v5137, %v5136
      %v5229 = vpack.c.bf16 %v5139, %v5138
      %v5230 = vpack.c.bf16 %v5141, %v5140
      %v5231 = vpack.c.bf16 %v5143, %v5142
      %v5232 = vpack.c.bf16 %v5145, %v5144
      %v5233 = vpack.c.bf16 %v5147, %v5146
      %v5234 = vpack.c.bf16 %v5149, %v5148
      %v5235 = vpack.c.bf16 %v5151, %v5150
      %v5236 = vpack.c.bf16 %v5153, %v5152
      %v5237 = vpack.c.bf16 %v5155, %v5154
      %v5238 = vpack.c.bf16 %v5157, %v5156
      %v5239 = vpack.c.bf16 %v5159, %v5158
      %v5240 = vpack.c.bf16 %v5161, %v5160
      %v5241 = vpack.c.bf16 %v5163, %v5162
      %v5242 = vpack.c.bf16 %v5165, %v5164
      %v5243 = vpack.c.bf16 %v5167, %v5166
      %v5244 = vpack.c.bf16 %v5169, %v5168
      %v5245 = vpack.c.bf16 %v5171, %v5170
      %v5246 = vpack.c.bf16 %v5173, %v5172
      %v5247 = vpack.c.bf16 %v5175, %v5174
      %v5248 = vpack.c.bf16 %v5177, %v5176
      %v5249 = vpack.c.bf16 %v5179, %v5178
      %v5250 = vpack.c.bf16 %v5181, %v5180
      %v5251 = vpack.c.bf16 %v5183, %v5182
      %v5252 = vpack.c.bf16 %v5185, %v5184
      %v5253 = vpack.c.bf16 %v5187, %v5186
      %v5254 = vpack.c.bf16 %v5189, %v5188
      %v5255 = vpack.c.bf16 %v5191, %v5190
      %v5256 = vld [vmem:[%s2] sm:$0xf]
      %v5257 = vld [vmem:[%s2 + $0x4] sm:$0xf]
      %v5258 = vld [vmem:[%s2 + $0x8] sm:$0xf]
      %v5259 = vld [vmem:[%s2 + $0xc] sm:$0xf]
      %v5260 = vld [vmem:[%s2 + $0x10] sm:$0xf]
      %v5261 = vld [vmem:[%s2 + $0x14] sm:$0xf]
      %v5262 = vld [vmem:[%s2 + $0x18] sm:$0xf]
      %v5263 = vld [vmem:[%s2 + $0x1c] sm:$0xf]
      %v5264 = vld [vmem:[%s2 + $0x20] sm:$0xf]
      %v5265 = vld [vmem:[%s2 + $0x24] sm:$0xf]
      %v5266 = vld [vmem:[%s2 + $0x28] sm:$0xf]
      %v5267 = vld [vmem:[%s2 + $0x2c] sm:$0xf]
      %v5268 = vld [vmem:[%s2 + $0x30] sm:$0xf]
      %v5269 = vld [vmem:[%s2 + $0x34] sm:$0xf]
      %v5270 = vld [vmem:[%s2 + $0x38] sm:$0xf]
      %v5271 = vld [vmem:[%s2 + $0x3c] sm:$0xf]
      %v5288 = vunpack.c.l.b16 %v5256
      %v5289 = vunpack.c.l.b16 %v5257
      %v5290 = vunpack.c.l.b16 %v5258
      %v5291 = vunpack.c.l.b16 %v5259
      %v5292 = vunpack.c.l.b16 %v5260
      %v5293 = vunpack.c.l.b16 %v5261
      %v5294 = vunpack.c.l.b16 %v5262
      %v5295 = vunpack.c.l.b16 %v5263
      %v5296 = vunpack.c.l.b16 %v5264
      %v5297 = vunpack.c.l.b16 %v5265
      %v5298 = vunpack.c.l.b16 %v5266
      %v5299 = vunpack.c.l.b16 %v5267
      %v5300 = vunpack.c.l.b16 %v5268
      %v5301 = vunpack.c.l.b16 %v5269
      %v5302 = vunpack.c.l.b16 %v5270
      %v5303 = vunpack.c.l.b16 %v5271
      %v5304 = vpack.c.b16 %v5289, %v5288
      %v5305 = vpack.c.b16 %v5291, %v5290
      %v5306 = vpack.c.b16 %v5293, %v5292
      %v5307 = vpack.c.b16 %v5295, %v5294
      %v5308 = vpack.c.b16 %v5297, %v5296
      %v5309 = vpack.c.b16 %v5299, %v5298
      %v5310 = vpack.c.b16 %v5301, %v5300
      %v5311 = vpack.c.b16 %v5303, %v5302
      %5320 = vmatprep.subr.bf16.mxu0 0
      %5321 = vmatpush1.bf16.msra.mxu0 %v5304
      %5322 = vmatprep.subr.bf16.mxu0 0
      %5323 = vmatpush1.bf16.msra.mxu0 %v5305
      %5324 = vmatprep.subr.bf16.mxu0 0
      %5325 = vmatpush1.bf16.msra.mxu0 %v5306
      %5326 = vmatprep.subr.bf16.mxu0 0
      %5327 = vmatpush1.bf16.msra.mxu0 %v5307
      %5328 = vmatprep.subr.bf16.mxu0 0
      %5329 = vmatpush1.bf16.msra.mxu0 %v5308
      %5330 = vmatprep.subr.bf16.mxu0 0
      %5331 = vmatpush1.bf16.msra.mxu0 %v5309
      %5332 = vmatprep.subr.bf16.mxu0 0
      %5333 = vmatpush1.bf16.msra.mxu0 %v5310
      %5334 = vmatprep.subr.bf16.mxu0 0
      %5335 = vmatpush1.bf16.msra.mxu0 %v5311
      %5336 = vmatprep.subr.bf16.mxu0 0
      %5337 = vmatpush1.bf16.msra.mxu0 0
      %5338 = vmatprep.subr.bf16.mxu0 0
      %5339 = vmatpush1.bf16.msra.mxu0 0
      %5340 = vmatprep.subr.bf16.mxu0 0
      %5341 = vmatpush1.bf16.msra.mxu0 0
      %5342 = vmatprep.subr.bf16.mxu0 0
      %5343 = vmatpush1.bf16.msra.mxu0 0
      %5344 = vmatprep.subr.bf16.mxu0 0
      %5345 = vmatpush1.bf16.msra.mxu0 0
      %5346 = vmatprep.subr.bf16.mxu0 0
      %5347 = vmatpush1.bf16.msra.mxu0 0
      %5348 = vmatprep.subr.bf16.mxu0 0
      %5349 = vmatpush1.bf16.msra.mxu0 0
      %5350 = vmatprep.subr.bf16.mxu0 0
      %5351 = vmatpush1.bf16.msra.mxu0 0
      %5352 = vmatprep.mubr.bf16.mxu0 0
      %5353 = vmatmul.mubr.bf16.gmra.mrb[0].mxu0 %v5192
      %v5354 = vpop.f32.mrb[0].mxu0
      %v5355 = vadd.f32 0.0, %v5354
      %v5356 = vpop.f32.mrb[0].mxu0
      %v5357 = vpop.f32.mrb[0].mxu0
      %v5358 = vadd.f32 0.0, %v5357
      %v5359 = vpop.f32.mrb[0].mxu0
      %5360 = vmatprep.mubr.bf16.mxu0 0
      %5361 = vmatmul.mubr.bf16.gmra.mrb[0].mxu0 %v5193
      %v5362 = vpop.f32.mrb[0].mxu0
      %v5363 = vadd.f32 0.0, %v5362
      %v5364 = vpop.f32.mrb[0].mxu0
      %v5365 = vpop.f32.mrb[0].mxu0
      %v5366 = vadd.f32 0.0, %v5365
      %v5367 = vpop.f32.mrb[0].mxu0
      %5368 = vmatprep.mubr.bf16.mxu0 0
      %5369 = vmatmul.mubr.bf16.gmra.mrb[0].mxu0 %v5194
      %v5370 = vpop.f32.mrb[0].mxu0
      %v5371 = vadd.f32 0.0, %v5370
      %v5372 = vpop.f32.mrb[0].mxu0
      %v5373 = vpop.f32.mrb[0].mxu0
      %v5374 = vadd.f32 0.0, %v5373
      %v5375 = vpop.f32.mrb[0].mxu0
      %5376 = vmatprep.mubr.bf16.mxu0 0
      %5377 = vmatmul.mubr.bf16.gmra.mrb[0].mxu0 %v5195
      %v5378 = vpop.f32.mrb[0].mxu0
      %v5379 = vadd.f32 0.0, %v5378
      %v5380 = vpop.f32.mrb[0].mxu0
      %v5381 = vpop.f32.mrb[0].mxu0
      %v5382 = vadd.f32 0.0, %v5381
      %v5383 = vpop.f32.mrb[0].mxu0
      %5384 = vmatprep.mubr.bf16.mxu0 0
      %5385 = vmatmul.mubr.bf16.gmra.mrb[0].mxu0 %v5196
      %v5386 = vpop.f32.mrb[0].mxu0
      %v5387 = vadd.f32 0.0, %v5386
      %v5388 = vpop.f32.mrb[0].mxu0
      %v5389 = vpop.f32.mrb[0].mxu0
      %v5390 = vadd.f32 0.0, %v5389
      %v5391 = vpop.f32.mrb[0].mxu0
      %5392 = vmatprep.mubr.bf16.mxu0 0
      %5393 = vmatmul.mubr.bf16.gmra.mrb[0].mxu0 %v5197
      %v5394 = vpop.f32.mrb[0].mxu0
      %v5395 = vadd.f32 0.0, %v5394
      %v5396 = vpop.f32.mrb[0].mxu0
      %v5397 = vpop.f32.mrb[0].mxu0
      %v5398 = vadd.f32 0.0, %v5397
      %v5399 = vpop.f32.mrb[0].mxu0
      %5400 = vmatprep.mubr.bf16.mxu0 0
      %5401 = vmatmul.mubr.bf16.gmra.mrb[0].mxu0 %v5198
      %v5402 = vpop.f32.mrb[0].mxu0
      %v5403 = vadd.f32 0.0, %v5402
      %v5404 = vpop.f32.mrb[0].mxu0
      %v5405 = vpop.f32.mrb[0].mxu0
      %v5406 = vadd.f32 0.0, %v5405
      %v5407 = vpop.f32.mrb[0].mxu0
      %5408 = vmatprep.mubr.bf16.mxu0 0
      %5409 = vmatmul.mubr.bf16.gmra.mrb[0].mxu0 %v5199
      %v5410 = vpop.f32.mrb[0].mxu0
      %v5411 = vadd.f32 0.0, %v5410
      %v5412 = vpop.f32.mrb[0].mxu0
      %v5413 = vpop.f32.mrb[0].mxu0
      %v5414 = vadd.f32 0.0, %v5413
      %v5415 = vpop.f32.mrb[0].mxu0
      %5416 = vmatprep.mubr.bf16.mxu0 0
      %5417 = vmatmul.mubr.bf16.gmra.mrb[0].mxu0 %v5200
      %v5418 = vpop.f32.mrb[0].mxu0
      %v5419 = vadd.f32 0.0, %v5418
      %v5420 = vpop.f32.mrb[0].mxu0
      %v5421 = vpop.f32.mrb[0].mxu0
      %v5422 = vadd.f32 0.0, %v5421
      %v5423 = vpop.f32.mrb[0].mxu0
      %5424 = vmatprep.mubr.bf16.mxu0 0
      %5425 = vmatmul.mubr.bf16.gmra.mrb[0].mxu0 %v5201
      %v5426 = vpop.f32.mrb[0].mxu0
      %v5427 = vadd.f32 0.0, %v5426
      %v5428 = vpop.f32.mrb[0].mxu0
      %v5429 = vpop.f32.mrb[0].mxu0
      %v5430 = vadd.f32 0.0, %v5429
      %v5431 = vpop.f32.mrb[0].mxu0
      %5432 = vmatprep.mubr.bf16.mxu0 0
      %5433 = vmatmul.mubr.bf16.gmra.mrb[0].mxu0 %v5202
      %v5434 = vpop.f32.mrb[0].mxu0
      %v5435 = vadd.f32 0.0, %v5434
      %v5436 = vpop.f32.mrb[0].mxu0
      %v5437 = vpop.f32.mrb[0].mxu0
      %v5438 = vadd.f32 0.0, %v5437
      %v5439 = vpop.f32.mrb[0].mxu0
      %5440 = vmatprep.mubr.bf16.mxu0 0
      %5441 = vmatmul.mubr.bf16.gmra.mrb[0].mxu0 %v5203
      %v5442 = vpop.f32.mrb[0].mxu0
      %v5443 = vadd.f32 0.0, %v5442
      %v5444 = vpop.f32.mrb[0].mxu0
      %v5445 = vpop.f32.mrb[0].mxu0
      %v5446 = vadd.f32 0.0, %v5445
      %v5447 = vpop.f32.mrb[0].mxu0
      %5448 = vmatprep.mubr.bf16.mxu0 0
      %5449 = vmatmul.mubr.bf16.gmra.mrb[0].mxu0 %v5204
      %v5450 = vpop.f32.mrb[0].mxu0
      %v5451 = vadd.f32 0.0, %v5450
      %v5452 = vpop.f32.mrb[0].mxu0
      %v5453 = vpop.f32.mrb[0].mxu0
      %v5454 = vadd.f32 0.0, %v5453
      %v5455 = vpop.f32.mrb[0].mxu0
      %5456 = vmatprep.mubr.bf16.mxu0 0
      %5457 = vmatmul.mubr.bf16.gmra.mrb[0].mxu0 %v5205
      %v5458 = vpop.f32.mrb[0].mxu0
      %v5459 = vadd.f32 0.0, %v5458
      %v5460 = vpop.f32.mrb[0].mxu0
      %v5461 = vpop.f32.mrb[0].mxu0
      %v5462 = vadd.f32 0.0, %v5461
      %v5463 = vpop.f32.mrb[0].mxu0
      %5464 = vmatprep.mubr.bf16.mxu0 0
      %5465 = vmatmul.mubr.bf16.gmra.mrb[0].mxu0 %v5206
      %v5466 = vpop.f32.mrb[0].mxu0
      %v5467 = vadd.f32 0.0, %v5466
      %v5468 = vpop.f32.mrb[0].mxu0
      %v5469 = vpop.f32.mrb[0].mxu0
      %v5470 = vadd.f32 0.0, %v5469
      %v5471 = vpop.f32.mrb[0].mxu0
      %5472 = vmatprep.mubr.bf16.mxu0 0
      %5473 = vmatmul.mubr.bf16.gmra.mrb[0].mxu0 %v5207
      %v5474 = vpop.f32.mrb[0].mxu0
      %v5475 = vadd.f32 0.0, %v5474
      %v5476 = vpop.f32.mrb[0].mxu0
      %v5477 = vpop.f32.mrb[0].mxu0
      %v5478 = vadd.f32 0.0, %v5477
      %v5479 = vpop.f32.mrb[0].mxu0
      %5480 = vmatprep.mubr.bf16.mxu0 0
      %5481 = vmatmul.mubr.bf16.gmra.mrb[0].mxu0 %v5208
      %v5482 = vpop.f32.mrb[0].mxu0
      %v5483 = vadd.f32 0.0, %v5482
      %v5484 = vpop.f32.mrb[0].mxu0
      %v5485 = vpop.f32.mrb[0].mxu0
      %v5486 = vadd.f32 0.0, %v5485
      %v5487 = vpop.f32.mrb[0].mxu0
      %5488 = vmatprep.mubr.bf16.mxu0 0
      %5489 = vmatmul.mubr.bf16.gmra.mrb[0].mxu0 %v5209
      %v5490 = vpop.f32.mrb[0].mxu0
      %v5491 = vadd.f32 0.0, %v5490
      %v5492 = vpop.f32.mrb[0].mxu0
      %v5493 = vpop.f32.mrb[0].mxu0
      %v5494 = vadd.f32 0.0, %v5493
      %v5495 = vpop.f32.mrb[0].mxu0
      %5496 = vmatprep.mubr.bf16.mxu0 0
      %5497 = vmatmul.mubr.bf16.gmra.mrb[0].mxu0 %v5210
      %v5498 = vpop.f32.mrb[0].mxu0
      %v5499 = vadd.f32 0.0, %v5498
      %v5500 = vpop.f32.mrb[0].mxu0
      %v5501 = vpop.f32.mrb[0].mxu0
      %v5502 = vadd.f32 0.0, %v5501
      %v5503 = vpop.f32.mrb[0].mxu0
      %5504 = vmatprep.mubr.bf16.mxu0 0
      %5505 = vmatmul.mubr.bf16.gmra.mrb[0].mxu0 %v5211
      %v5506 = vpop.f32.mrb[0].mxu0
      %v5507 = vadd.f32 0.0, %v5506
      %v5508 = vpop.f32.mrb[0].mxu0
      %v5509 = vpop.f32.mrb[0].mxu0
      %v5510 = vadd.f32 0.0, %v5509
      %v5511 = vpop.f32.mrb[0].mxu0
      %5512 = vmatprep.mubr.bf16.mxu0 0
      %5513 = vmatmul.mubr.bf16.gmra.mrb[0].mxu0 %v5212
      %v5514 = vpop.f32.mrb[0].mxu0
      %v5515 = vadd.f32 0.0, %v5514
      %v5516 = vpop.f32.mrb[0].mxu0
      %v5517 = vpop.f32.mrb[0].mxu0
      %v5518 = vadd.f32 0.0, %v5517
      %v5519 = vpop.f32.mrb[0].mxu0
      %5520 = vmatprep.mubr.bf16.mxu0 0
      %5521 = vmatmul.mubr.bf16.gmra.mrb[0].mxu0 %v5213
      %v5522 = vpop.f32.mrb[0].mxu0
      %v5523 = vadd.f32 0.0, %v5522
      %v5524 = vpop.f32.mrb[0].mxu0
      %v5525 = vpop.f32.mrb[0].mxu0
      %v5526 = vadd.f32 0.0, %v5525
      %v5527 = vpop.f32.mrb[0].mxu0
      %5528 = vmatprep.mubr.bf16.mxu0 0
      %5529 = vmatmul.mubr.bf16.gmra.mrb[0].mxu0 %v5214
      %v5530 = vpop.f32.mrb[0].mxu0
      %v5531 = vadd.f32 0.0, %v5530
      %v5532 = vpop.f32.mrb[0].mxu0
      %v5533 = vpop.f32.mrb[0].mxu0
      %v5534 = vadd.f32 0.0, %v5533
      %v5535 = vpop.f32.mrb[0].mxu0
      %5536 = vmatprep.mubr.bf16.mxu0 0
      %5537 = vmatmul.mubr.bf16.gmra.mrb[0].mxu0 %v5215
      %v5538 = vpop.f32.mrb[0].mxu0
      %v5539 = vadd.f32 0.0, %v5538
      %v5540 = vpop.f32.mrb[0].mxu0
      %v5541 = vpop.f32.mrb[0].mxu0
      %v5542 = vadd.f32 0.0, %v5541
      %v5543 = vpop.f32.mrb[0].mxu0
      %5544 = vmatprep.mubr.bf16.mxu0 0
      %5545 = vmatmul.mubr.bf16.gmra.mrb[0].mxu0 %v5216
      %v5546 = vpop.f32.mrb[0].mxu0
      %v5547 = vadd.f32 0.0, %v5546
      %v5548 = vpop.f32.mrb[0].mxu0
      %v5549 = vpop.f32.mrb[0].mxu0
      %v5550 = vadd.f32 0.0, %v5549
      %v5551 = vpop.f32.mrb[0].mxu0
      %5552 = vmatprep.mubr.bf16.mxu0 0
      %5553 = vmatmul.mubr.bf16.gmra.mrb[0].mxu0 %v5217
      %v5554 = vpop.f32.mrb[0].mxu0
      %v5555 = vadd.f32 0.0, %v5554
      %v5556 = vpop.f32.mrb[0].mxu0
      %v5557 = vpop.f32.mrb[0].mxu0
      %v5558 = vadd.f32 0.0, %v5557
      %v5559 = vpop.f32.mrb[0].mxu0
      %5560 = vmatprep.mubr.bf16.mxu0 0
      %5561 = vmatmul.mubr.bf16.gmra.mrb[0].mxu0 %v5218
      %v5562 = vpop.f32.mrb[0].mxu0
      %v5563 = vadd.f32 0.0, %v5562
      %v5564 = vpop.f32.mrb[0].mxu0
      %v5565 = vpop.f32.mrb[0].mxu0
      %v5566 = vadd.f32 0.0, %v5565
      %v5567 = vpop.f32.mrb[0].mxu0
      %5568 = vmatprep.mubr.bf16.mxu0 0
      %5569 = vmatmul.mubr.bf16.gmra.mrb[0].mxu0 %v5219
      %v5570 = vpop.f32.mrb[0].mxu0
      %v5571 = vadd.f32 0.0, %v5570
      %v5572 = vpop.f32.mrb[0].mxu0
      %v5573 = vpop.f32.mrb[0].mxu0
      %v5574 = vadd.f32 0.0, %v5573
      %v5575 = vpop.f32.mrb[0].mxu0
      %5576 = vmatprep.mubr.bf16.mxu0 0
      %5577 = vmatmul.mubr.bf16.gmra.mrb[0].mxu0 %v5220
      %v5578 = vpop.f32.mrb[0].mxu0
      %v5579 = vadd.f32 0.0, %v5578
      %v5580 = vpop.f32.mrb[0].mxu0
      %v5581 = vpop.f32.mrb[0].mxu0
      %v5582 = vadd.f32 0.0, %v5581
      %v5583 = vpop.f32.mrb[0].mxu0
      %5584 = vmatprep.mubr.bf16.mxu0 0
      %5585 = vmatmul.mubr.bf16.gmra.mrb[0].mxu0 %v5221
      %v5586 = vpop.f32.mrb[0].mxu0
      %v5587 = vadd.f32 0.0, %v5586
      %v5588 = vpop.f32.mrb[0].mxu0
      %v5589 = vpop.f32.mrb[0].mxu0
      %v5590 = vadd.f32 0.0, %v5589
      %v5591 = vpop.f32.mrb[0].mxu0
      %5592 = vmatprep.mubr.bf16.mxu0 0
      %5593 = vmatmul.mubr.bf16.gmra.mrb[0].mxu0 %v5222
      %v5594 = vpop.f32.mrb[0].mxu0
      %v5595 = vadd.f32 0.0, %v5594
      %v5596 = vpop.f32.mrb[0].mxu0
      %v5597 = vpop.f32.mrb[0].mxu0
      %v5598 = vadd.f32 0.0, %v5597
      %v5599 = vpop.f32.mrb[0].mxu0
      %5600 = vmatprep.mubr.bf16.mxu0 0
      %5601 = vmatmul.mubr.bf16.gmra.mrb[0].mxu0 %v5223
      %v5602 = vpop.f32.mrb[0].mxu0
      %v5603 = vadd.f32 0.0, %v5602
      %v5604 = vpop.f32.mrb[0].mxu0
      %v5605 = vpop.f32.mrb[0].mxu0
      %v5606 = vadd.f32 0.0, %v5605
      %v5607 = vpop.f32.mrb[0].mxu0
      %5608 = vmatprep.mubr.bf16.mxu0 0
      %5609 = vmatmul.mubr.bf16.gmra.mrb[0].mxu0 %v5224
      %v5610 = vpop.f32.mrb[0].mxu0
      %v5611 = vadd.f32 0.0, %v5610
      %v5612 = vpop.f32.mrb[0].mxu0
      %v5613 = vpop.f32.mrb[0].mxu0
      %v5614 = vadd.f32 0.0, %v5613
      %v5615 = vpop.f32.mrb[0].mxu0
      %5616 = vmatprep.mubr.bf16.mxu0 0
      %5617 = vmatmul.mubr.bf16.gmra.mrb[0].mxu0 %v5225
      %v5618 = vpop.f32.mrb[0].mxu0
      %v5619 = vadd.f32 0.0, %v5618
      %v5620 = vpop.f32.mrb[0].mxu0
      %v5621 = vpop.f32.mrb[0].mxu0
      %v5622 = vadd.f32 0.0, %v5621
      %v5623 = vpop.f32.mrb[0].mxu0
      %5624 = vmatprep.mubr.bf16.mxu0 0
      %5625 = vmatmul.mubr.bf16.gmra.mrb[0].mxu0 %v5226
      %v5626 = vpop.f32.mrb[0].mxu0
      %v5627 = vadd.f32 0.0, %v5626
      %v5628 = vpop.f32.mrb[0].mxu0
      %v5629 = vpop.f32.mrb[0].mxu0
      %v5630 = vadd.f32 0.0, %v5629
      %v5631 = vpop.f32.mrb[0].mxu0
      %5632 = vmatprep.mubr.bf16.mxu0 0
      %5633 = vmatmul.mubr.bf16.gmra.mrb[0].mxu0 %v5227
      %v5634 = vpop.f32.mrb[0].mxu0
      %v5635 = vadd.f32 0.0, %v5634
      %v5636 = vpop.f32.mrb[0].mxu0
      %v5637 = vpop.f32.mrb[0].mxu0
      %v5638 = vadd.f32 0.0, %v5637
      %v5639 = vpop.f32.mrb[0].mxu0
      %5640 = vmatprep.mubr.bf16.mxu0 0
      %5641 = vmatmul.mubr.bf16.gmra.mrb[0].mxu0 %v5228
      %v5642 = vpop.f32.mrb[0].mxu0
      %v5643 = vadd.f32 0.0, %v5642
      %v5644 = vpop.f32.mrb[0].mxu0
      %v5645 = vpop.f32.mrb[0].mxu0
      %v5646 = vadd.f32 0.0, %v5645
      %v5647 = vpop.f32.mrb[0].mxu0
      %5648 = vmatprep.mubr.bf16.mxu0 0
      %5649 = vmatmul.mubr.bf16.gmra.mrb[0].mxu0 %v5229
      %v5650 = vpop.f32.mrb[0].mxu0
      %v5651 = vadd.f32 0.0, %v5650
      %v5652 = vpop.f32.mrb[0].mxu0
      %v5653 = vpop.f32.mrb[0].mxu0
      %v5654 = vadd.f32 0.0, %v5653
      %v5655 = vpop.f32.mrb[0].mxu0
      %5656 = vmatprep.mubr.bf16.mxu0 0
      %5657 = vmatmul.mubr.bf16.gmra.mrb[0].mxu0 %v5230
      %v5658 = vpop.f32.mrb[0].mxu0
      %v5659 = vadd.f32 0.0, %v5658
      %v5660 = vpop.f32.mrb[0].mxu0
      %v5661 = vpop.f32.mrb[0].mxu0
      %v5662 = vadd.f32 0.0, %v5661
      %v5663 = vpop.f32.mrb[0].mxu0
      %5664 = vmatprep.mubr.bf16.mxu0 0
      %5665 = vmatmul.mubr.bf16.gmra.mrb[0].mxu0 %v5231
      %v5666 = vpop.f32.mrb[0].mxu0
      %v5667 = vadd.f32 0.0, %v5666
      %v5668 = vpop.f32.mrb[0].mxu0
      %v5669 = vpop.f32.mrb[0].mxu0
      %v5670 = vadd.f32 0.0, %v5669
      %v5671 = vpop.f32.mrb[0].mxu0
      %5672 = vmatprep.mubr.bf16.mxu0 0
      %5673 = vmatmul.mubr.bf16.gmra.mrb[0].mxu0 %v5232
      %v5674 = vpop.f32.mrb[0].mxu0
      %v5675 = vadd.f32 0.0, %v5674
      %v5676 = vpop.f32.mrb[0].mxu0
      %v5677 = vpop.f32.mrb[0].mxu0
      %v5678 = vadd.f32 0.0, %v5677
      %v5679 = vpop.f32.mrb[0].mxu0
      %5680 = vmatprep.mubr.bf16.mxu0 0
      %5681 = vmatmul.mubr.bf16.gmra.mrb[0].mxu0 %v5233
      %v5682 = vpop.f32.mrb[0].mxu0
      %v5683 = vadd.f32 0.0, %v5682
      %v5684 = vpop.f32.mrb[0].mxu0
      %v5685 = vpop.f32.mrb[0].mxu0
      %v5686 = vadd.f32 0.0, %v5685
      %v5687 = vpop.f32.mrb[0].mxu0
      %5688 = vmatprep.mubr.bf16.mxu0 0
      %5689 = vmatmul.mubr.bf16.gmra.mrb[0].mxu0 %v5234
      %v5690 = vpop.f32.mrb[0].mxu0
      %v5691 = vadd.f32 0.0, %v5690
      %v5692 = vpop.f32.mrb[0].mxu0
      %v5693 = vpop.f32.mrb[0].mxu0
      %v5694 = vadd.f32 0.0, %v5693
      %v5695 = vpop.f32.mrb[0].mxu0
      %5696 = vmatprep.mubr.bf16.mxu0 0
      %5697 = vmatmul.mubr.bf16.gmra.mrb[0].mxu0 %v5235
      %v5698 = vpop.f32.mrb[0].mxu0
      %v5699 = vadd.f32 0.0, %v5698
      %v5700 = vpop.f32.mrb[0].mxu0
      %v5701 = vpop.f32.mrb[0].mxu0
      %v5702 = vadd.f32 0.0, %v5701
      %v5703 = vpop.f32.mrb[0].mxu0
      %5704 = vmatprep.mubr.bf16.mxu0 0
      %5705 = vmatmul.mubr.bf16.gmra.mrb[0].mxu0 %v5236
      %v5706 = vpop.f32.mrb[0].mxu0
      %v5707 = vadd.f32 0.0, %v5706
      %v5708 = vpop.f32.mrb[0].mxu0
      %v5709 = vpop.f32.mrb[0].mxu0
      %v5710 = vadd.f32 0.0, %v5709
      %v5711 = vpop.f32.mrb[0].mxu0
      %5712 = vmatprep.mubr.bf16.mxu0 0
      %5713 = vmatmul.mubr.bf16.gmra.mrb[0].mxu0 %v5237
      %v5714 = vpop.f32.mrb[0].mxu0
      %v5715 = vadd.f32 0.0, %v5714
      %v5716 = vpop.f32.mrb[0].mxu0
      %v5717 = vpop.f32.mrb[0].mxu0
      %v5718 = vadd.f32 0.0, %v5717
      %v5719 = vpop.f32.mrb[0].mxu0
      %5720 = vmatprep.mubr.bf16.mxu0 0
      %5721 = vmatmul.mubr.bf16.gmra.mrb[0].mxu0 %v5238
      %v5722 = vpop.f32.mrb[0].mxu0
      %v5723 = vadd.f32 0.0, %v5722
      %v5724 = vpop.f32.mrb[0].mxu0
      %v5725 = vpop.f32.mrb[0].mxu0
      %v5726 = vadd.f32 0.0, %v5725
      %v5727 = vpop.f32.mrb[0].mxu0
      %5728 = vmatprep.mubr.bf16.mxu0 0
      %5729 = vmatmul.mubr.bf16.gmra.mrb[0].mxu0 %v5239
      %v5730 = vpop.f32.mrb[0].mxu0
      %v5731 = vadd.f32 0.0, %v5730
      %v5732 = vpop.f32.mrb[0].mxu0
      %v5733 = vpop.f32.mrb[0].mxu0
      %v5734 = vadd.f32 0.0, %v5733
      %v5735 = vpop.f32.mrb[0].mxu0
      %5736 = vmatprep.mubr.bf16.mxu0 0
      %5737 = vmatmul.mubr.bf16.gmra.mrb[0].mxu0 %v5240
      %v5738 = vpop.f32.mrb[0].mxu0
      %v5739 = vadd.f32 0.0, %v5738
      %v5740 = vpop.f32.mrb[0].mxu0
      %v5741 = vpop.f32.mrb[0].mxu0
      %v5742 = vadd.f32 0.0, %v5741
      %v5743 = vpop.f32.mrb[0].mxu0
      %5744 = vmatprep.mubr.bf16.mxu0 0
      %5745 = vmatmul.mubr.bf16.gmra.mrb[0].mxu0 %v5241
      %v5746 = vpop.f32.mrb[0].mxu0
      %v5747 = vadd.f32 0.0, %v5746
      %v5748 = vpop.f32.mrb[0].mxu0
      %v5749 = vpop.f32.mrb[0].mxu0
      %v5750 = vadd.f32 0.0, %v5749
      %v5751 = vpop.f32.mrb[0].mxu0
      %5752 = vmatprep.mubr.bf16.mxu0 0
      %5753 = vmatmul.mubr.bf16.gmra.mrb[0].mxu0 %v5242
      %v5754 = vpop.f32.mrb[0].mxu0
      %v5755 = vadd.f32 0.0, %v5754
      %v5756 = vpop.f32.mrb[0].mxu0
      %v5757 = vpop.f32.mrb[0].mxu0
      %v5758 = vadd.f32 0.0, %v5757
      %v5759 = vpop.f32.mrb[0].mxu0
      %5760 = vmatprep.mubr.bf16.mxu0 0
      %5761 = vmatmul.mubr.bf16.gmra.mrb[0].mxu0 %v5243
      %v5762 = vpop.f32.mrb[0].mxu0
      %v5763 = vadd.f32 0.0, %v5762
      %v5764 = vpop.f32.mrb[0].mxu0
      %v5765 = vpop.f32.mrb[0].mxu0
      %v5766 = vadd.f32 0.0, %v5765
      %v5767 = vpop.f32.mrb[0].mxu0
      %5768 = vmatprep.mubr.bf16.mxu0 0
      %5769 = vmatmul.mubr.bf16.gmra.mrb[0].mxu0 %v5244
      %v5770 = vpop.f32.mrb[0].mxu0
      %v5771 = vadd.f32 0.0, %v5770
      %v5772 = vpop.f32.mrb[0].mxu0
      %v5773 = vpop.f32.mrb[0].mxu0
      %v5774 = vadd.f32 0.0, %v5773
      %v5775 = vpop.f32.mrb[0].mxu0
      %5776 = vmatprep.mubr.bf16.mxu0 0
      %5777 = vmatmul.mubr.bf16.gmra.mrb[0].mxu0 %v5245
      %v5778 = vpop.f32.mrb[0].mxu0
      %v5779 = vadd.f32 0.0, %v5778
      %v5780 = vpop.f32.mrb[0].mxu0
      %v5781 = vpop.f32.mrb[0].mxu0
      %v5782 = vadd.f32 0.0, %v5781
      %v5783 = vpop.f32.mrb[0].mxu0
      %5784 = vmatprep.mubr.bf16.mxu0 0
      %5785 = vmatmul.mubr.bf16.gmra.mrb[0].mxu0 %v5246
      %v5786 = vpop.f32.mrb[0].mxu0
      %v5787 = vadd.f32 0.0, %v5786
      %v5788 = vpop.f32.mrb[0].mxu0
      %v5789 = vpop.f32.mrb[0].mxu0
      %v5790 = vadd.f32 0.0, %v5789
      %v5791 = vpop.f32.mrb[0].mxu0
      %5792 = vmatprep.mubr.bf16.mxu0 0
      %5793 = vmatmul.mubr.bf16.gmra.mrb[0].mxu0 %v5247
      %v5794 = vpop.f32.mrb[0].mxu0
      %v5795 = vadd.f32 0.0, %v5794
      %v5796 = vpop.f32.mrb[0].mxu0
      %v5797 = vpop.f32.mrb[0].mxu0
      %v5798 = vadd.f32 0.0, %v5797
      %v5799 = vpop.f32.mrb[0].mxu0
      %5800 = vmatprep.mubr.bf16.mxu0 0
      %5801 = vmatmul.mubr.bf16.gmra.mrb[0].mxu0 %v5248
      %v5802 = vpop.f32.mrb[0].mxu0
      %v5803 = vadd.f32 0.0, %v5802
      %v5804 = vpop.f32.mrb[0].mxu0
      %v5805 = vpop.f32.mrb[0].mxu0
      %v5806 = vadd.f32 0.0, %v5805
      %v5807 = vpop.f32.mrb[0].mxu0
      %5808 = vmatprep.mubr.bf16.mxu0 0
      %5809 = vmatmul.mubr.bf16.gmra.mrb[0].mxu0 %v5249
      %v5810 = vpop.f32.mrb[0].mxu0
      %v5811 = vadd.f32 0.0, %v5810
      %v5812 = vpop.f32.mrb[0].mxu0
      %v5813 = vpop.f32.mrb[0].mxu0
      %v5814 = vadd.f32 0.0, %v5813
      %v5815 = vpop.f32.mrb[0].mxu0
      %5816 = vmatprep.mubr.bf16.mxu0 0
      %5817 = vmatmul.mubr.bf16.gmra.mrb[0].mxu0 %v5250
      %v5818 = vpop.f32.mrb[0].mxu0
      %v5819 = vadd.f32 0.0, %v5818
      %v5820 = vpop.f32.mrb[0].mxu0
      %v5821 = vpop.f32.mrb[0].mxu0
      %v5822 = vadd.f32 0.0, %v5821
      %v5823 = vpop.f32.mrb[0].mxu0
      %5824 = vmatprep.mubr.bf16.mxu0 0
      %5825 = vmatmul.mubr.bf16.gmra.mrb[0].mxu0 %v5251
      %v5826 = vpop.f32.mrb[0].mxu0
      %v5827 = vadd.f32 0.0, %v5826
      %v5828 = vpop.f32.mrb[0].mxu0
      %v5829 = vpop.f32.mrb[0].mxu0
      %v5830 = vadd.f32 0.0, %v5829
      %v5831 = vpop.f32.mrb[0].mxu0
      %5832 = vmatprep.mubr.bf16.mxu0 0
      %5833 = vmatmul.mubr.bf16.gmra.mrb[0].mxu0 %v5252
      %v5834 = vpop.f32.mrb[0].mxu0
      %v5835 = vadd.f32 0.0, %v5834
      %v5836 = vpop.f32.mrb[0].mxu0
      %v5837 = vpop.f32.mrb[0].mxu0
      %v5838 = vadd.f32 0.0, %v5837
      %v5839 = vpop.f32.mrb[0].mxu0
      %5840 = vmatprep.mubr.bf16.mxu0 0
      %5841 = vmatmul.mubr.bf16.gmra.mrb[0].mxu0 %v5253
      %v5842 = vpop.f32.mrb[0].mxu0
      %v5843 = vadd.f32 0.0, %v5842
      %v5844 = vpop.f32.mrb[0].mxu0
      %v5845 = vpop.f32.mrb[0].mxu0
      %v5846 = vadd.f32 0.0, %v5845
      %v5847 = vpop.f32.mrb[0].mxu0
      %5848 = vmatprep.mubr.bf16.mxu0 0
      %5849 = vmatmul.mubr.bf16.gmra.mrb[0].mxu0 %v5254
      %v5850 = vpop.f32.mrb[0].mxu0
      %v5851 = vadd.f32 0.0, %v5850
      %v5852 = vpop.f32.mrb[0].mxu0
      %v5853 = vpop.f32.mrb[0].mxu0
      %v5854 = vadd.f32 0.0, %v5853
      %v5855 = vpop.f32.mrb[0].mxu0
      %5856 = vmatprep.mubr.bf16.mxu0 0
      %5857 = vmatmul.mubr.bf16.gmra.mrb[0].mxu0 %v5255
      %v5858 = vpop.f32.mrb[0].mxu0
      %v5859 = vadd.f32 0.0, %v5858
      %v5860 = vpop.f32.mrb[0].mxu0
      %v5861 = vpop.f32.mrb[0].mxu0
      %v5862 = vadd.f32 0.0, %v5861
      %v5863 = vpop.f32.mrb[0].mxu0
      %5864 = vdwg.mxu0
      %5865 = vst.msk [vmem:[%s194] sm:$0xff] %vm4805, %v5355
      %5866 = vst.msk [vmem:[%s194 + $0x8] sm:$0xff] %vm4805, %v5358
      %5867 = vst.msk [vmem:[%s194 + $0x10] sm:$0xff] %vm4805, %v5363
      %5868 = vst.msk [vmem:[%s194 + $0x18] sm:$0xff] %vm4805, %v5366
      %5869 = vst.msk [vmem:[%s194 + $0x20] sm:$0xff] %vm4805, %v5371
      %5870 = vst.msk [vmem:[%s194 + $0x28] sm:$0xff] %vm4805, %v5374
      %5871 = vst.msk [vmem:[%s194 + $0x30] sm:$0xff] %vm4805, %v5379
      %5872 = vst.msk [vmem:[%s194 + $0x38] sm:$0xff] %vm4805, %v5382
      %5873 = vst.msk [vmem:[%s194 + $0x40] sm:$0xff] %vm4805, %v5387
      %5874 = vst.msk [vmem:[%s194 + $0x48] sm:$0xff] %vm4805, %v5390
      %5875 = vst.msk [vmem:[%s194 + $0x50] sm:$0xff] %vm4805, %v5395
      %5876 = vst.msk [vmem:[%s194 + $0x58] sm:$0xff] %vm4805, %v5398
      %5877 = vst.msk [vmem:[%s194 + $0x60] sm:$0xff] %vm4805, %v5403
      %5878 = vst.msk [vmem:[%s194 + $0x68] sm:$0xff] %vm4805, %v5406
      %5879 = vst.msk [vmem:[%s194 + $0x70] sm:$0xff] %vm4805, %v5411
      %5880 = vst.msk [vmem:[%s194 + $0x78] sm:$0xff] %vm4805, %v5414
      %5881 = vst.msk [vmem:[%s194 + $0x80] sm:$0xff] %vm4805, %v5419
      %5882 = vst.msk [vmem:[%s194 + $0x88] sm:$0xff] %vm4805, %v5422
      %5883 = vst.msk [vmem:[%s194 + $0x90] sm:$0xff] %vm4805, %v5427
      %5884 = vst.msk [vmem:[%s194 + $0x98] sm:$0xff] %vm4805, %v5430
      %5885 = vst.msk [vmem:[%s194 + $0xa0] sm:$0xff] %vm4805, %v5435
      %5886 = vst.msk [vmem:[%s194 + $0xa8] sm:$0xff] %vm4805, %v5438
      %5887 = vst.msk [vmem:[%s194 + $0xb0] sm:$0xff] %vm4805, %v5443
      %5888 = vst.msk [vmem:[%s194 + $0xb8] sm:$0xff] %vm4805, %v5446
      %5889 = vst.msk [vmem:[%s194 + $0xc0] sm:$0xff] %vm4805, %v5451
      %5890 = vst.msk [vmem:[%s194 + $0xc8] sm:$0xff] %vm4805, %v5454
      %5891 = vst.msk [vmem:[%s194 + $0xd0] sm:$0xff] %vm4805, %v5459
      %5892 = vst.msk [vmem:[%s194 + $0xd8] sm:$0xff] %vm4805, %v5462
      %5893 = vst.msk [vmem:[%s194 + $0xe0] sm:$0xff] %vm4805, %v5467
      %5894 = vst.msk [vmem:[%s194 + $0xe8] sm:$0xff] %vm4805, %v5470
      %5895 = vst.msk [vmem:[%s194 + $0xf0] sm:$0xff] %vm4805, %v5475
      %5896 = vst.msk [vmem:[%s194 + $0xf8] sm:$0xff] %vm4805, %v5478
      %5897 = vst.msk [vmem:[%s194 + $0x100] sm:$0xff] %vm4805, %v5483
      %5898 = vst.msk [vmem:[%s194 + $0x108] sm:$0xff] %vm4805, %v5486
      %5899 = vst.msk [vmem:[%s194 + $0x110] sm:$0xff] %vm4805, %v5491
      %5900 = vst.msk [vmem:[%s194 + $0x118] sm:$0xff] %vm4805, %v5494
      %5901 = vst.msk [vmem:[%s194 + $0x120] sm:$0xff] %vm4805, %v5499
      %5902 = vst.msk [vmem:[%s194 + $0x128] sm:$0xff] %vm4805, %v5502
      %5903 = vst.msk [vmem:[%s194 + $0x130] sm:$0xff] %vm4805, %v5507
      %5904 = vst.msk [vmem:[%s194 + $0x138] sm:$0xff] %vm4805, %v5510
      %5905 = vst.msk [vmem:[%s194 + $0x140] sm:$0xff] %vm4805, %v5515
      %5906 = vst.msk [vmem:[%s194 + $0x148] sm:$0xff] %vm4805, %v5518
      %5907 = vst.msk [vmem:[%s194 + $0x150] sm:$0xff] %vm4805, %v5523
      %5908 = vst.msk [vmem:[%s194 + $0x158] sm:$0xff] %vm4805, %v5526
      %5909 = vst.msk [vmem:[%s194 + $0x160] sm:$0xff] %vm4805, %v5531
      %5910 = vst.msk [vmem:[%s194 + $0x168] sm:$0xff] %vm4805, %v5534
      %5911 = vst.msk [vmem:[%s194 + $0x170] sm:$0xff] %vm4805, %v5539
      %5912 = vst.msk [vmem:[%s194 + $0x178] sm:$0xff] %vm4805, %v5542
      %5913 = vst.msk [vmem:[%s194 + $0x180] sm:$0xff] %vm4805, %v5547
      %5914 = vst.msk [vmem:[%s194 + $0x188] sm:$0xff] %vm4805, %v5550
      %5915 = vst.msk [vmem:[%s194 + $0x190] sm:$0xff] %vm4805, %v5555
      %5916 = vst.msk [vmem:[%s194 + $0x198] sm:$0xff] %vm4805, %v5558
      %5917 = vst.msk [vmem:[%s194 + $0x1a0] sm:$0xff] %vm4805, %v5563
      %5918 = vst.msk [vmem:[%s194 + $0x1a8] sm:$0xff] %vm4805, %v5566
      %5919 = vst.msk [vmem:[%s194 + $0x1b0] sm:$0xff] %vm4805, %v5571
      %5920 = vst.msk [vmem:[%s194 + $0x1b8] sm:$0xff] %vm4805, %v5574
      %5921 = vst.msk [vmem:[%s194 + $0x1c0] sm:$0xff] %vm4805, %v5579
      %5922 = vst.msk [vmem:[%s194 + $0x1c8] sm:$0xff] %vm4805, %v5582
      %5923 = vst.msk [vmem:[%s194 + $0x1d0] sm:$0xff] %vm4805, %v5587
      %5924 = vst.msk [vmem:[%s194 + $0x1d8] sm:$0xff] %vm4805, %v5590
      %5925 = vst.msk [vmem:[%s194 + $0x1e0] sm:$0xff] %vm4805, %v5595
      %5926 = vst.msk [vmem:[%s194 + $0x1e8] sm:$0xff] %vm4805, %v5598
      %5927 = vst.msk [vmem:[%s194 + $0x1f0] sm:$0xff] %vm4805, %v5603
      %5928 = vst.msk [vmem:[%s194 + $0x1f8] sm:$0xff] %vm4805, %v5606
      %5929 = vst.msk [vmem:[%s194 + $0x200] sm:$0xff] %vm4805, %v5611
      %5930 = vst.msk [vmem:[%s194 + $0x208] sm:$0xff] %vm4805, %v5614
      %5931 = vst.msk [vmem:[%s194 + $0x210] sm:$0xff] %vm4805, %v5619
      %5932 = vst.msk [vmem:[%s194 + $0x218] sm:$0xff] %vm4805, %v5622
      %5933 = vst.msk [vmem:[%s194 + $0x220] sm:$0xff] %vm4805, %v5627
      %5934 = vst.msk [vmem:[%s194 + $0x228] sm:$0xff] %vm4805, %v5630
      %5935 = vst.msk [vmem:[%s194 + $0x230] sm:$0xff] %vm4805, %v5635
      %5936 = vst.msk [vmem:[%s194 + $0x238] sm:$0xff] %vm4805, %v5638
      %5937 = vst.msk [vmem:[%s194 + $0x240] sm:$0xff] %vm4805, %v5643
      %5938 = vst.msk [vmem:[%s194 + $0x248] sm:$0xff] %vm4805, %v5646
      %5939 = vst.msk [vmem:[%s194 + $0x250] sm:$0xff] %vm4805, %v5651
      %5940 = vst.msk [vmem:[%s194 + $0x258] sm:$0xff] %vm4805, %v5654
      %5941 = vst.msk [vmem:[%s194 + $0x260] sm:$0xff] %vm4805, %v5659
      %5942 = vst.msk [vmem:[%s194 + $0x268] sm:$0xff] %vm4805, %v5662
      %5943 = vst.msk [vmem:[%s194 + $0x270] sm:$0xff] %vm4805, %v5667
      %5944 = vst.msk [vmem:[%s194 + $0x278] sm:$0xff] %vm4805, %v5670
      %5945 = vst.msk [vmem:[%s194 + $0x280] sm:$0xff] %vm4805, %v5675
      %5946 = vst.msk [vmem:[%s194 + $0x288] sm:$0xff] %vm4805, %v5678
      %5947 = vst.msk [vmem:[%s194 + $0x290] sm:$0xff] %vm4805, %v5683
      %5948 = vst.msk [vmem:[%s194 + $0x298] sm:$0xff] %vm4805, %v5686
      %5949 = vst.msk [vmem:[%s194 + $0x2a0] sm:$0xff] %vm4805, %v5691
      %5950 = vst.msk [vmem:[%s194 + $0x2a8] sm:$0xff] %vm4805, %v5694
      %5951 = vst.msk [vmem:[%s194 + $0x2b0] sm:$0xff] %vm4805, %v5699
      %5952 = vst.msk [vmem:[%s194 + $0x2b8] sm:$0xff] %vm4805, %v5702
      %5953 = vst.msk [vmem:[%s194 + $0x2c0] sm:$0xff] %vm4805, %v5707
      %5954 = vst.msk [vmem:[%s194 + $0x2c8] sm:$0xff] %vm4805, %v5710
      %5955 = vst.msk [vmem:[%s194 + $0x2d0] sm:$0xff] %vm4805, %v5715
      %5956 = vst.msk [vmem:[%s194 + $0x2d8] sm:$0xff] %vm4805, %v5718
      %5957 = vst.msk [vmem:[%s194 + $0x2e0] sm:$0xff] %vm4805, %v5723
      %5958 = vst.msk [vmem:[%s194 + $0x2e8] sm:$0xff] %vm4805, %v5726
      %5959 = vst.msk [vmem:[%s194 + $0x2f0] sm:$0xff] %vm4805, %v5731
      %5960 = vst.msk [vmem:[%s194 + $0x2f8] sm:$0xff] %vm4805, %v5734
      %5961 = vst.msk [vmem:[%s194 + $0x300] sm:$0xff] %vm4805, %v5739
      %5962 = vst.msk [vmem:[%s194 + $0x308] sm:$0xff] %vm4805, %v5742
      %5963 = vst.msk [vmem:[%s194 + $0x310] sm:$0xff] %vm4805, %v5747
      %5964 = vst.msk [vmem:[%s194 + $0x318] sm:$0xff] %vm4805, %v5750
      %5965 = vst.msk [vmem:[%s194 + $0x320] sm:$0xff] %vm4805, %v5755
      %5966 = vst.msk [vmem:[%s194 + $0x328] sm:$0xff] %vm4805, %v5758
      %5967 = vst.msk [vmem:[%s194 + $0x330] sm:$0xff] %vm4805, %v5763
      %5968 = vst.msk [vmem:[%s194 + $0x338] sm:$0xff] %vm4805, %v5766
      %5969 = vst.msk [vmem:[%s194 + $0x340] sm:$0xff] %vm4805, %v5771
      %5970 = vst.msk [vmem:[%s194 + $0x348] sm:$0xff] %vm4805, %v5774
      %5971 = vst.msk [vmem:[%s194 + $0x350] sm:$0xff] %vm4805, %v5779
      %5972 = vst.msk [vmem:[%s194 + $0x358] sm:$0xff] %vm4805, %v5782
      %5973 = vst.msk [vmem:[%s194 + $0x360] sm:$0xff] %vm4805, %v5787
      %5974 = vst.msk [vmem:[%s194 + $0x368] sm:$0xff] %vm4805, %v5790
      %5975 = vst.msk [vmem:[%s194 + $0x370] sm:$0xff] %vm4805, %v5795
      %5976 = vst.msk [vmem:[%s194 + $0x378] sm:$0xff] %vm4805, %v5798
      %5977 = vst.msk [vmem:[%s194 + $0x380] sm:$0xff] %vm4805, %v5803
      %5978 = vst.msk [vmem:[%s194 + $0x388] sm:$0xff] %vm4805, %v5806
      %5979 = vst.msk [vmem:[%s194 + $0x390] sm:$0xff] %vm4805, %v5811
      %5980 = vst.msk [vmem:[%s194 + $0x398] sm:$0xff] %vm4805, %v5814
      %5981 = vst.msk [vmem:[%s194 + $0x3a0] sm:$0xff] %vm4805, %v5819
      %5982 = vst.msk [vmem:[%s194 + $0x3a8] sm:$0xff] %vm4805, %v5822
      %5983 = vst.msk [vmem:[%s194 + $0x3b0] sm:$0xff] %vm4805, %v5827
      %5984 = vst.msk [vmem:[%s194 + $0x3b8] sm:$0xff] %vm4805, %v5830
      %5985 = vst.msk [vmem:[%s194 + $0x3c0] sm:$0xff] %vm4805, %v5835
      %5986 = vst.msk [vmem:[%s194 + $0x3c8] sm:$0xff] %vm4805, %v5838
      %5987 = vst.msk [vmem:[%s194 + $0x3d0] sm:$0xff] %vm4805, %v5843
      %5988 = vst.msk [vmem:[%s194 + $0x3d8] sm:$0xff] %vm4805, %v5846
      %5989 = vst.msk [vmem:[%s194 + $0x3e0] sm:$0xff] %vm4805, %v5851
      %5990 = vst.msk [vmem:[%s194 + $0x3e8] sm:$0xff] %vm4805, %v5854
      %5991 = vst.msk [vmem:[%s194 + $0x3f0] sm:$0xff] %vm4805, %v5859
      %5992 = vst.msk [vmem:[%s194 + $0x3f8] sm:$0xff] %vm4805, %v5862
      %s5993 = smul.u32 128, %s14
      %p5994 = scmp.lt.s32.totalorder %s5993, 255
      %s5995 = scalar_select %p5994, %s5993, 255
      %s5996 = smul.addr %s5995, 8
      %s5997 = scalar_lea.vmem %s3, %s5996
      // Predicated region
      $region33: #{tpu_custom_call.1} parent=31 // pred_check
        %p5998 = pneg %p105
      $region34: #{tpu_custom_call.1} parent=31 // pred_check_branch
        %6000 = sbr.rel (%p5998) target = $region36
      $region35: #{tpu_custom_call.1} parent=31 // pred_region
        %s6001 = smul.u32 128, %s14
      $region36: #{tpu_custom_call.1} parent=31 // pred_fallthru
        _
    $region32: #{tpu_custom_call.1} parent=5 // pred_fallthru
      _
    %p6002 = scmp.le.s32.totalorder 2, %s9
    // Predicated region
    $region37: #{tpu_custom_call.1} parent=5 // pred_check
      %p6003 = pneg %p6002
    $region38: #{tpu_custom_call.1} parent=5 // pred_check_branch
      %6005 = sbr.rel (%p6003) target = $region40
    $region39: #{tpu_custom_call.1} parent=5 // pred_region
      %s6006 = ssub.s32 %s9, 2
      // Predicated region
      $region41: #{tpu_custom_call.1} parent=39 // pred_check
        %p6007 = pneg %p111
      $region42: #{tpu_custom_call.1} parent=39 // pred_check_branch
        %6009 = sbr.rel (%p6007) target = $region44
      $region43: #{tpu_custom_call.1} parent=39 // pred_region
        %s6010 = smul.u32 128, %s15
        %p6011 = scmp.lt.s32.totalorder %s6010, 255
        %s6012 = scalar_select %p6011, %s6010, 255
        %s6013 = smul.addr %s6012, 8
        %s6014 = scalar_lea.vmem %s3, %s6013
      $region44: #{tpu_custom_call.1} parent=39 // pred_fallthru
        _
    $region40: #{tpu_custom_call.1} parent=5 // pred_fallthru
      _
  $region6: #{tpu_custom_call.1} parent=0 // loop_footer
    %s13 = sadd.s32 1, %s9
  $region7: #{tpu_custom_call.1} parent=0 // loop_footer_branch
    %8 = sbr.rel target = $region3
  $region8: #{tpu_custom_call.1} parent=0 // loop_exit
    _

</llo_original>
